<compile_context>
chip_gen: v7x
topology: tpu7x:2x2x1
jax: 0.10.0
libtpu: 0.0.40
codegen_flags: <defaults>
</compile_context>

<pallas_src>
import jax
import jax.numpy as jnp
from jax.experimental import pallas as pl
from jax.experimental.pallas import tpu as pltpu

INPUT_DIM = 784
HIDDEN_DIM = 400
Z_DIM = 20

# Lane-padded dims (multiples of 128).
D_IN_PAD = 896          # 7 * 128
D_H_PAD = 512           # 4 * 128
Z_PAD = 128             # u and log_var each occupy their own 128-lane group
ML_PAD = 2 * Z_PAD      # fused [u | log_var] output width


def _vae_kernel(x_ref, eps_ref,
                w1_ref, b1_ref, w23_ref, b23_ref,
                w4_ref, b4_ref, w5_ref, b5_ref,
                ml_ref, xhat_ref):
    # bf16 matmul inputs, f32 accumulation; elementwise math stays f32.
    x = x_ref[...]                                            # already bf16

    # Encoder: h1 = relu(x @ W1 + b1)
    h1 = jnp.dot(x, w1_ref[...], preferred_element_type=jnp.float32) + b1_ref[...]
    h1 = jnp.maximum(h1, 0.0)

    # Fused heads: single matmul; lanes [0:128) hold u, [128:256) hold log_var
    # (everything outside the first Z_DIM lanes of each group is exactly zero).
    ml = jnp.dot(h1.astype(jnp.bfloat16), w23_ref[...],
                 preferred_element_type=jnp.float32) + b23_ref[...]
    ml_ref[...] = ml

    u_pad = ml[:, :Z_PAD]
    lv_pad = ml[:, Z_PAD:]
    # Reparameterization: z = eps * exp(0.5 * log_var) + u.
    # eps, u, log_var are all zero in the pad lanes, so z_pad is zero there too,
    # keeping the decoder's K dimension lane-dense with no extra FLOPs.
    z_pad = eps_ref[...] * jnp.exp(0.5 * lv_pad) + u_pad

    # Decoder: h2 = relu(z @ W4 + b4); x_hat = sigmoid(h2 @ W5 + b5)
    h2 = jnp.dot(z_pad.astype(jnp.bfloat16), w4_ref[...],
                 preferred_element_type=jnp.float32) + b4_ref[...]
    h2 = jnp.maximum(h2, 0.0)
    logits = jnp.dot(h2.astype(jnp.bfloat16), w5_ref[...],
                     preferred_element_type=jnp.float32) + b5_ref[...]
    xhat_ref[...] = jax.nn.sigmoid(logits)


def vae_forward(x_nchw, packed, eps):
    """x_nchw: (B, 1, 28, 28) f32; eps: (B, Z_DIM) f32 (plays torch.randn_like's role).

    Returns (x_hat (B,1,28,28), u (B,Z), log_var (B,Z))."""
    B = x_nchw.shape[0]
    x_flat = x_nchw.reshape(B, -1)                  # same as torch x.view(B, -1)

    w1, b1, w23, b23, w4, b4, w5, b5 = packed

    # Batch tiling: big batches use 256-row tiles (fills the MXU M dimension,
    # pipelines load/store); small batches round up to the 8-row sublane minimum.
    if B >= 256:
        tile_b = 256
    else:
        tile_b = max(8, ((B + 7) // 8) * 8)
    b_pad = ((B + tile_b - 1) // tile_b) * tile_b
    n_tiles = b_pad // tile_b

    # x is consumed in bf16 by the MXU -> pad/cast once in the wrapper and halve
    # the kernel's per-row HBM read for the largest input.
    x_p = (jnp.zeros((b_pad, D_IN_PAD), jnp.bfloat16)
           .at[:B, :INPUT_DIM].set(x_flat.astype(jnp.bfloat16)))
    eps_p = jnp.zeros((b_pad, Z_PAD), jnp.float32).at[:B, :Z_DIM].set(eps)

    def row_spec(width):
        return pl.BlockSpec((tile_b, width), lambda i: (i, 0))

    def const_spec(a):          # weights/biases: same block every step -> stay resident
        return pl.BlockSpec(a.shape, lambda i: (0, 0))

    flops = 2 * b_pad * (D_IN_PAD * D_H_PAD + D_H_PAD * ML_PAD
                         + Z_PAD * D_H_PAD + D_H_PAD * D_IN_PAD)
    transcendentals = b_pad * (Z_PAD + D_IN_PAD)          # exp + sigmoid
    bytes_accessed = (sum(int(a.size) * a.dtype.itemsize for a in packed)
                      + b_pad * (2 * D_IN_PAD            # x (bf16)
                                 + 4 * (Z_PAD + ML_PAD + D_IN_PAD)))

    ml, xhat_p = pl.pallas_call(
        _vae_kernel,
        out_shape=(
            jax.ShapeDtypeStruct((b_pad, ML_PAD), jnp.float32),
            jax.ShapeDtypeStruct((b_pad, D_IN_PAD), jnp.float32),
        ),
        grid=(n_tiles,),
        in_specs=[
            row_spec(D_IN_PAD), row_spec(Z_PAD),
            const_spec(w1), const_spec(b1),
            const_spec(w23), const_spec(b23),
            const_spec(w4), const_spec(b4),
            const_spec(w5), const_spec(b5),
        ],
        out_specs=(row_spec(ML_PAD), row_spec(D_IN_PAD)),
        compiler_params=pltpu.CompilerParams(
            dimension_semantics=("parallel",)),
        cost_estimate=pl.CostEstimate(
            flops=flops, transcendentals=transcendentals,
            bytes_accessed=bytes_accessed),
    )(x_p, eps_p, w1, b1, w23, b23, w4, b4, w5, b5)

    x_hat = xhat_p[:B, :INPUT_DIM].reshape(B, 1, 28, 28)
    u = ml[:B, :Z_DIM]
    log_var = ml[:B, Z_PAD:Z_PAD + Z_DIM]
    return x_hat, u, log_var


def init_params(key):
    """Deterministic synthetic parameters. Linear weights stored as (in, out);
    biases stored as (1, out). Matches nn.Linear init (uniform ±1/sqrt(fan_in))."""
    keys = jax.random.split(key, 10)

    def lin(kw, kb, fan_in, fan_out):
        bound = 1.0 / jnp.sqrt(fan_in)
        w = jax.random.uniform(kw, (fan_in, fan_out), jnp.float32, -bound, bound)
        b = jax.random.uniform(kb, (1, fan_out), jnp.float32, -bound, bound)
        return w, b

    w1, b1 = lin(keys[0], keys[1], INPUT_DIM, HIDDEN_DIM)
    w2, b2 = lin(keys[2], keys[3], HIDDEN_DIM, Z_DIM)
    w3, b3 = lin(keys[4], keys[5], HIDDEN_DIM, Z_DIM)
    w4, b4 = lin(keys[6], keys[7], Z_DIM, HIDDEN_DIM)
    w5, b5 = lin(keys[8], keys[9], HIDDEN_DIM, INPUT_DIM)
    return (w1, b1, w2, b2, w3, b3, w4, b4, w5, b5)


def pack_params(params):
    """Zero-pad to lane multiples, fuse the two z-heads, cast weights to bf16
    (biases stay f32 — they are added after f32 accumulation)."""
    w1, b1, w2, b2, w3, b3, w4, b4, w5, b5 = params

    def pad2(a, rows, cols):
        return jnp.zeros((rows, cols), jnp.float32).at[:a.shape[0], :a.shape[1]].set(a)

    w1p = pad2(w1, D_IN_PAD, D_H_PAD).astype(jnp.bfloat16)
    b1p = pad2(b1, 1, D_H_PAD)

    w23 = jnp.zeros((D_H_PAD, ML_PAD), jnp.float32)
    w23 = w23.at[:HIDDEN_DIM, :Z_DIM].set(w2)
    w23 = w23.at[:HIDDEN_DIM, Z_PAD:Z_PAD + Z_DIM].set(w3)
    w23 = w23.astype(jnp.bfloat16)
    b23 = jnp.zeros((1, ML_PAD), jnp.float32)
    b23 = b23.at[:, :Z_DIM].set(b2).at[:, Z_PAD:Z_PAD + Z_DIM].set(b3)

    w4p = pad2(w4, Z_PAD, D_H_PAD).astype(jnp.bfloat16)
    b4p = pad2(b4, 1, D_H_PAD)
    w5p = pad2(w5, D_H_PAD, D_IN_PAD).astype(jnp.bfloat16)
    b5p = pad2(b5, 1, D_IN_PAD)
    return (w1p, b1p, w23, b23, w4p, b4p, w5p, b5p)


def vae_reference(x_nchw, params, eps):
    """Pure-JAX f32 reference of the same math (ground truth)."""
    w1, b1, w2, b2, w3, b3, w4, b4, w5, b5 = params
    B = x_nchw.shape[0]
    x = x_nchw.reshape(B, -1)
    h1 = jnp.maximum(x @ w1 + b1, 0.0)
    u = h1 @ w2 + b2
    lv = h1 @ w3 + b3
    z = eps * jnp.exp(0.5 * lv) + u
    h2 = jnp.maximum(z @ w4 + b4, 0.0)
    xh = jax.nn.sigmoid(h2 @ w5 + b5)
    return xh.reshape(B, 1, 28, 28), u, lv


if __name__ == "__main__":
    key = jax.random.PRNGKey(0)
    k_params, k_x, k_eps, k_x2, k_eps2 = jax.random.split(key, 5)

    params = init_params(k_params)
    packed = pack_params(params)
    fwd = jax.jit(vae_forward)

    # Small batch (single grid step; rounded up to the 8-row sublane minimum).
    B = 2
    x = jax.random.normal(k_x, (B, 1, 28, 28), jnp.float32)
    # eps ~ N(0, 1): same role as torch.randn_like(sigma), passed in so the kernel
    # is deterministic given (x, params, eps).
    eps = jax.random.normal(k_eps, (B, Z_DIM), jnp.float32)

    x_hat, u, log_var = fwd(x, packed, eps)
    jax.block_until_ready((x_hat, u, log_var))
    assert x_hat.shape == (B, 1, 28, 28)
    assert u.shape == (B, Z_DIM)
    assert log_var.shape == (B, Z_DIM)

    xh_r, u_r, lv_r = vae_reference(x, params, eps)
    # bf16 matmul inputs -> small deviation from the f32 reference.
    assert jnp.allclose(x_hat, xh_r, atol=2e-2)
    assert jnp.allclose(u, u_r, atol=3e-2)
    assert jnp.allclose(log_var, lv_r, atol=3e-2)

    # Larger batch: exercises the multi-step batch grid and ragged-tail padding.
    B2 = 300
    x2 = jax.random.normal(k_x2, (B2, 1, 28, 28), jnp.float32)
    eps2 = jax.random.normal(k_eps2, (B2, Z_DIM), jnp.float32)
    x_hat2, u2, lv2 = fwd(x2, packed, eps2)
    jax.block_until_ready((x_hat2, u2, lv2))
    xh_r2, u_r2, lv_r2 = vae_reference(x2, params, eps2)
    assert jnp.allclose(x_hat2, xh_r2, atol=2e-2)
    assert jnp.allclose(u2, u_r2, atol=3e-2)
    assert jnp.allclose(lv2, lv_r2, atol=3e-2)

    print("KERNEL_OK")
</pallas_src>

<mosaic_0001>
module attributes {stable_mosaic.version = 11 : i64} {
  func.func @_vae_kernel(%arg0: i32, %arg1: memref<8x896xbf16, #tpu.memory_space<vmem>>, %arg2: memref<8x128xf32, #tpu.memory_space<vmem>>, %arg3: memref<896x512xbf16, #tpu.memory_space<vmem>>, %arg4: memref<1x512xf32, #tpu.memory_space<vmem>>, %arg5: memref<512x256xbf16, #tpu.memory_space<vmem>>, %arg6: memref<1x256xf32, #tpu.memory_space<vmem>>, %arg7: memref<128x512xbf16, #tpu.memory_space<vmem>>, %arg8: memref<1x512xf32, #tpu.memory_space<vmem>>, %arg9: memref<512x896xbf16, #tpu.memory_space<vmem>>, %arg10: memref<1x896xf32, #tpu.memory_space<vmem>>, %arg11: memref<8x256xf32, #tpu.memory_space<vmem>>, %arg12: memref<8x896xf32, #tpu.memory_space<vmem>>) attributes {dimension_semantics = [#tpu.dimension_semantics<parallel>], iteration_bounds = array<i64: 1>, scalar_prefetch = 0 : i64, scratch_operands = 0 : i64, tpu.core_type = #tpu.core_type<tc>, window_params = [{transform_indices = @transform_0, window_bounds = array<i64: 8, 896>}, {transform_indices = @transform_1, window_bounds = array<i64: 8, 128>}, {pipeline_mode = #tpu.pipeline_mode<synchronous>, transform_indices = @transform_2, window_bounds = array<i64: 896, 512>}, {pipeline_mode = #tpu.pipeline_mode<synchronous>, transform_indices = @transform_3, window_bounds = array<i64: 1, 512>}, {pipeline_mode = #tpu.pipeline_mode<synchronous>, transform_indices = @transform_4, window_bounds = array<i64: 512, 256>}, {pipeline_mode = #tpu.pipeline_mode<synchronous>, transform_indices = @transform_5, window_bounds = array<i64: 1, 256>}, {pipeline_mode = #tpu.pipeline_mode<synchronous>, transform_indices = @transform_6, window_bounds = array<i64: 128, 512>}, {pipeline_mode = #tpu.pipeline_mode<synchronous>, transform_indices = @transform_7, window_bounds = array<i64: 1, 512>}, {pipeline_mode = #tpu.pipeline_mode<synchronous>, transform_indices = @transform_8, window_bounds = array<i64: 512, 896>}, {pipeline_mode = #tpu.pipeline_mode<synchronous>, transform_indices = @transform_9, window_bounds = array<i64: 1, 896>}, {transform_indices = @transform_10, window_bounds = array<i64: 8, 256>}, {transform_indices = @transform_11, window_bounds = array<i64: 8, 896>}]} {
    %c0 = arith.constant 0 : index
    %c0_0 = arith.constant 0 : index
    %0 = vector.load %arg1[%c0, %c0_0] : memref<8x896xbf16, #tpu.memory_space<vmem>>, vector<8x896xbf16>
    %c0_1 = arith.constant 0 : index
    %c0_2 = arith.constant 0 : index
    %1 = vector.load %arg3[%c0_1, %c0_2] : memref<896x512xbf16, #tpu.memory_space<vmem>>, vector<896x512xbf16>
    %cst = arith.constant dense<0.000000e+00> : vector<8x512xf32>
    %2 = tpu.matmul %0, %1, %cst {dimension_numbers = #tpu.dot_dimension_numbers<[1], [0], [0], [1], [0, 0, 1, 1], [], []>} : vector<8x896xbf16>, vector<896x512xbf16>, vector<8x512xf32> -> vector<8x512xf32>
    %c0_3 = arith.constant 0 : index
    %c0_4 = arith.constant 0 : index
    %3 = vector.load %arg4[%c0_3, %c0_4] : memref<1x512xf32, #tpu.memory_space<vmem>>, vector<1x512xf32>
    %4 = vector.broadcast %3 : vector<1x512xf32> to vector<8x512xf32>
    %5 = arith.addf %2, %4 : vector<8x512xf32>
    %cst_5 = arith.constant 0.000000e+00 : f32
    %6 = vector.broadcast %cst_5 : f32 to vector<8x512xf32>
    %7 = arith.maximumf %5, %6 : vector<8x512xf32>
    %8 = arith.truncf %7 : vector<8x512xf32> to vector<8x512xbf16>
    %c0_6 = arith.constant 0 : index
    %c0_7 = arith.constant 0 : index
    %9 = vector.load %arg5[%c0_6, %c0_7] : memref<512x256xbf16, #tpu.memory_space<vmem>>, vector<512x256xbf16>
    %cst_8 = arith.constant dense<0.000000e+00> : vector<8x256xf32>
    %10 = tpu.matmul %8, %9, %cst_8 {dimension_numbers = #tpu.dot_dimension_numbers<[1], [0], [0], [1], [0, 0, 1, 1], [], []>} : vector<8x512xbf16>, vector<512x256xbf16>, vector<8x256xf32> -> vector<8x256xf32>
    %c0_9 = arith.constant 0 : index
    %c0_10 = arith.constant 0 : index
    %11 = vector.load %arg6[%c0_9, %c0_10] : memref<1x256xf32, #tpu.memory_space<vmem>>, vector<1x256xf32>
    %12 = vector.broadcast %11 : vector<1x256xf32> to vector<8x256xf32>
    %13 = arith.addf %10, %12 : vector<8x256xf32>
    %c0_11 = arith.constant 0 : index
    %c0_12 = arith.constant 0 : index
    %14 = vector.load %arg11[%c0_11, %c0_12] : memref<8x256xf32, #tpu.memory_space<vmem>>, vector<8x256xf32>
    tpu.vector_store %arg11[%c0_11, %c0_12], %13 {strides = array<i32>} : memref<8x256xf32, #tpu.memory_space<vmem>>, vector<8x256xf32>,
    %15 = vector.extract_strided_slice %13 {offsets = [0, 0], sizes = [8, 128], strides = [1, 1]} : vector<8x256xf32> to vector<8x128xf32>
    %16 = vector.extract_strided_slice %13 {offsets = [0, 128], sizes = [8, 128], strides = [1, 1]} : vector<8x256xf32> to vector<8x128xf32>
    %c0_13 = arith.constant 0 : index
    %c0_14 = arith.constant 0 : index
    %17 = vector.load %arg2[%c0_13, %c0_14] : memref<8x128xf32, #tpu.memory_space<vmem>>, vector<8x128xf32>
    %cst_15 = arith.constant 5.000000e-01 : f32
    %18 = vector.broadcast %cst_15 : f32 to vector<8x128xf32>
    %19 = arith.mulf %18, %16 : vector<8x128xf32>
    %20 = math.exp %19 : vector<8x128xf32>
    %21 = arith.mulf %17, %20 : vector<8x128xf32>
    %22 = arith.addf %21, %15 : vector<8x128xf32>
    %23 = arith.truncf %22 : vector<8x128xf32> to vector<8x128xbf16>
    %c0_16 = arith.constant 0 : index
    %c0_17 = arith.constant 0 : index
    %24 = vector.load %arg7[%c0_16, %c0_17] : memref<128x512xbf16, #tpu.memory_space<vmem>>, vector<128x512xbf16>
    %cst_18 = arith.constant dense<0.000000e+00> : vector<8x512xf32>
    %25 = tpu.matmul %23, %24, %cst_18 {dimension_numbers = #tpu.dot_dimension_numbers<[1], [0], [0], [1], [0, 0, 1, 1], [], []>} : vector<8x128xbf16>, vector<128x512xbf16>, vector<8x512xf32> -> vector<8x512xf32>
    %c0_19 = arith.constant 0 : index
    %c0_20 = arith.constant 0 : index
    %26 = vector.load %arg8[%c0_19, %c0_20] : memref<1x512xf32, #tpu.memory_space<vmem>>, vector<1x512xf32>
    %27 = vector.broadcast %26 : vector<1x512xf32> to vector<8x512xf32>
    %28 = arith.addf %25, %27 : vector<8x512xf32>
    %cst_21 = arith.constant 0.000000e+00 : f32
    %29 = vector.broadcast %cst_21 : f32 to vector<8x512xf32>
    %30 = arith.maximumf %28, %29 : vector<8x512xf32>
    %31 = arith.truncf %30 : vector<8x512xf32> to vector<8x512xbf16>
    %c0_22 = arith.constant 0 : index
    %c0_23 = arith.constant 0 : index
    %32 = vector.load %arg9[%c0_22, %c0_23] : memref<512x896xbf16, #tpu.memory_space<vmem>>, vector<512x896xbf16>
    %cst_24 = arith.constant dense<0.000000e+00> : vector<8x896xf32>
    %33 = tpu.matmul %31, %32, %cst_24 {dimension_numbers = #tpu.dot_dimension_numbers<[1], [0], [0], [1], [0, 0, 1, 1], [], []>} : vector<8x512xbf16>, vector<512x896xbf16>, vector<8x896xf32> -> vector<8x896xf32>
    %c0_25 = arith.constant 0 : index
    %c0_26 = arith.constant 0 : index
    %34 = vector.load %arg10[%c0_25, %c0_26] : memref<1x896xf32, #tpu.memory_space<vmem>>, vector<1x896xf32>
    %35 = vector.broadcast %34 : vector<1x896xf32> to vector<8x896xf32>
    %36 = arith.addf %33, %35 : vector<8x896xf32>
    %37 = arith.negf %36 : vector<8x896xf32>
    %38 = math.exp %37 : vector<8x896xf32>
    %cst_27 = arith.constant 1.000000e+00 : f32
    %39 = vector.broadcast %cst_27 : f32 to vector<8x896xf32>
    %40 = arith.addf %39, %38 : vector<8x896xf32>
    %41 = arith.divf %39, %40 : vector<8x896xf32>
    %c0_28 = arith.constant 0 : index
    %c0_29 = arith.constant 0 : index
    %42 = vector.load %arg12[%c0_28, %c0_29] : memref<8x896xf32, #tpu.memory_space<vmem>>, vector<8x896xf32>
    tpu.vector_store %arg12[%c0_28, %c0_29], %41 {strides = array<i32>} : memref<8x896xf32, #tpu.memory_space<vmem>>, vector<8x896xf32>,
    return
  }
  func.func @transform_0(%arg0: i32) -> (i32, i32) {
    %c0_i32 = arith.constant 0 : i32
    %c0_i32_0 = arith.constant 0 : i32
    return %arg0, %c0_i32 : i32, i32
  }
  func.func @transform_1(%arg0: i32) -> (i32, i32) {
    %c0_i32 = arith.constant 0 : i32
    %c0_i32_0 = arith.constant 0 : i32
    return %arg0, %c0_i32 : i32, i32
  }
  func.func @transform_2(%arg0: i32) -> (i32, i32) {
    %c0_i32 = arith.constant 0 : i32
    %c0_i32_0 = arith.constant 0 : i32
    %c0_i32_1 = arith.constant 0 : i32
    return %c0_i32, %c0_i32_0 : i32, i32
  }
  func.func @transform_3(%arg0: i32) -> (i32, i32) {
    %c0_i32 = arith.constant 0 : i32
    %c0_i32_0 = arith.constant 0 : i32
    %c0_i32_1 = arith.constant 0 : i32
    return %c0_i32, %c0_i32_0 : i32, i32
  }
  func.func @transform_4(%arg0: i32) -> (i32, i32) {
    %c0_i32 = arith.constant 0 : i32
    %c0_i32_0 = arith.constant 0 : i32
    %c0_i32_1 = arith.constant 0 : i32
    return %c0_i32, %c0_i32_0 : i32, i32
  }
  func.func @transform_5(%arg0: i32) -> (i32, i32) {
    %c0_i32 = arith.constant 0 : i32
    %c0_i32_0 = arith.constant 0 : i32
    %c0_i32_1 = arith.constant 0 : i32
    return %c0_i32, %c0_i32_0 : i32, i32
  }
  func.func @transform_6(%arg0: i32) -> (i32, i32) {
    %c0_i32 = arith.constant 0 : i32
    %c0_i32_0 = arith.constant 0 : i32
    %c0_i32_1 = arith.constant 0 : i32
    return %c0_i32, %c0_i32_0 : i32, i32
  }
  func.func @transform_7(%arg0: i32) -> (i32, i32) {
    %c0_i32 = arith.constant 0 : i32
    %c0_i32_0 = arith.constant 0 : i32
    %c0_i32_1 = arith.constant 0 : i32
    return %c0_i32, %c0_i32_0 : i32, i32
  }
  func.func @transform_8(%arg0: i32) -> (i32, i32) {
    %c0_i32 = arith.constant 0 : i32
    %c0_i32_0 = arith.constant 0 : i32
    %c0_i32_1 = arith.constant 0 : i32
    return %c0_i32, %c0_i32_0 : i32, i32
  }
  func.func @transform_9(%arg0: i32) -> (i32, i32) {
    %c0_i32 = arith.constant 0 : i32
    %c0_i32_0 = arith.constant 0 : i32
    %c0_i32_1 = arith.constant 0 : i32
    return %c0_i32, %c0_i32_0 : i32, i32
  }
  func.func @transform_10(%arg0: i32) -> (i32, i32) {
    %c0_i32 = arith.constant 0 : i32
    %c0_i32_0 = arith.constant 0 : i32
    return %arg0, %c0_i32 : i32, i32
  }
  func.func @transform_11(%arg0: i32) -> (i32, i32) {
    %c0_i32 = arith.constant 0 : i32
    %c0_i32_0 = arith.constant 0 : i32
    return %arg0, %c0_i32 : i32, i32
  }
}

</mosaic_0001>

<llo_original>
// kernel: vae_forward.1
$region0: #{vae_forward.1}
  #allocation0 [shape = 'u32[]', space=smem, size = 0x4, offset = 0x4, fixed_abs, tag = 'smem constant byte address 0x4 - core index']
  #allocation1 [shape = 'u32[144,128]{1,0:T(1,128)}', space=vmem, size = 0x12000, scoped, tag = 'internal scratch']
  %s0 = inlined_call_operand.vmem [shape: bf16[8,896], index: 0, kind: input, shape index: {}]
  %s1 = inlined_call_operand.vmem [shape: f32[8,128], index: 1, kind: input, shape index: {}]
  %s2 = inlined_call_operand.hbm [shape: bf16[896,512], index: 2, kind: input, shape index: {}]
  %s3 = inlined_call_operand.vmem [shape: f32[1,512], index: 3, kind: input, shape index: {}]
  %s4 = inlined_call_operand.hbm [shape: bf16[512,256], index: 4, kind: input, shape index: {}]
  %s5 = inlined_call_operand.vmem [shape: f32[1,256], index: 5, kind: input, shape index: {}]
  %s6 = inlined_call_operand.hbm [shape: bf16[128,512], index: 6, kind: input, shape index: {}]
  %s7 = inlined_call_operand.vmem [shape: f32[1,512], index: 7, kind: input, shape index: {}]
  %s8 = inlined_call_operand.hbm [shape: bf16[512,896], index: 8, kind: input, shape index: {}]
  %s9 = inlined_call_operand.vmem [shape: f32[1,896], index: 9, kind: input, shape index: {}]
  %s10 = inlined_call_operand.vmem [shape: f32[8,256], index: 10, kind: output, shape index: {0}]
  %s11 = inlined_call_operand.vmem [shape: f32[8,896], index: 11, kind: output, shape index: {1}]
  %12 = xla_tuple %s10, %s11
  %s13 = sld [smem:[#allocation0]]
  $region74: #{vae_forward.1} parent=0
    _
  %s15 = ssub.s32 1, %s13
  %s16 = scalar_select 0, %s15, %s13
  $region1: #{vae_forward.1} parent=0
    #allocation2 [shape = 'u8[917504]{0}', space=vmem, size = 0xe0000, scoped, tag = 'input window, operand 2, single buffered']
    #allocation3 [shape = 's32[1]{0}', space=sflag, size = 0x4, scoped, tag = 'scoped memory for vae_forward.1']
    #allocation4 [shape = 'u8[262144]{0}', space=vmem, size = 0x40000, scoped, tag = 'input window, operand 4, single buffered']
    #allocation5 [shape = 's32[1]{0}', space=sflag, size = 0x4, scoped, tag = 'scoped memory for vae_forward.1']
    #allocation6 [shape = 'u8[131072]{0}', space=vmem, size = 0x20000, scoped, tag = 'input window, operand 6, single buffered']
    #allocation7 [shape = 'u8[917504]{0}', space=vmem, size = 0xe0000, scoped, tag = 'input window, operand 8, single buffered']
    #allocation8 [shape = 's32[1]{0}', space=sflag, size = 0x4, scoped, tag = 'scoped memory for vae_forward.1']
    %17 = vsyncpa [#allocation3], 0
    %18 = vsyncpa [#allocation5], 0
    %19 = vsyncpa [#allocation8], 0
    // Predicated region
    $region2: #{vae_forward.1} parent=1 // pred_check
      _
    $region3: #{vae_forward.1} parent=1 // pred_check_branch
      %21 = sbr.rel (0) target = $region5
    $region4: #{vae_forward.1} parent=1 // pred_region
      _
    $region5: #{vae_forward.1} parent=1 // pred_fallthru
      _
    // Predicated region
    $region6: #{vae_forward.1} parent=1 // pred_check
      _
    $region7: #{vae_forward.1} parent=1 // pred_check_branch
      %23 = sbr.rel (0) target = $region9
    $region8: #{vae_forward.1} parent=1 // pred_region
      _
    $region9: #{vae_forward.1} parent=1 // pred_fallthru
      _
    // Predicated region
    $region10: #{vae_forward.1} parent=1 // pred_check
      _
    $region11: #{vae_forward.1} parent=1 // pred_check_branch
      %25 = sbr.rel (0) target = $region13
    $region12: #{vae_forward.1} parent=1 // pred_region
      %s27 = ssub.s32 28672, 28672
      %28 = vsyncadd [#allocation3], %s27
      %s29 = sshll.u32 [#allocation2], 4
      %s30 = int_to_ptr.vmem [resolvable:$true] %s29
      %35 = dma.hbm_to_vmem [thread:$0]  %s2, 28672, %s30, [#allocation3], 256, 256, 16
    $region13: #{vae_forward.1} parent=1 // pred_fallthru
      _
    // Predicated region
    $region14: #{vae_forward.1} parent=1 // pred_check
      _
    $region15: #{vae_forward.1} parent=1 // pred_check_branch
      %37 = sbr.rel (0) target = $region17
    $region16: #{vae_forward.1} parent=1 // pred_region
      _
    $region17: #{vae_forward.1} parent=1 // pred_fallthru
      _
    // Predicated region
    $region18: #{vae_forward.1} parent=1 // pred_check
      _
    $region19: #{vae_forward.1} parent=1 // pred_check_branch
      %39 = sbr.rel (0) target = $region21
    $region20: #{vae_forward.1} parent=1 // pred_region
      %s41 = ssub.s32 8192, 8192
      %42 = vsyncadd [#allocation5], %s41
      %s43 = sshll.u32 [#allocation4], 4
      %s44 = int_to_ptr.vmem [resolvable:$true] %s43
      %49 = dma.hbm_to_vmem [thread:$0]  %s4, 8192, %s44, [#allocation5], 128, 128, 8
    $region21: #{vae_forward.1} parent=1 // pred_fallthru
      _
    // Predicated region
    $region22: #{vae_forward.1} parent=1 // pred_check
      _
    $region23: #{vae_forward.1} parent=1 // pred_check_branch
      %51 = sbr.rel (0) target = $region25
    $region24: #{vae_forward.1} parent=1 // pred_region
      _
    $region25: #{vae_forward.1} parent=1 // pred_fallthru
      _
    // Predicated region
    $region26: #{vae_forward.1} parent=1 // pred_check
      _
    $region27: #{vae_forward.1} parent=1 // pred_check_branch
      %53 = sbr.rel (0) target = $region29
    $region28: #{vae_forward.1} parent=1 // pred_region
      %s55 = ssub.s32 4096, 4096
      %56 = vsyncadd [#allocation5], %s55
      %s57 = sshll.u32 [#allocation6], 4
      %s58 = int_to_ptr.vmem [resolvable:$true] %s57
      %63 = dma.hbm_to_vmem [thread:$0]  %s6, 4096, %s58, [#allocation5], 256, 256, 16
    $region29: #{vae_forward.1} parent=1 // pred_fallthru
      _
    // Predicated region
    $region30: #{vae_forward.1} parent=1 // pred_check
      _
    $region31: #{vae_forward.1} parent=1 // pred_check_branch
      %65 = sbr.rel (0) target = $region33
    $region32: #{vae_forward.1} parent=1 // pred_region
      _
    $region33: #{vae_forward.1} parent=1 // pred_fallthru
      _
    // Predicated region
    $region34: #{vae_forward.1} parent=1 // pred_check
      _
    $region35: #{vae_forward.1} parent=1 // pred_check_branch
      %67 = sbr.rel (0) target = $region37
    $region36: #{vae_forward.1} parent=1 // pred_region
      %s69 = ssub.s32 28672, 28672
      %70 = vsyncadd [#allocation8], %s69
      %s71 = sshll.u32 [#allocation7], 4
      %s72 = int_to_ptr.vmem [resolvable:$true] %s71
      %77 = dma.hbm_to_vmem [thread:$0]  %s8, 28672, %s72, [#allocation8], 448, 448, 28
    $region37: #{vae_forward.1} parent=1 // pred_fallthru
      _
    // Predicated region
    $region38: #{vae_forward.1} parent=1 // pred_check
      _
    $region39: #{vae_forward.1} parent=1 // pred_check_branch
      %79 = sbr.rel (0) target = $region41
    $region40: #{vae_forward.1} parent=1 // pred_region
      _
    $region41: #{vae_forward.1} parent=1 // pred_fallthru
      _
    // Predicated region
    $region42: #{vae_forward.1} parent=1 // pred_check
      _
    $region43: #{vae_forward.1} parent=1 // pred_check_branch
      %81 = sbr.rel (0) target = $region45
    $region44: #{vae_forward.1} parent=1 // pred_region
      %82 = dma.done [#allocation3], 28672
    $region45: #{vae_forward.1} parent=1 // pred_fallthru
      _
    // Predicated region
    $region46: #{vae_forward.1} parent=1 // pred_check
      _
    $region47: #{vae_forward.1} parent=1 // pred_check_branch
      %84 = sbr.rel (0) target = $region49
    $region48: #{vae_forward.1} parent=1 // pred_region
      %85 = dma.done [#allocation5], 8192
    $region49: #{vae_forward.1} parent=1 // pred_fallthru
      _
    // Predicated region
    $region50: #{vae_forward.1} parent=1 // pred_check
      _
    $region51: #{vae_forward.1} parent=1 // pred_check_branch
      %87 = sbr.rel (0) target = $region53
    $region52: #{vae_forward.1} parent=1 // pred_region
      %88 = dma.done [#allocation5], 4096
    $region53: #{vae_forward.1} parent=1 // pred_fallthru
      _
    // Predicated region
    $region54: #{vae_forward.1} parent=1 // pred_check
      _
    $region55: #{vae_forward.1} parent=1 // pred_check_branch
      %90 = sbr.rel (0) target = $region57
    $region56: #{vae_forward.1} parent=1 // pred_region
      %91 = dma.done [#allocation8], 28672
    $region57: #{vae_forward.1} parent=1 // pred_fallthru
      _
    %v93 = vld [vmem:[%s0] sm:$0xff]
    %v94 = vld [vmem:[%s0 + $0x8] sm:$0xff]
    %v95 = vld [vmem:[%s0 + $0x10] sm:$0xff]
    %v96 = vld [vmem:[%s0 + $0x18] sm:$0xf]
    %v97 = vld [vmem:[#allocation2] sm:$0xff]
    %v98 = vld [vmem:[#allocation2 + $0x8] sm:$0xff]
    %v99 = vld [vmem:[#allocation2 + $0x10] sm:$0xff]
    %v100 = vld [vmem:[#allocation2 + $0x18] sm:$0xff]
    %v101 = vld [vmem:[#allocation2 + $0x20] sm:$0xff]
    %v102 = vld [vmem:[#allocation2 + $0x28] sm:$0xff]
    %v103 = vld [vmem:[#allocation2 + $0x30] sm:$0xff]
    %v104 = vld [vmem:[#allocation2 + $0x38] sm:$0xff]
    %v105 = vld [vmem:[#allocation2 + $0x40] sm:$0xff]
    %v106 = vld [vmem:[#allocation2 + $0x48] sm:$0xff]
    %v107 = vld [vmem:[#allocation2 + $0x50] sm:$0xff]
    %v108 = vld [vmem:[#allocation2 + $0x58] sm:$0xff]
    %v109 = vld [vmem:[#allocation2 + $0x60] sm:$0xff]
    %v110 = vld [vmem:[#allocation2 + $0x68] sm:$0xff]
    %v111 = vld [vmem:[#allocation2 + $0x70] sm:$0xff]
    %v112 = vld [vmem:[#allocation2 + $0x78] sm:$0xff]
    %v113 = vld [vmem:[#allocation2 + $0x80] sm:$0xff]
    %v114 = vld [vmem:[#allocation2 + $0x88] sm:$0xff]
    %v115 = vld [vmem:[#allocation2 + $0x90] sm:$0xff]
    %v116 = vld [vmem:[#allocation2 + $0x98] sm:$0xff]
    %v117 = vld [vmem:[#allocation2 + $0xa0] sm:$0xff]
    %v118 = vld [vmem:[#allocation2 + $0xa8] sm:$0xff]
    %v119 = vld [vmem:[#allocation2 + $0xb0] sm:$0xff]
    %v120 = vld [vmem:[#allocation2 + $0xb8] sm:$0xff]
    %v121 = vld [vmem:[#allocation2 + $0xc0] sm:$0xff]
    %v122 = vld [vmem:[#allocation2 + $0xc8] sm:$0xff]
    %v123 = vld [vmem:[#allocation2 + $0xd0] sm:$0xff]
    %v124 = vld [vmem:[#allocation2 + $0xd8] sm:$0xff]
    %v125 = vld [vmem:[#allocation2 + $0xe0] sm:$0xff]
    %v126 = vld [vmem:[#allocation2 + $0xe8] sm:$0xff]
    %v127 = vld [vmem:[#allocation2 + $0xf0] sm:$0xff]
    %v128 = vld [vmem:[#allocation2 + $0xf8] sm:$0xff]
    %v129 = vld [vmem:[#allocation2 + $0x100] sm:$0xff]
    %v130 = vld [vmem:[#allocation2 + $0x108] sm:$0xff]
    %v131 = vld [vmem:[#allocation2 + $0x110] sm:$0xff]
    %v132 = vld [vmem:[#allocation2 + $0x118] sm:$0xff]
    %v133 = vld [vmem:[#allocation2 + $0x120] sm:$0xff]
    %v134 = vld [vmem:[#allocation2 + $0x128] sm:$0xff]
    %v135 = vld [vmem:[#allocation2 + $0x130] sm:$0xff]
    %v136 = vld [vmem:[#allocation2 + $0x138] sm:$0xff]
    %v137 = vld [vmem:[#allocation2 + $0x140] sm:$0xff]
    %v138 = vld [vmem:[#allocation2 + $0x148] sm:$0xff]
    %v139 = vld [vmem:[#allocation2 + $0x150] sm:$0xff]
    %v140 = vld [vmem:[#allocation2 + $0x158] sm:$0xff]
    %v141 = vld [vmem:[#allocation2 + $0x160] sm:$0xff]
    %v142 = vld [vmem:[#allocation2 + $0x168] sm:$0xff]
    %v143 = vld [vmem:[#allocation2 + $0x170] sm:$0xff]
    %v144 = vld [vmem:[#allocation2 + $0x178] sm:$0xff]
    %v145 = vld [vmem:[#allocation2 + $0x180] sm:$0xff]
    %v146 = vld [vmem:[#allocation2 + $0x188] sm:$0xff]
    %v147 = vld [vmem:[#allocation2 + $0x190] sm:$0xff]
    %v148 = vld [vmem:[#allocation2 + $0x198] sm:$0xff]
    %v149 = vld [vmem:[#allocation2 + $0x1a0] sm:$0xff]
    %v150 = vld [vmem:[#allocation2 + $0x1a8] sm:$0xff]
    %v151 = vld [vmem:[#allocation2 + $0x1b0] sm:$0xff]
    %v152 = vld [vmem:[#allocation2 + $0x1b8] sm:$0xff]
    %v153 = vld [vmem:[#allocation2 + $0x1c0] sm:$0xff]
    %v154 = vld [vmem:[#allocation2 + $0x1c8] sm:$0xff]
    %v155 = vld [vmem:[#allocation2 + $0x1d0] sm:$0xff]
    %v156 = vld [vmem:[#allocation2 + $0x1d8] sm:$0xff]
    %v157 = vld [vmem:[#allocation2 + $0x1e0] sm:$0xff]
    %v158 = vld [vmem:[#allocation2 + $0x1e8] sm:$0xff]
    %v159 = vld [vmem:[#allocation2 + $0x1f0] sm:$0xff]
    %v160 = vld [vmem:[#allocation2 + $0x1f8] sm:$0xff]
    %v161 = vld [vmem:[#allocation2 + $0x200] sm:$0xff]
    %v162 = vld [vmem:[#allocation2 + $0x208] sm:$0xff]
    %v163 = vld [vmem:[#allocation2 + $0x210] sm:$0xff]
    %v164 = vld [vmem:[#allocation2 + $0x218] sm:$0xff]
    %v165 = vld [vmem:[#allocation2 + $0x220] sm:$0xff]
    %v166 = vld [vmem:[#allocation2 + $0x228] sm:$0xff]
    %v167 = vld [vmem:[#allocation2 + $0x230] sm:$0xff]
    %v168 = vld [vmem:[#allocation2 + $0x238] sm:$0xff]
    %v169 = vld [vmem:[#allocation2 + $0x240] sm:$0xff]
    %v170 = vld [vmem:[#allocation2 + $0x248] sm:$0xff]
    %v171 = vld [vmem:[#allocation2 + $0x250] sm:$0xff]
    %v172 = vld [vmem:[#allocation2 + $0x258] sm:$0xff]
    %v173 = vld [vmem:[#allocation2 + $0x260] sm:$0xff]
    %v174 = vld [vmem:[#allocation2 + $0x268] sm:$0xff]
    %v175 = vld [vmem:[#allocation2 + $0x270] sm:$0xff]
    %v176 = vld [vmem:[#allocation2 + $0x278] sm:$0xff]
    %v177 = vld [vmem:[#allocation2 + $0x280] sm:$0xff]
    %v178 = vld [vmem:[#allocation2 + $0x288] sm:$0xff]
    %v179 = vld [vmem:[#allocation2 + $0x290] sm:$0xff]
    %v180 = vld [vmem:[#allocation2 + $0x298] sm:$0xff]
    %v181 = vld [vmem:[#allocation2 + $0x2a0] sm:$0xff]
    %v182 = vld [vmem:[#allocation2 + $0x2a8] sm:$0xff]
    %v183 = vld [vmem:[#allocation2 + $0x2b0] sm:$0xff]
    %v184 = vld [vmem:[#allocation2 + $0x2b8] sm:$0xff]
    %v185 = vld [vmem:[#allocation2 + $0x2c0] sm:$0xff]
    %v186 = vld [vmem:[#allocation2 + $0x2c8] sm:$0xff]
    %v187 = vld [vmem:[#allocation2 + $0x2d0] sm:$0xff]
    %v188 = vld [vmem:[#allocation2 + $0x2d8] sm:$0xff]
    %v189 = vld [vmem:[#allocation2 + $0x2e0] sm:$0xff]
    %v190 = vld [vmem:[#allocation2 + $0x2e8] sm:$0xff]
    %v191 = vld [vmem:[#allocation2 + $0x2f0] sm:$0xff]
    %v192 = vld [vmem:[#allocation2 + $0x2f8] sm:$0xff]
    %v193 = vld [vmem:[#allocation2 + $0x300] sm:$0xff]
    %v194 = vld [vmem:[#allocation2 + $0x308] sm:$0xff]
    %v195 = vld [vmem:[#allocation2 + $0x310] sm:$0xff]
    %v196 = vld [vmem:[#allocation2 + $0x318] sm:$0xff]
    %v197 = vld [vmem:[#allocation2 + $0x320] sm:$0xff]
    %v198 = vld [vmem:[#allocation2 + $0x328] sm:$0xff]
    %v199 = vld [vmem:[#allocation2 + $0x330] sm:$0xff]
    %v200 = vld [vmem:[#allocation2 + $0x338] sm:$0xff]
    %v201 = vld [vmem:[#allocation2 + $0x340] sm:$0xff]
    %v202 = vld [vmem:[#allocation2 + $0x348] sm:$0xff]
    %v203 = vld [vmem:[#allocation2 + $0x350] sm:$0xff]
    %v204 = vld [vmem:[#allocation2 + $0x358] sm:$0xff]
    %v205 = vld [vmem:[#allocation2 + $0x360] sm:$0xff]
    %v206 = vld [vmem:[#allocation2 + $0x368] sm:$0xff]
    %v207 = vld [vmem:[#allocation2 + $0x370] sm:$0xff]
    %v208 = vld [vmem:[#allocation2 + $0x378] sm:$0xff]
    %v209 = vld [vmem:[#allocation2 + $0x380] sm:$0xff]
    %v210 = vld [vmem:[#allocation2 + $0x388] sm:$0xff]
    %v211 = vld [vmem:[#allocation2 + $0x390] sm:$0xff]
    %v212 = vld [vmem:[#allocation2 + $0x398] sm:$0xff]
    %v213 = vld [vmem:[#allocation2 + $0x3a0] sm:$0xff]
    %v214 = vld [vmem:[#allocation2 + $0x3a8] sm:$0xff]
    %v215 = vld [vmem:[#allocation2 + $0x3b0] sm:$0xff]
    %v216 = vld [vmem:[#allocation2 + $0x3b8] sm:$0xff]
    %v217 = vld [vmem:[#allocation2 + $0x3c0] sm:$0xff]
    %v218 = vld [vmem:[#allocation2 + $0x3c8] sm:$0xff]
    %v219 = vld [vmem:[#allocation2 + $0x3d0] sm:$0xff]
    %v220 = vld [vmem:[#allocation2 + $0x3d8] sm:$0xff]
    %v221 = vld [vmem:[#allocation2 + $0x3e0] sm:$0xff]
    %v222 = vld [vmem:[#allocation2 + $0x3e8] sm:$0xff]
    %v223 = vld [vmem:[#allocation2 + $0x3f0] sm:$0xff]
    %v224 = vld [vmem:[#allocation2 + $0x3f8] sm:$0xff]
    %v225 = vld [vmem:[#allocation2 + $0x400] sm:$0xff]
    %v226 = vld [vmem:[#allocation2 + $0x408] sm:$0xff]
    %v227 = vld [vmem:[#allocation2 + $0x410] sm:$0xff]
    %v228 = vld [vmem:[#allocation2 + $0x418] sm:$0xff]
    %v229 = vld [vmem:[#allocation2 + $0x420] sm:$0xff]
    %v230 = vld [vmem:[#allocation2 + $0x428] sm:$0xff]
    %v231 = vld [vmem:[#allocation2 + $0x430] sm:$0xff]
    %v232 = vld [vmem:[#allocation2 + $0x438] sm:$0xff]
    %v233 = vld [vmem:[#allocation2 + $0x440] sm:$0xff]
    %v234 = vld [vmem:[#allocation2 + $0x448] sm:$0xff]
    %v235 = vld [vmem:[#allocation2 + $0x450] sm:$0xff]
    %v236 = vld [vmem:[#allocation2 + $0x458] sm:$0xff]
    %v237 = vld [vmem:[#allocation2 + $0x460] sm:$0xff]
    %v238 = vld [vmem:[#allocation2 + $0x468] sm:$0xff]
    %v239 = vld [vmem:[#allocation2 + $0x470] sm:$0xff]
    %v240 = vld [vmem:[#allocation2 + $0x478] sm:$0xff]
    %v241 = vld [vmem:[#allocation2 + $0x480] sm:$0xff]
    %v242 = vld [vmem:[#allocation2 + $0x488] sm:$0xff]
    %v243 = vld [vmem:[#allocation2 + $0x490] sm:$0xff]
    %v244 = vld [vmem:[#allocation2 + $0x498] sm:$0xff]
    %v245 = vld [vmem:[#allocation2 + $0x4a0] sm:$0xff]
    %v246 = vld [vmem:[#allocation2 + $0x4a8] sm:$0xff]
    %v247 = vld [vmem:[#allocation2 + $0x4b0] sm:$0xff]
    %v248 = vld [vmem:[#allocation2 + $0x4b8] sm:$0xff]
    %v249 = vld [vmem:[#allocation2 + $0x4c0] sm:$0xff]
    %v250 = vld [vmem:[#allocation2 + $0x4c8] sm:$0xff]
    %v251 = vld [vmem:[#allocation2 + $0x4d0] sm:$0xff]
    %v252 = vld [vmem:[#allocation2 + $0x4d8] sm:$0xff]
    %v253 = vld [vmem:[#allocation2 + $0x4e0] sm:$0xff]
    %v254 = vld [vmem:[#allocation2 + $0x4e8] sm:$0xff]
    %v255 = vld [vmem:[#allocation2 + $0x4f0] sm:$0xff]
    %v256 = vld [vmem:[#allocation2 + $0x4f8] sm:$0xff]
    %v257 = vld [vmem:[#allocation2 + $0x500] sm:$0xff]
    %v258 = vld [vmem:[#allocation2 + $0x508] sm:$0xff]
    %v259 = vld [vmem:[#allocation2 + $0x510] sm:$0xff]
    %v260 = vld [vmem:[#allocation2 + $0x518] sm:$0xff]
    %v261 = vld [vmem:[#allocation2 + $0x520] sm:$0xff]
    %v262 = vld [vmem:[#allocation2 + $0x528] sm:$0xff]
    %v263 = vld [vmem:[#allocation2 + $0x530] sm:$0xff]
    %v264 = vld [vmem:[#allocation2 + $0x538] sm:$0xff]
    %v265 = vld [vmem:[#allocation2 + $0x540] sm:$0xff]
    %v266 = vld [vmem:[#allocation2 + $0x548] sm:$0xff]
    %v267 = vld [vmem:[#allocation2 + $0x550] sm:$0xff]
    %v268 = vld [vmem:[#allocation2 + $0x558] sm:$0xff]
    %v269 = vld [vmem:[#allocation2 + $0x560] sm:$0xff]
    %v270 = vld [vmem:[#allocation2 + $0x568] sm:$0xff]
    %v271 = vld [vmem:[#allocation2 + $0x570] sm:$0xff]
    %v272 = vld [vmem:[#allocation2 + $0x578] sm:$0xff]
    %v273 = vld [vmem:[#allocation2 + $0x580] sm:$0xff]
    %v274 = vld [vmem:[#allocation2 + $0x588] sm:$0xff]
    %v275 = vld [vmem:[#allocation2 + $0x590] sm:$0xff]
    %v276 = vld [vmem:[#allocation2 + $0x598] sm:$0xff]
    %v277 = vld [vmem:[#allocation2 + $0x5a0] sm:$0xff]
    %v278 = vld [vmem:[#allocation2 + $0x5a8] sm:$0xff]
    %v279 = vld [vmem:[#allocation2 + $0x5b0] sm:$0xff]
    %v280 = vld [vmem:[#allocation2 + $0x5b8] sm:$0xff]
    %v281 = vld [vmem:[#allocation2 + $0x5c0] sm:$0xff]
    %v282 = vld [vmem:[#allocation2 + $0x5c8] sm:$0xff]
    %v283 = vld [vmem:[#allocation2 + $0x5d0] sm:$0xff]
    %v284 = vld [vmem:[#allocation2 + $0x5d8] sm:$0xff]
    %v285 = vld [vmem:[#allocation2 + $0x5e0] sm:$0xff]
    %v286 = vld [vmem:[#allocation2 + $0x5e8] sm:$0xff]
    %v287 = vld [vmem:[#allocation2 + $0x5f0] sm:$0xff]
    %v288 = vld [vmem:[#allocation2 + $0x5f8] sm:$0xff]
    %v289 = vld [vmem:[#allocation2 + $0x600] sm:$0xff]
    %v290 = vld [vmem:[#allocation2 + $0x608] sm:$0xff]
    %v291 = vld [vmem:[#allocation2 + $0x610] sm:$0xff]
    %v292 = vld [vmem:[#allocation2 + $0x618] sm:$0xff]
    %v293 = vld [vmem:[#allocation2 + $0x620] sm:$0xff]
    %v294 = vld [vmem:[#allocation2 + $0x628] sm:$0xff]
    %v295 = vld [vmem:[#allocation2 + $0x630] sm:$0xff]
    %v296 = vld [vmem:[#allocation2 + $0x638] sm:$0xff]
    %v297 = vld [vmem:[#allocation2 + $0x640] sm:$0xff]
    %v298 = vld [vmem:[#allocation2 + $0x648] sm:$0xff]
    %v299 = vld [vmem:[#allocation2 + $0x650] sm:$0xff]
    %v300 = vld [vmem:[#allocation2 + $0x658] sm:$0xff]
    %v301 = vld [vmem:[#allocation2 + $0x660] sm:$0xff]
    %v302 = vld [vmem:[#allocation2 + $0x668] sm:$0xff]
    %v303 = vld [vmem:[#allocation2 + $0x670] sm:$0xff]
    %v304 = vld [vmem:[#allocation2 + $0x678] sm:$0xff]
    %v305 = vld [vmem:[#allocation2 + $0x680] sm:$0xff]
    %v306 = vld [vmem:[#allocation2 + $0x688] sm:$0xff]
    %v307 = vld [vmem:[#allocation2 + $0x690] sm:$0xff]
    %v308 = vld [vmem:[#allocation2 + $0x698] sm:$0xff]
    %v309 = vld [vmem:[#allocation2 + $0x6a0] sm:$0xff]
    %v310 = vld [vmem:[#allocation2 + $0x6a8] sm:$0xff]
    %v311 = vld [vmem:[#allocation2 + $0x6b0] sm:$0xff]
    %v312 = vld [vmem:[#allocation2 + $0x6b8] sm:$0xff]
    %v313 = vld [vmem:[#allocation2 + $0x6c0] sm:$0xff]
    %v314 = vld [vmem:[#allocation2 + $0x6c8] sm:$0xff]
    %v315 = vld [vmem:[#allocation2 + $0x6d0] sm:$0xff]
    %v316 = vld [vmem:[#allocation2 + $0x6d8] sm:$0xff]
    %v317 = vld [vmem:[#allocation2 + $0x6e0] sm:$0xff]
    %v318 = vld [vmem:[#allocation2 + $0x6e8] sm:$0xff]
    %v319 = vld [vmem:[#allocation2 + $0x6f0] sm:$0xff]
    %v320 = vld [vmem:[#allocation2 + $0x6f8] sm:$0xff]
    %v321 = vld [vmem:[%s3] sm:$0xf]
    %v323 = vlaneseq
    %v324 = vshrl.u32 %v323, 7
    %v325 = vsub.s32 0, %v324
    %v326 = vrot.slane %v321, %v325
    %v327 = vlaneseq
    %v328 = vshrl.u32 %v327, 7
    %v329 = vsub.s32 1, %v328
    %v330 = vrot.slane %v321, %v329
    %v331 = vlaneseq
    %v332 = vshrl.u32 %v331, 7
    %v333 = vsub.s32 2, %v332
    %v334 = vrot.slane %v321, %v333
    %v335 = vlaneseq
    %v336 = vshrl.u32 %v335, 7
    %v337 = vsub.s32 3, %v336
    %v338 = vrot.slane %v321, %v337
    %v347 = vunpack.c.l.b16 %v93
    %v348 = vunpack.c.h.b16 %v93
    %v349 = vunpack.c.l.b16 %v94
    %v350 = vunpack.c.h.b16 %v94
    %v351 = vunpack.c.l.b16 %v95
    %v352 = vunpack.c.h.b16 %v95
    %v353 = vunpack.c.l.b16 %v96
    %v354 = vpack.c.b16 %v347, %v347
    %v355 = vpack.c.b16 %v348, %v348
    %v356 = vpack.c.b16 %v349, %v349
    %v357 = vpack.c.b16 %v350, %v350
    %v358 = vpack.c.b16 %v351, %v351
    %v359 = vpack.c.b16 %v352, %v352
    %v360 = vpack.c.b16 %v353, %v353
    %v592 = vunpack.c.l.b16 %v97
    %v593 = vunpack.c.h.b16 %v97
    %v594 = vunpack.c.l.b16 %v98
    %v595 = vunpack.c.h.b16 %v98
    %v596 = vunpack.c.l.b16 %v99
    %v597 = vunpack.c.h.b16 %v99
    %v598 = vunpack.c.l.b16 %v100
    %v599 = vunpack.c.h.b16 %v100
    %v600 = vunpack.c.l.b16 %v101
    %v601 = vunpack.c.h.b16 %v101
    %v602 = vunpack.c.l.b16 %v102
    %v603 = vunpack.c.h.b16 %v102
    %v604 = vunpack.c.l.b16 %v103
    %v605 = vunpack.c.h.b16 %v103
    %v606 = vunpack.c.l.b16 %v104
    %v607 = vunpack.c.h.b16 %v104
    %v608 = vunpack.c.l.b16 %v105
    %v609 = vunpack.c.h.b16 %v105
    %v610 = vunpack.c.l.b16 %v106
    %v611 = vunpack.c.h.b16 %v106
    %v612 = vunpack.c.l.b16 %v107
    %v613 = vunpack.c.h.b16 %v107
    %v614 = vunpack.c.l.b16 %v108
    %v615 = vunpack.c.h.b16 %v108
    %v616 = vunpack.c.l.b16 %v109
    %v617 = vunpack.c.h.b16 %v109
    %v618 = vunpack.c.l.b16 %v110
    %v619 = vunpack.c.h.b16 %v110
    %v620 = vunpack.c.l.b16 %v111
    %v621 = vunpack.c.h.b16 %v111
    %v622 = vunpack.c.l.b16 %v112
    %v623 = vunpack.c.h.b16 %v112
    %v624 = vunpack.c.l.b16 %v113
    %v625 = vunpack.c.h.b16 %v113
    %v626 = vunpack.c.l.b16 %v114
    %v627 = vunpack.c.h.b16 %v114
    %v628 = vunpack.c.l.b16 %v115
    %v629 = vunpack.c.h.b16 %v115
    %v630 = vunpack.c.l.b16 %v116
    %v631 = vunpack.c.h.b16 %v116
    %v632 = vunpack.c.l.b16 %v117
    %v633 = vunpack.c.h.b16 %v117
    %v634 = vunpack.c.l.b16 %v118
    %v635 = vunpack.c.h.b16 %v118
    %v636 = vunpack.c.l.b16 %v119
    %v637 = vunpack.c.h.b16 %v119
    %v638 = vunpack.c.l.b16 %v120
    %v639 = vunpack.c.h.b16 %v120
    %v640 = vunpack.c.l.b16 %v121
    %v641 = vunpack.c.h.b16 %v121
    %v642 = vunpack.c.l.b16 %v122
    %v643 = vunpack.c.h.b16 %v122
    %v644 = vunpack.c.l.b16 %v123
    %v645 = vunpack.c.h.b16 %v123
    %v646 = vunpack.c.l.b16 %v124
    %v647 = vunpack.c.h.b16 %v124
    %v648 = vunpack.c.l.b16 %v125
    %v649 = vunpack.c.h.b16 %v125
    %v650 = vunpack.c.l.b16 %v126
    %v651 = vunpack.c.h.b16 %v126
    %v652 = vunpack.c.l.b16 %v127
    %v653 = vunpack.c.h.b16 %v127
    %v654 = vunpack.c.l.b16 %v128
    %v655 = vunpack.c.h.b16 %v128
    %v656 = vunpack.c.l.b16 %v129
    %v657 = vunpack.c.h.b16 %v129
    %v658 = vunpack.c.l.b16 %v130
    %v659 = vunpack.c.h.b16 %v130
    %v660 = vunpack.c.l.b16 %v131
    %v661 = vunpack.c.h.b16 %v131
    %v662 = vunpack.c.l.b16 %v132
    %v663 = vunpack.c.h.b16 %v132
    %v664 = vunpack.c.l.b16 %v133
    %v665 = vunpack.c.h.b16 %v133
    %v666 = vunpack.c.l.b16 %v134
    %v667 = vunpack.c.h.b16 %v134
    %v668 = vunpack.c.l.b16 %v135
    %v669 = vunpack.c.h.b16 %v135
    %v670 = vunpack.c.l.b16 %v136
    %v671 = vunpack.c.h.b16 %v136
    %v672 = vunpack.c.l.b16 %v137
    %v673 = vunpack.c.h.b16 %v137
    %v674 = vunpack.c.l.b16 %v138
    %v675 = vunpack.c.h.b16 %v138
    %v676 = vunpack.c.l.b16 %v139
    %v677 = vunpack.c.h.b16 %v139
    %v678 = vunpack.c.l.b16 %v140
    %v679 = vunpack.c.h.b16 %v140
    %v680 = vunpack.c.l.b16 %v141
    %v681 = vunpack.c.h.b16 %v141
    %v682 = vunpack.c.l.b16 %v142
    %v683 = vunpack.c.h.b16 %v142
    %v684 = vunpack.c.l.b16 %v143
    %v685 = vunpack.c.h.b16 %v143
    %v686 = vunpack.c.l.b16 %v144
    %v687 = vunpack.c.h.b16 %v144
    %v688 = vunpack.c.l.b16 %v145
    %v689 = vunpack.c.h.b16 %v145
    %v690 = vunpack.c.l.b16 %v146
    %v691 = vunpack.c.h.b16 %v146
    %v692 = vunpack.c.l.b16 %v147
    %v693 = vunpack.c.h.b16 %v147
    %v694 = vunpack.c.l.b16 %v148
    %v695 = vunpack.c.h.b16 %v148
    %v696 = vunpack.c.l.b16 %v149
    %v697 = vunpack.c.h.b16 %v149
    %v698 = vunpack.c.l.b16 %v150
    %v699 = vunpack.c.h.b16 %v150
    %v700 = vunpack.c.l.b16 %v151
    %v701 = vunpack.c.h.b16 %v151
    %v702 = vunpack.c.l.b16 %v152
    %v703 = vunpack.c.h.b16 %v152
    %v704 = vunpack.c.l.b16 %v153
    %v705 = vunpack.c.h.b16 %v153
    %v706 = vunpack.c.l.b16 %v154
    %v707 = vunpack.c.h.b16 %v154
    %v708 = vunpack.c.l.b16 %v155
    %v709 = vunpack.c.h.b16 %v155
    %v710 = vunpack.c.l.b16 %v156
    %v711 = vunpack.c.h.b16 %v156
    %v712 = vunpack.c.l.b16 %v157
    %v713 = vunpack.c.h.b16 %v157
    %v714 = vunpack.c.l.b16 %v158
    %v715 = vunpack.c.h.b16 %v158
    %v716 = vunpack.c.l.b16 %v159
    %v717 = vunpack.c.h.b16 %v159
    %v718 = vunpack.c.l.b16 %v160
    %v719 = vunpack.c.h.b16 %v160
    %v720 = vunpack.c.l.b16 %v161
    %v721 = vunpack.c.h.b16 %v161
    %v722 = vunpack.c.l.b16 %v162
    %v723 = vunpack.c.h.b16 %v162
    %v724 = vunpack.c.l.b16 %v163
    %v725 = vunpack.c.h.b16 %v163
    %v726 = vunpack.c.l.b16 %v164
    %v727 = vunpack.c.h.b16 %v164
    %v728 = vunpack.c.l.b16 %v165
    %v729 = vunpack.c.h.b16 %v165
    %v730 = vunpack.c.l.b16 %v166
    %v731 = vunpack.c.h.b16 %v166
    %v732 = vunpack.c.l.b16 %v167
    %v733 = vunpack.c.h.b16 %v167
    %v734 = vunpack.c.l.b16 %v168
    %v735 = vunpack.c.h.b16 %v168
    %v736 = vunpack.c.l.b16 %v169
    %v737 = vunpack.c.h.b16 %v169
    %v738 = vunpack.c.l.b16 %v170
    %v739 = vunpack.c.h.b16 %v170
    %v740 = vunpack.c.l.b16 %v171
    %v741 = vunpack.c.h.b16 %v171
    %v742 = vunpack.c.l.b16 %v172
    %v743 = vunpack.c.h.b16 %v172
    %v744 = vunpack.c.l.b16 %v173
    %v745 = vunpack.c.h.b16 %v173
    %v746 = vunpack.c.l.b16 %v174
    %v747 = vunpack.c.h.b16 %v174
    %v748 = vunpack.c.l.b16 %v175
    %v749 = vunpack.c.h.b16 %v175
    %v750 = vunpack.c.l.b16 %v176
    %v751 = vunpack.c.h.b16 %v176
    %v752 = vunpack.c.l.b16 %v177
    %v753 = vunpack.c.h.b16 %v177
    %v754 = vunpack.c.l.b16 %v178
    %v755 = vunpack.c.h.b16 %v178
    %v756 = vunpack.c.l.b16 %v179
    %v757 = vunpack.c.h.b16 %v179
    %v758 = vunpack.c.l.b16 %v180
    %v759 = vunpack.c.h.b16 %v180
    %v760 = vunpack.c.l.b16 %v181
    %v761 = vunpack.c.h.b16 %v181
    %v762 = vunpack.c.l.b16 %v182
    %v763 = vunpack.c.h.b16 %v182
    %v764 = vunpack.c.l.b16 %v183
    %v765 = vunpack.c.h.b16 %v183
    %v766 = vunpack.c.l.b16 %v184
    %v767 = vunpack.c.h.b16 %v184
    %v768 = vunpack.c.l.b16 %v185
    %v769 = vunpack.c.h.b16 %v185
    %v770 = vunpack.c.l.b16 %v186
    %v771 = vunpack.c.h.b16 %v186
    %v772 = vunpack.c.l.b16 %v187
    %v773 = vunpack.c.h.b16 %v187
    %v774 = vunpack.c.l.b16 %v188
    %v775 = vunpack.c.h.b16 %v188
    %v776 = vunpack.c.l.b16 %v189
    %v777 = vunpack.c.h.b16 %v189
    %v778 = vunpack.c.l.b16 %v190
    %v779 = vunpack.c.h.b16 %v190
    %v780 = vunpack.c.l.b16 %v191
    %v781 = vunpack.c.h.b16 %v191
    %v782 = vunpack.c.l.b16 %v192
    %v783 = vunpack.c.h.b16 %v192
    %v784 = vunpack.c.l.b16 %v193
    %v785 = vunpack.c.h.b16 %v193
    %v786 = vunpack.c.l.b16 %v194
    %v787 = vunpack.c.h.b16 %v194
    %v788 = vunpack.c.l.b16 %v195
    %v789 = vunpack.c.h.b16 %v195
    %v790 = vunpack.c.l.b16 %v196
    %v791 = vunpack.c.h.b16 %v196
    %v792 = vunpack.c.l.b16 %v197
    %v793 = vunpack.c.h.b16 %v197
    %v794 = vunpack.c.l.b16 %v198
    %v795 = vunpack.c.h.b16 %v198
    %v796 = vunpack.c.l.b16 %v199
    %v797 = vunpack.c.h.b16 %v199
    %v798 = vunpack.c.l.b16 %v200
    %v799 = vunpack.c.h.b16 %v200
    %v800 = vunpack.c.l.b16 %v201
    %v801 = vunpack.c.h.b16 %v201
    %v802 = vunpack.c.l.b16 %v202
    %v803 = vunpack.c.h.b16 %v202
    %v804 = vunpack.c.l.b16 %v203
    %v805 = vunpack.c.h.b16 %v203
    %v806 = vunpack.c.l.b16 %v204
    %v807 = vunpack.c.h.b16 %v204
    %v808 = vunpack.c.l.b16 %v205
    %v809 = vunpack.c.h.b16 %v205
    %v810 = vunpack.c.l.b16 %v206
    %v811 = vunpack.c.h.b16 %v206
    %v812 = vunpack.c.l.b16 %v207
    %v813 = vunpack.c.h.b16 %v207
    %v814 = vunpack.c.l.b16 %v208
    %v815 = vunpack.c.h.b16 %v208
    %v816 = vunpack.c.l.b16 %v209
    %v817 = vunpack.c.h.b16 %v209
    %v818 = vunpack.c.l.b16 %v210
    %v819 = vunpack.c.h.b16 %v210
    %v820 = vunpack.c.l.b16 %v211
    %v821 = vunpack.c.h.b16 %v211
    %v822 = vunpack.c.l.b16 %v212
    %v823 = vunpack.c.h.b16 %v212
    %v824 = vunpack.c.l.b16 %v213
    %v825 = vunpack.c.h.b16 %v213
    %v826 = vunpack.c.l.b16 %v214
    %v827 = vunpack.c.h.b16 %v214
    %v828 = vunpack.c.l.b16 %v215
    %v829 = vunpack.c.h.b16 %v215
    %v830 = vunpack.c.l.b16 %v216
    %v831 = vunpack.c.h.b16 %v216
    %v832 = vunpack.c.l.b16 %v217
    %v833 = vunpack.c.h.b16 %v217
    %v834 = vunpack.c.l.b16 %v218
    %v835 = vunpack.c.h.b16 %v218
    %v836 = vunpack.c.l.b16 %v219
    %v837 = vunpack.c.h.b16 %v219
    %v838 = vunpack.c.l.b16 %v220
    %v839 = vunpack.c.h.b16 %v220
    %v840 = vunpack.c.l.b16 %v221
    %v841 = vunpack.c.h.b16 %v221
    %v842 = vunpack.c.l.b16 %v222
    %v843 = vunpack.c.h.b16 %v222
    %v844 = vunpack.c.l.b16 %v223
    %v845 = vunpack.c.h.b16 %v223
    %v846 = vunpack.c.l.b16 %v224
    %v847 = vunpack.c.h.b16 %v224
    %v848 = vunpack.c.l.b16 %v225
    %v849 = vunpack.c.h.b16 %v225
    %v850 = vunpack.c.l.b16 %v226
    %v851 = vunpack.c.h.b16 %v226
    %v852 = vunpack.c.l.b16 %v227
    %v853 = vunpack.c.h.b16 %v227
    %v854 = vunpack.c.l.b16 %v228
    %v855 = vunpack.c.h.b16 %v228
    %v856 = vunpack.c.l.b16 %v229
    %v857 = vunpack.c.h.b16 %v229
    %v858 = vunpack.c.l.b16 %v230
    %v859 = vunpack.c.h.b16 %v230
    %v860 = vunpack.c.l.b16 %v231
    %v861 = vunpack.c.h.b16 %v231
    %v862 = vunpack.c.l.b16 %v232
    %v863 = vunpack.c.h.b16 %v232
    %v864 = vunpack.c.l.b16 %v233
    %v865 = vunpack.c.h.b16 %v233
    %v866 = vunpack.c.l.b16 %v234
    %v867 = vunpack.c.h.b16 %v234
    %v868 = vunpack.c.l.b16 %v235
    %v869 = vunpack.c.h.b16 %v235
    %v870 = vunpack.c.l.b16 %v236
    %v871 = vunpack.c.h.b16 %v236
    %v872 = vunpack.c.l.b16 %v237
    %v873 = vunpack.c.h.b16 %v237
    %v874 = vunpack.c.l.b16 %v238
    %v875 = vunpack.c.h.b16 %v238
    %v876 = vunpack.c.l.b16 %v239
    %v877 = vunpack.c.h.b16 %v239
    %v878 = vunpack.c.l.b16 %v240
    %v879 = vunpack.c.h.b16 %v240
    %v880 = vunpack.c.l.b16 %v241
    %v881 = vunpack.c.h.b16 %v241
    %v882 = vunpack.c.l.b16 %v242
    %v883 = vunpack.c.h.b16 %v242
    %v884 = vunpack.c.l.b16 %v243
    %v885 = vunpack.c.h.b16 %v243
    %v886 = vunpack.c.l.b16 %v244
    %v887 = vunpack.c.h.b16 %v244
    %v888 = vunpack.c.l.b16 %v245
    %v889 = vunpack.c.h.b16 %v245
    %v890 = vunpack.c.l.b16 %v246
    %v891 = vunpack.c.h.b16 %v246
    %v892 = vunpack.c.l.b16 %v247
    %v893 = vunpack.c.h.b16 %v247
    %v894 = vunpack.c.l.b16 %v248
    %v895 = vunpack.c.h.b16 %v248
    %v896 = vunpack.c.l.b16 %v249
    %v897 = vunpack.c.h.b16 %v249
    %v898 = vunpack.c.l.b16 %v250
    %v899 = vunpack.c.h.b16 %v250
    %v900 = vunpack.c.l.b16 %v251
    %v901 = vunpack.c.h.b16 %v251
    %v902 = vunpack.c.l.b16 %v252
    %v903 = vunpack.c.h.b16 %v252
    %v904 = vunpack.c.l.b16 %v253
    %v905 = vunpack.c.h.b16 %v253
    %v906 = vunpack.c.l.b16 %v254
    %v907 = vunpack.c.h.b16 %v254
    %v908 = vunpack.c.l.b16 %v255
    %v909 = vunpack.c.h.b16 %v255
    %v910 = vunpack.c.l.b16 %v256
    %v911 = vunpack.c.h.b16 %v256
    %v912 = vunpack.c.l.b16 %v257
    %v913 = vunpack.c.h.b16 %v257
    %v914 = vunpack.c.l.b16 %v258
    %v915 = vunpack.c.h.b16 %v258
    %v916 = vunpack.c.l.b16 %v259
    %v917 = vunpack.c.h.b16 %v259
    %v918 = vunpack.c.l.b16 %v260
    %v919 = vunpack.c.h.b16 %v260
    %v920 = vunpack.c.l.b16 %v261
    %v921 = vunpack.c.h.b16 %v261
    %v922 = vunpack.c.l.b16 %v262
    %v923 = vunpack.c.h.b16 %v262
    %v924 = vunpack.c.l.b16 %v263
    %v925 = vunpack.c.h.b16 %v263
    %v926 = vunpack.c.l.b16 %v264
    %v927 = vunpack.c.h.b16 %v264
    %v928 = vunpack.c.l.b16 %v265
    %v929 = vunpack.c.h.b16 %v265
    %v930 = vunpack.c.l.b16 %v266
    %v931 = vunpack.c.h.b16 %v266
    %v932 = vunpack.c.l.b16 %v267
    %v933 = vunpack.c.h.b16 %v267
    %v934 = vunpack.c.l.b16 %v268
    %v935 = vunpack.c.h.b16 %v268
    %v936 = vunpack.c.l.b16 %v269
    %v937 = vunpack.c.h.b16 %v269
    %v938 = vunpack.c.l.b16 %v270
    %v939 = vunpack.c.h.b16 %v270
    %v940 = vunpack.c.l.b16 %v271
    %v941 = vunpack.c.h.b16 %v271
    %v942 = vunpack.c.l.b16 %v272
    %v943 = vunpack.c.h.b16 %v272
    %v944 = vunpack.c.l.b16 %v273
    %v945 = vunpack.c.h.b16 %v273
    %v946 = vunpack.c.l.b16 %v274
    %v947 = vunpack.c.h.b16 %v274
    %v948 = vunpack.c.l.b16 %v275
    %v949 = vunpack.c.h.b16 %v275
    %v950 = vunpack.c.l.b16 %v276
    %v951 = vunpack.c.h.b16 %v276
    %v952 = vunpack.c.l.b16 %v277
    %v953 = vunpack.c.h.b16 %v277
    %v954 = vunpack.c.l.b16 %v278
    %v955 = vunpack.c.h.b16 %v278
    %v956 = vunpack.c.l.b16 %v279
    %v957 = vunpack.c.h.b16 %v279
    %v958 = vunpack.c.l.b16 %v280
    %v959 = vunpack.c.h.b16 %v280
    %v960 = vunpack.c.l.b16 %v281
    %v961 = vunpack.c.h.b16 %v281
    %v962 = vunpack.c.l.b16 %v282
    %v963 = vunpack.c.h.b16 %v282
    %v964 = vunpack.c.l.b16 %v283
    %v965 = vunpack.c.h.b16 %v283
    %v966 = vunpack.c.l.b16 %v284
    %v967 = vunpack.c.h.b16 %v284
    %v968 = vunpack.c.l.b16 %v285
    %v969 = vunpack.c.h.b16 %v285
    %v970 = vunpack.c.l.b16 %v286
    %v971 = vunpack.c.h.b16 %v286
    %v972 = vunpack.c.l.b16 %v287
    %v973 = vunpack.c.h.b16 %v287
    %v974 = vunpack.c.l.b16 %v288
    %v975 = vunpack.c.h.b16 %v288
    %v976 = vunpack.c.l.b16 %v289
    %v977 = vunpack.c.h.b16 %v289
    %v978 = vunpack.c.l.b16 %v290
    %v979 = vunpack.c.h.b16 %v290
    %v980 = vunpack.c.l.b16 %v291
    %v981 = vunpack.c.h.b16 %v291
    %v982 = vunpack.c.l.b16 %v292
    %v983 = vunpack.c.h.b16 %v292
    %v984 = vunpack.c.l.b16 %v293
    %v985 = vunpack.c.h.b16 %v293
    %v986 = vunpack.c.l.b16 %v294
    %v987 = vunpack.c.h.b16 %v294
    %v988 = vunpack.c.l.b16 %v295
    %v989 = vunpack.c.h.b16 %v295
    %v990 = vunpack.c.l.b16 %v296
    %v991 = vunpack.c.h.b16 %v296
    %v992 = vunpack.c.l.b16 %v297
    %v993 = vunpack.c.h.b16 %v297
    %v994 = vunpack.c.l.b16 %v298
    %v995 = vunpack.c.h.b16 %v298
    %v996 = vunpack.c.l.b16 %v299
    %v997 = vunpack.c.h.b16 %v299
    %v998 = vunpack.c.l.b16 %v300
    %v999 = vunpack.c.h.b16 %v300
    %v1000 = vunpack.c.l.b16 %v301
    %v1001 = vunpack.c.h.b16 %v301
    %v1002 = vunpack.c.l.b16 %v302
    %v1003 = vunpack.c.h.b16 %v302
    %v1004 = vunpack.c.l.b16 %v303
    %v1005 = vunpack.c.h.b16 %v303
    %v1006 = vunpack.c.l.b16 %v304
    %v1007 = vunpack.c.h.b16 %v304
    %v1008 = vunpack.c.l.b16 %v305
    %v1009 = vunpack.c.h.b16 %v305
    %v1010 = vunpack.c.l.b16 %v306
    %v1011 = vunpack.c.h.b16 %v306
    %v1012 = vunpack.c.l.b16 %v307
    %v1013 = vunpack.c.h.b16 %v307
    %v1014 = vunpack.c.l.b16 %v308
    %v1015 = vunpack.c.h.b16 %v308
    %v1016 = vunpack.c.l.b16 %v309
    %v1017 = vunpack.c.h.b16 %v309
    %v1018 = vunpack.c.l.b16 %v310
    %v1019 = vunpack.c.h.b16 %v310
    %v1020 = vunpack.c.l.b16 %v311
    %v1021 = vunpack.c.h.b16 %v311
    %v1022 = vunpack.c.l.b16 %v312
    %v1023 = vunpack.c.h.b16 %v312
    %v1024 = vunpack.c.l.b16 %v313
    %v1025 = vunpack.c.h.b16 %v313
    %v1026 = vunpack.c.l.b16 %v314
    %v1027 = vunpack.c.h.b16 %v314
    %v1028 = vunpack.c.l.b16 %v315
    %v1029 = vunpack.c.h.b16 %v315
    %v1030 = vunpack.c.l.b16 %v316
    %v1031 = vunpack.c.h.b16 %v316
    %v1032 = vunpack.c.l.b16 %v317
    %v1033 = vunpack.c.h.b16 %v317
    %v1034 = vunpack.c.l.b16 %v318
    %v1035 = vunpack.c.h.b16 %v318
    %v1036 = vunpack.c.l.b16 %v319
    %v1037 = vunpack.c.h.b16 %v319
    %v1038 = vunpack.c.l.b16 %v320
    %v1039 = vunpack.c.h.b16 %v320
    %v1040 = vpack.c.b16 %v596, %v592
    %v1041 = vpack.c.b16 %v597, %v593
    %v1042 = vpack.c.b16 %v598, %v594
    %v1043 = vpack.c.b16 %v599, %v595
    %v1044 = vpack.c.b16 %v604, %v600
    %v1045 = vpack.c.b16 %v605, %v601
    %v1046 = vpack.c.b16 %v606, %v602
    %v1047 = vpack.c.b16 %v607, %v603
    %v1048 = vpack.c.b16 %v612, %v608
    %v1049 = vpack.c.b16 %v613, %v609
    %v1050 = vpack.c.b16 %v614, %v610
    %v1051 = vpack.c.b16 %v615, %v611
    %v1052 = vpack.c.b16 %v620, %v616
    %v1053 = vpack.c.b16 %v621, %v617
    %v1054 = vpack.c.b16 %v622, %v618
    %v1055 = vpack.c.b16 %v623, %v619
    %v1056 = vpack.c.b16 %v628, %v624
    %v1057 = vpack.c.b16 %v629, %v625
    %v1058 = vpack.c.b16 %v630, %v626
    %v1059 = vpack.c.b16 %v631, %v627
    %v1060 = vpack.c.b16 %v636, %v632
    %v1061 = vpack.c.b16 %v637, %v633
    %v1062 = vpack.c.b16 %v638, %v634
    %v1063 = vpack.c.b16 %v639, %v635
    %v1064 = vpack.c.b16 %v644, %v640
    %v1065 = vpack.c.b16 %v645, %v641
    %v1066 = vpack.c.b16 %v646, %v642
    %v1067 = vpack.c.b16 %v647, %v643
    %v1068 = vpack.c.b16 %v652, %v648
    %v1069 = vpack.c.b16 %v653, %v649
    %v1070 = vpack.c.b16 %v654, %v650
    %v1071 = vpack.c.b16 %v655, %v651
    %v1072 = vpack.c.b16 %v660, %v656
    %v1073 = vpack.c.b16 %v661, %v657
    %v1074 = vpack.c.b16 %v662, %v658
    %v1075 = vpack.c.b16 %v663, %v659
    %v1076 = vpack.c.b16 %v668, %v664
    %v1077 = vpack.c.b16 %v669, %v665
    %v1078 = vpack.c.b16 %v670, %v666
    %v1079 = vpack.c.b16 %v671, %v667
    %v1080 = vpack.c.b16 %v676, %v672
    %v1081 = vpack.c.b16 %v677, %v673
    %v1082 = vpack.c.b16 %v678, %v674
    %v1083 = vpack.c.b16 %v679, %v675
    %v1084 = vpack.c.b16 %v684, %v680
    %v1085 = vpack.c.b16 %v685, %v681
    %v1086 = vpack.c.b16 %v686, %v682
    %v1087 = vpack.c.b16 %v687, %v683
    %v1088 = vpack.c.b16 %v692, %v688
    %v1089 = vpack.c.b16 %v693, %v689
    %v1090 = vpack.c.b16 %v694, %v690
    %v1091 = vpack.c.b16 %v695, %v691
    %v1092 = vpack.c.b16 %v700, %v696
    %v1093 = vpack.c.b16 %v701, %v697
    %v1094 = vpack.c.b16 %v702, %v698
    %v1095 = vpack.c.b16 %v703, %v699
    %v1096 = vpack.c.b16 %v708, %v704
    %v1097 = vpack.c.b16 %v709, %v705
    %v1098 = vpack.c.b16 %v710, %v706
    %v1099 = vpack.c.b16 %v711, %v707
    %v1100 = vpack.c.b16 %v716, %v712
    %v1101 = vpack.c.b16 %v717, %v713
    %v1102 = vpack.c.b16 %v718, %v714
    %v1103 = vpack.c.b16 %v719, %v715
    %v1104 = vpack.c.b16 %v724, %v720
    %v1105 = vpack.c.b16 %v725, %v721
    %v1106 = vpack.c.b16 %v726, %v722
    %v1107 = vpack.c.b16 %v727, %v723
    %v1108 = vpack.c.b16 %v732, %v728
    %v1109 = vpack.c.b16 %v733, %v729
    %v1110 = vpack.c.b16 %v734, %v730
    %v1111 = vpack.c.b16 %v735, %v731
    %v1112 = vpack.c.b16 %v740, %v736
    %v1113 = vpack.c.b16 %v741, %v737
    %v1114 = vpack.c.b16 %v742, %v738
    %v1115 = vpack.c.b16 %v743, %v739
    %v1116 = vpack.c.b16 %v748, %v744
    %v1117 = vpack.c.b16 %v749, %v745
    %v1118 = vpack.c.b16 %v750, %v746
    %v1119 = vpack.c.b16 %v751, %v747
    %v1120 = vpack.c.b16 %v756, %v752
    %v1121 = vpack.c.b16 %v757, %v753
    %v1122 = vpack.c.b16 %v758, %v754
    %v1123 = vpack.c.b16 %v759, %v755
    %v1124 = vpack.c.b16 %v764, %v760
    %v1125 = vpack.c.b16 %v765, %v761
    %v1126 = vpack.c.b16 %v766, %v762
    %v1127 = vpack.c.b16 %v767, %v763
    %v1128 = vpack.c.b16 %v772, %v768
    %v1129 = vpack.c.b16 %v773, %v769
    %v1130 = vpack.c.b16 %v774, %v770
    %v1131 = vpack.c.b16 %v775, %v771
    %v1132 = vpack.c.b16 %v780, %v776
    %v1133 = vpack.c.b16 %v781, %v777
    %v1134 = vpack.c.b16 %v782, %v778
    %v1135 = vpack.c.b16 %v783, %v779
    %v1136 = vpack.c.b16 %v788, %v784
    %v1137 = vpack.c.b16 %v789, %v785
    %v1138 = vpack.c.b16 %v790, %v786
    %v1139 = vpack.c.b16 %v791, %v787
    %v1140 = vpack.c.b16 %v796, %v792
    %v1141 = vpack.c.b16 %v797, %v793
    %v1142 = vpack.c.b16 %v798, %v794
    %v1143 = vpack.c.b16 %v799, %v795
    %v1144 = vpack.c.b16 %v804, %v800
    %v1145 = vpack.c.b16 %v805, %v801
    %v1146 = vpack.c.b16 %v806, %v802
    %v1147 = vpack.c.b16 %v807, %v803
    %v1148 = vpack.c.b16 %v812, %v808
    %v1149 = vpack.c.b16 %v813, %v809
    %v1150 = vpack.c.b16 %v814, %v810
    %v1151 = vpack.c.b16 %v815, %v811
    %v1152 = vpack.c.b16 %v820, %v816
    %v1153 = vpack.c.b16 %v821, %v817
    %v1154 = vpack.c.b16 %v822, %v818
    %v1155 = vpack.c.b16 %v823, %v819
    %v1156 = vpack.c.b16 %v828, %v824
    %v1157 = vpack.c.b16 %v829, %v825
    %v1158 = vpack.c.b16 %v830, %v826
    %v1159 = vpack.c.b16 %v831, %v827
    %v1160 = vpack.c.b16 %v836, %v832
    %v1161 = vpack.c.b16 %v837, %v833
    %v1162 = vpack.c.b16 %v838, %v834
    %v1163 = vpack.c.b16 %v839, %v835
    %v1164 = vpack.c.b16 %v844, %v840
    %v1165 = vpack.c.b16 %v845, %v841
    %v1166 = vpack.c.b16 %v846, %v842
    %v1167 = vpack.c.b16 %v847, %v843
    %v1168 = vpack.c.b16 %v852, %v848
    %v1169 = vpack.c.b16 %v853, %v849
    %v1170 = vpack.c.b16 %v854, %v850
    %v1171 = vpack.c.b16 %v855, %v851
    %v1172 = vpack.c.b16 %v860, %v856
    %v1173 = vpack.c.b16 %v861, %v857
    %v1174 = vpack.c.b16 %v862, %v858
    %v1175 = vpack.c.b16 %v863, %v859
    %v1176 = vpack.c.b16 %v868, %v864
    %v1177 = vpack.c.b16 %v869, %v865
    %v1178 = vpack.c.b16 %v870, %v866
    %v1179 = vpack.c.b16 %v871, %v867
    %v1180 = vpack.c.b16 %v876, %v872
    %v1181 = vpack.c.b16 %v877, %v873
    %v1182 = vpack.c.b16 %v878, %v874
    %v1183 = vpack.c.b16 %v879, %v875
    %v1184 = vpack.c.b16 %v884, %v880
    %v1185 = vpack.c.b16 %v885, %v881
    %v1186 = vpack.c.b16 %v886, %v882
    %v1187 = vpack.c.b16 %v887, %v883
    %v1188 = vpack.c.b16 %v892, %v888
    %v1189 = vpack.c.b16 %v893, %v889
    %v1190 = vpack.c.b16 %v894, %v890
    %v1191 = vpack.c.b16 %v895, %v891
    %v1192 = vpack.c.b16 %v900, %v896
    %v1193 = vpack.c.b16 %v901, %v897
    %v1194 = vpack.c.b16 %v902, %v898
    %v1195 = vpack.c.b16 %v903, %v899
    %v1196 = vpack.c.b16 %v908, %v904
    %v1197 = vpack.c.b16 %v909, %v905
    %v1198 = vpack.c.b16 %v910, %v906
    %v1199 = vpack.c.b16 %v911, %v907
    %v1200 = vpack.c.b16 %v916, %v912
    %v1201 = vpack.c.b16 %v917, %v913
    %v1202 = vpack.c.b16 %v918, %v914
    %v1203 = vpack.c.b16 %v919, %v915
    %v1204 = vpack.c.b16 %v924, %v920
    %v1205 = vpack.c.b16 %v925, %v921
    %v1206 = vpack.c.b16 %v926, %v922
    %v1207 = vpack.c.b16 %v927, %v923
    %v1208 = vpack.c.b16 %v932, %v928
    %v1209 = vpack.c.b16 %v933, %v929
    %v1210 = vpack.c.b16 %v934, %v930
    %v1211 = vpack.c.b16 %v935, %v931
    %v1212 = vpack.c.b16 %v940, %v936
    %v1213 = vpack.c.b16 %v941, %v937
    %v1214 = vpack.c.b16 %v942, %v938
    %v1215 = vpack.c.b16 %v943, %v939
    %v1216 = vpack.c.b16 %v948, %v944
    %v1217 = vpack.c.b16 %v949, %v945
    %v1218 = vpack.c.b16 %v950, %v946
    %v1219 = vpack.c.b16 %v951, %v947
    %v1220 = vpack.c.b16 %v956, %v952
    %v1221 = vpack.c.b16 %v957, %v953
    %v1222 = vpack.c.b16 %v958, %v954
    %v1223 = vpack.c.b16 %v959, %v955
    %v1224 = vpack.c.b16 %v964, %v960
    %v1225 = vpack.c.b16 %v965, %v961
    %v1226 = vpack.c.b16 %v966, %v962
    %v1227 = vpack.c.b16 %v967, %v963
    %v1228 = vpack.c.b16 %v972, %v968
    %v1229 = vpack.c.b16 %v973, %v969
    %v1230 = vpack.c.b16 %v974, %v970
    %v1231 = vpack.c.b16 %v975, %v971
    %v1232 = vpack.c.b16 %v980, %v976
    %v1233 = vpack.c.b16 %v981, %v977
    %v1234 = vpack.c.b16 %v982, %v978
    %v1235 = vpack.c.b16 %v983, %v979
    %v1236 = vpack.c.b16 %v988, %v984
    %v1237 = vpack.c.b16 %v989, %v985
    %v1238 = vpack.c.b16 %v990, %v986
    %v1239 = vpack.c.b16 %v991, %v987
    %v1240 = vpack.c.b16 %v996, %v992
    %v1241 = vpack.c.b16 %v997, %v993
    %v1242 = vpack.c.b16 %v998, %v994
    %v1243 = vpack.c.b16 %v999, %v995
    %v1244 = vpack.c.b16 %v1004, %v1000
    %v1245 = vpack.c.b16 %v1005, %v1001
    %v1246 = vpack.c.b16 %v1006, %v1002
    %v1247 = vpack.c.b16 %v1007, %v1003
    %v1248 = vpack.c.b16 %v1012, %v1008
    %v1249 = vpack.c.b16 %v1013, %v1009
    %v1250 = vpack.c.b16 %v1014, %v1010
    %v1251 = vpack.c.b16 %v1015, %v1011
    %v1252 = vpack.c.b16 %v1020, %v1016
    %v1253 = vpack.c.b16 %v1021, %v1017
    %v1254 = vpack.c.b16 %v1022, %v1018
    %v1255 = vpack.c.b16 %v1023, %v1019
    %v1256 = vpack.c.b16 %v1028, %v1024
    %v1257 = vpack.c.b16 %v1029, %v1025
    %v1258 = vpack.c.b16 %v1030, %v1026
    %v1259 = vpack.c.b16 %v1031, %v1027
    %v1260 = vpack.c.b16 %v1036, %v1032
    %v1261 = vpack.c.b16 %v1037, %v1033
    %v1262 = vpack.c.b16 %v1038, %v1034
    %v1263 = vpack.c.b16 %v1039, %v1035
    %1488 = vmatprep.subr.bf16.mxu0 %v1041
    %1489 = vmatpush1.bf16.msra.mxu0 %v1040
    %1490 = vmatprep.subr.bf16.mxu0 %v1045
    %1491 = vmatpush1.bf16.msra.mxu0 %v1044
    %1492 = vmatprep.subr.bf16.mxu0 %v1049
    %1493 = vmatpush1.bf16.msra.mxu0 %v1048
    %1494 = vmatprep.subr.bf16.mxu0 %v1053
    %1495 = vmatpush1.bf16.msra.mxu0 %v1052
    %1496 = vmatprep.subr.bf16.mxu0 %v1057
    %1497 = vmatpush1.bf16.msra.mxu0 %v1056
    %1498 = vmatprep.subr.bf16.mxu0 %v1061
    %1499 = vmatpush1.bf16.msra.mxu0 %v1060
    %1500 = vmatprep.subr.bf16.mxu0 %v1065
    %1501 = vmatpush1.bf16.msra.mxu0 %v1064
    %1502 = vmatprep.subr.bf16.mxu0 %v1069
    %1503 = vmatpush1.bf16.msra.mxu0 %v1068
    %1504 = vmatprep.subr.bf16.mxu0 %v1073
    %1505 = vmatpush1.bf16.msra.mxu0 %v1072
    %1506 = vmatprep.subr.bf16.mxu0 %v1077
    %1507 = vmatpush1.bf16.msra.mxu0 %v1076
    %1508 = vmatprep.subr.bf16.mxu0 %v1081
    %1509 = vmatpush1.bf16.msra.mxu0 %v1080
    %1510 = vmatprep.subr.bf16.mxu0 %v1085
    %1511 = vmatpush1.bf16.msra.mxu0 %v1084
    %1512 = vmatprep.subr.bf16.mxu0 %v1089
    %1513 = vmatpush1.bf16.msra.mxu0 %v1088
    %1514 = vmatprep.subr.bf16.mxu0 %v1093
    %1515 = vmatpush1.bf16.msra.mxu0 %v1092
    %1516 = vmatprep.subr.bf16.mxu0 %v1097
    %1517 = vmatpush1.bf16.msra.mxu0 %v1096
    %1518 = vmatprep.subr.bf16.mxu0 %v1101
    %1519 = vmatpush1.bf16.msra.mxu0 %v1100
    %1520 = vmatprep.mubr.bf16.mxu0 %v355
    %1521 = vmatmul.mubr.bf16.gmra.mrb[0].mxu0 %v354
    %v1522 = vpop.f32.mrb[0].mxu0
    %v1523 = vadd.f32 %v326, %v1522
    %v1524 = vpop.f32.mrb[0].mxu0
    %v1525 = vadd.f32 %v330, %v1524
    %v1526 = vpop.f32.mrb[0].mxu0
    %v1527 = vpop.f32.mrb[0].mxu0
    %1528 = vdwg.mxu0
    %1529 = vmatprep.subr.bf16.mxu0 %v1105
    %1530 = vmatpush1.bf16.msra.mxu0 %v1104
    %1531 = vmatprep.subr.bf16.mxu0 %v1109
    %1532 = vmatpush1.bf16.msra.mxu0 %v1108
    %1533 = vmatprep.subr.bf16.mxu0 %v1113
    %1534 = vmatpush1.bf16.msra.mxu0 %v1112
    %1535 = vmatprep.subr.bf16.mxu0 %v1117
    %1536 = vmatpush1.bf16.msra.mxu0 %v1116
    %1537 = vmatprep.subr.bf16.mxu0 %v1121
    %1538 = vmatpush1.bf16.msra.mxu0 %v1120
    %1539 = vmatprep.subr.bf16.mxu0 %v1125
    %1540 = vmatpush1.bf16.msra.mxu0 %v1124
    %1541 = vmatprep.subr.bf16.mxu0 %v1129
    %1542 = vmatpush1.bf16.msra.mxu0 %v1128
    %1543 = vmatprep.subr.bf16.mxu0 %v1133
    %1544 = vmatpush1.bf16.msra.mxu0 %v1132
    %1545 = vmatprep.subr.bf16.mxu0 %v1137
    %1546 = vmatpush1.bf16.msra.mxu0 %v1136
    %1547 = vmatprep.subr.bf16.mxu0 %v1141
    %1548 = vmatpush1.bf16.msra.mxu0 %v1140
    %1549 = vmatprep.subr.bf16.mxu0 %v1145
    %1550 = vmatpush1.bf16.msra.mxu0 %v1144
    %1551 = vmatprep.subr.bf16.mxu0 %v1149
    %1552 = vmatpush1.bf16.msra.mxu0 %v1148
    %1553 = vmatprep.subr.bf16.mxu0 %v1153
    %1554 = vmatpush1.bf16.msra.mxu0 %v1152
    %1555 = vmatprep.subr.bf16.mxu0 %v1157
    %1556 = vmatpush1.bf16.msra.mxu0 %v1156
    %1557 = vmatprep.subr.bf16.mxu0 %v1161
    %1558 = vmatpush1.bf16.msra.mxu0 %v1160
    %1559 = vmatprep.subr.bf16.mxu0 %v1165
    %1560 = vmatpush1.bf16.msra.mxu0 %v1164
    %1561 = vmatprep.mubr.bf16.mxu0 %v357
    %1562 = vmatmul.mubr.bf16.gmra.mrb[0].mxu0 %v356
    %v1563 = vpop.f32.mrb[0].mxu0
    %v1564 = vadd.f32 %v1523, %v1563
    %v1565 = vpop.f32.mrb[0].mxu0
    %v1566 = vadd.f32 %v1525, %v1565
    %v1567 = vpop.f32.mrb[0].mxu0
    %v1568 = vpop.f32.mrb[0].mxu0
    %1569 = vdwg.mxu0
    %1570 = vmatprep.subr.bf16.mxu0 %v1169
    %1571 = vmatpush1.bf16.msra.mxu0 %v1168
    %1572 = vmatprep.subr.bf16.mxu0 %v1173
    %1573 = vmatpush1.bf16.msra.mxu0 %v1172
    %1574 = vmatprep.subr.bf16.mxu0 %v1177
    %1575 = vmatpush1.bf16.msra.mxu0 %v1176
    %1576 = vmatprep.subr.bf16.mxu0 %v1181
    %1577 = vmatpush1.bf16.msra.mxu0 %v1180
    %1578 = vmatprep.subr.bf16.mxu0 %v1185
    %1579 = vmatpush1.bf16.msra.mxu0 %v1184
    %1580 = vmatprep.subr.bf16.mxu0 %v1189
    %1581 = vmatpush1.bf16.msra.mxu0 %v1188
    %1582 = vmatprep.subr.bf16.mxu0 %v1193
    %1583 = vmatpush1.bf16.msra.mxu0 %v1192
    %1584 = vmatprep.subr.bf16.mxu0 %v1197
    %1585 = vmatpush1.bf16.msra.mxu0 %v1196
    %1586 = vmatprep.subr.bf16.mxu0 %v1201
    %1587 = vmatpush1.bf16.msra.mxu0 %v1200
    %1588 = vmatprep.subr.bf16.mxu0 %v1205
    %1589 = vmatpush1.bf16.msra.mxu0 %v1204
    %1590 = vmatprep.subr.bf16.mxu0 %v1209
    %1591 = vmatpush1.bf16.msra.mxu0 %v1208
    %1592 = vmatprep.subr.bf16.mxu0 %v1213
    %1593 = vmatpush1.bf16.msra.mxu0 %v1212
    %1594 = vmatprep.subr.bf16.mxu0 %v1217
    %1595 = vmatpush1.bf16.msra.mxu0 %v1216
    %1596 = vmatprep.subr.bf16.mxu0 %v1221
    %1597 = vmatpush1.bf16.msra.mxu0 %v1220
    %1598 = vmatprep.subr.bf16.mxu0 %v1225
    %1599 = vmatpush1.bf16.msra.mxu0 %v1224
    %1600 = vmatprep.subr.bf16.mxu0 %v1229
    %1601 = vmatpush1.bf16.msra.mxu0 %v1228
    %1602 = vmatprep.mubr.bf16.mxu0 %v359
    %1603 = vmatmul.mubr.bf16.gmra.mrb[0].mxu0 %v358
    %v1604 = vpop.f32.mrb[0].mxu0
    %v1605 = vadd.f32 %v1564, %v1604
    %v1606 = vpop.f32.mrb[0].mxu0
    %v1607 = vadd.f32 %v1566, %v1606
    %v1608 = vpop.f32.mrb[0].mxu0
    %v1609 = vpop.f32.mrb[0].mxu0
    %1610 = vdwg.mxu0
    %1611 = vmatprep.subr.bf16.mxu0 %v1233
    %1612 = vmatpush1.bf16.msra.mxu0 %v1232
    %1613 = vmatprep.subr.bf16.mxu0 %v1237
    %1614 = vmatpush1.bf16.msra.mxu0 %v1236
    %1615 = vmatprep.subr.bf16.mxu0 %v1241
    %1616 = vmatpush1.bf16.msra.mxu0 %v1240
    %1617 = vmatprep.subr.bf16.mxu0 %v1245
    %1618 = vmatpush1.bf16.msra.mxu0 %v1244
    %1619 = vmatprep.subr.bf16.mxu0 %v1249
    %1620 = vmatpush1.bf16.msra.mxu0 %v1248
    %1621 = vmatprep.subr.bf16.mxu0 %v1253
    %1622 = vmatpush1.bf16.msra.mxu0 %v1252
    %1623 = vmatprep.subr.bf16.mxu0 %v1257
    %1624 = vmatpush1.bf16.msra.mxu0 %v1256
    %1625 = vmatprep.subr.bf16.mxu0 %v1261
    %1626 = vmatpush1.bf16.msra.mxu0 %v1260
    %1627 = vmatprep.subr.bf16.mxu0 0
    %1628 = vmatpush1.bf16.msra.mxu0 0
    %1629 = vmatprep.subr.bf16.mxu0 0
    %1630 = vmatpush1.bf16.msra.mxu0 0
    %1631 = vmatprep.subr.bf16.mxu0 0
    %1632 = vmatpush1.bf16.msra.mxu0 0
    %1633 = vmatprep.subr.bf16.mxu0 0
    %1634 = vmatpush1.bf16.msra.mxu0 0
    %1635 = vmatprep.subr.bf16.mxu0 0
    %1636 = vmatpush1.bf16.msra.mxu0 0
    %1637 = vmatprep.subr.bf16.mxu0 0
    %1638 = vmatpush1.bf16.msra.mxu0 0
    %1639 = vmatprep.subr.bf16.mxu0 0
    %1640 = vmatpush1.bf16.msra.mxu0 0
    %1641 = vmatprep.subr.bf16.mxu0 0
    %1642 = vmatpush1.bf16.msra.mxu0 0
    %1643 = vmatprep.mubr.bf16.mxu0 0
    %1644 = vmatmul.mubr.bf16.gmra.mrb[0].mxu0 %v360
    %v1645 = vpop.f32.mrb[0].mxu0
    %v1646 = vadd.f32 %v1605, %v1645
    %v1647 = vpop.f32.mrb[0].mxu0
    %v1648 = vadd.f32 %v1607, %v1647
    %v1649 = vpop.f32.mrb[0].mxu0
    %v1650 = vpop.f32.mrb[0].mxu0
    %1651 = vdwg.mxu0
    %1652 = vmatprep.subr.bf16.mxu0 %v1043
    %1653 = vmatpush1.bf16.msra.mxu0 %v1042
    %1654 = vmatprep.subr.bf16.mxu0 %v1047
    %1655 = vmatpush1.bf16.msra.mxu0 %v1046
    %1656 = vmatprep.subr.bf16.mxu0 %v1051
    %1657 = vmatpush1.bf16.msra.mxu0 %v1050
    %1658 = vmatprep.subr.bf16.mxu0 %v1055
    %1659 = vmatpush1.bf16.msra.mxu0 %v1054
    %1660 = vmatprep.subr.bf16.mxu0 %v1059
    %1661 = vmatpush1.bf16.msra.mxu0 %v1058
    %1662 = vmatprep.subr.bf16.mxu0 %v1063
    %1663 = vmatpush1.bf16.msra.mxu0 %v1062
    %1664 = vmatprep.subr.bf16.mxu0 %v1067
    %1665 = vmatpush1.bf16.msra.mxu0 %v1066
    %1666 = vmatprep.subr.bf16.mxu0 %v1071
    %1667 = vmatpush1.bf16.msra.mxu0 %v1070
    %1668 = vmatprep.subr.bf16.mxu0 %v1075
    %1669 = vmatpush1.bf16.msra.mxu0 %v1074
    %1670 = vmatprep.subr.bf16.mxu0 %v1079
    %1671 = vmatpush1.bf16.msra.mxu0 %v1078
    %1672 = vmatprep.subr.bf16.mxu0 %v1083
    %1673 = vmatpush1.bf16.msra.mxu0 %v1082
    %1674 = vmatprep.subr.bf16.mxu0 %v1087
    %1675 = vmatpush1.bf16.msra.mxu0 %v1086
    %1676 = vmatprep.subr.bf16.mxu0 %v1091
    %1677 = vmatpush1.bf16.msra.mxu0 %v1090
    %1678 = vmatprep.subr.bf16.mxu0 %v1095
    %1679 = vmatpush1.bf16.msra.mxu0 %v1094
    %1680 = vmatprep.subr.bf16.mxu0 %v1099
    %1681 = vmatpush1.bf16.msra.mxu0 %v1098
    %1682 = vmatprep.subr.bf16.mxu0 %v1103
    %1683 = vmatpush1.bf16.msra.mxu0 %v1102
    %1684 = vmatprep.mubr.bf16.mxu0 %v355
    %1685 = vmatmul.mubr.bf16.gmra.mrb[0].mxu0 %v354
    %v1686 = vpop.f32.mrb[0].mxu0
    %v1687 = vadd.f32 %v334, %v1686
    %v1688 = vpop.f32.mrb[0].mxu0
    %v1689 = vadd.f32 %v338, %v1688
    %v1690 = vpop.f32.mrb[0].mxu0
    %v1691 = vpop.f32.mrb[0].mxu0
    %1692 = vdwg.mxu0
    %1693 = vmatprep.subr.bf16.mxu0 %v1107
    %1694 = vmatpush1.bf16.msra.mxu0 %v1106
    %1695 = vmatprep.subr.bf16.mxu0 %v1111
    %1696 = vmatpush1.bf16.msra.mxu0 %v1110
    %1697 = vmatprep.subr.bf16.mxu0 %v1115
    %1698 = vmatpush1.bf16.msra.mxu0 %v1114
    %1699 = vmatprep.subr.bf16.mxu0 %v1119
    %1700 = vmatpush1.bf16.msra.mxu0 %v1118
    %1701 = vmatprep.subr.bf16.mxu0 %v1123
    %1702 = vmatpush1.bf16.msra.mxu0 %v1122
    %1703 = vmatprep.subr.bf16.mxu0 %v1127
    %1704 = vmatpush1.bf16.msra.mxu0 %v1126
    %1705 = vmatprep.subr.bf16.mxu0 %v1131
    %1706 = vmatpush1.bf16.msra.mxu0 %v1130
    %1707 = vmatprep.subr.bf16.mxu0 %v1135
    %1708 = vmatpush1.bf16.msra.mxu0 %v1134
    %1709 = vmatprep.subr.bf16.mxu0 %v1139
    %1710 = vmatpush1.bf16.msra.mxu0 %v1138
    %1711 = vmatprep.subr.bf16.mxu0 %v1143
    %1712 = vmatpush1.bf16.msra.mxu0 %v1142
    %1713 = vmatprep.subr.bf16.mxu0 %v1147
    %1714 = vmatpush1.bf16.msra.mxu0 %v1146
    %1715 = vmatprep.subr.bf16.mxu0 %v1151
    %1716 = vmatpush1.bf16.msra.mxu0 %v1150
    %1717 = vmatprep.subr.bf16.mxu0 %v1155
    %1718 = vmatpush1.bf16.msra.mxu0 %v1154
    %1719 = vmatprep.subr.bf16.mxu0 %v1159
    %1720 = vmatpush1.bf16.msra.mxu0 %v1158
    %1721 = vmatprep.subr.bf16.mxu0 %v1163
    %1722 = vmatpush1.bf16.msra.mxu0 %v1162
    %1723 = vmatprep.subr.bf16.mxu0 %v1167
    %1724 = vmatpush1.bf16.msra.mxu0 %v1166
    %1725 = vmatprep.mubr.bf16.mxu0 %v357
    %1726 = vmatmul.mubr.bf16.gmra.mrb[0].mxu0 %v356
    %v1727 = vpop.f32.mrb[0].mxu0
    %v1728 = vadd.f32 %v1687, %v1727
    %v1729 = vpop.f32.mrb[0].mxu0
    %v1730 = vadd.f32 %v1689, %v1729
    %v1731 = vpop.f32.mrb[0].mxu0
    %v1732 = vpop.f32.mrb[0].mxu0
    %1733 = vdwg.mxu0
    %1734 = vmatprep.subr.bf16.mxu0 %v1171
    %1735 = vmatpush1.bf16.msra.mxu0 %v1170
    %1736 = vmatprep.subr.bf16.mxu0 %v1175
    %1737 = vmatpush1.bf16.msra.mxu0 %v1174
    %1738 = vmatprep.subr.bf16.mxu0 %v1179
    %1739 = vmatpush1.bf16.msra.mxu0 %v1178
    %1740 = vmatprep.subr.bf16.mxu0 %v1183
    %1741 = vmatpush1.bf16.msra.mxu0 %v1182
    %1742 = vmatprep.subr.bf16.mxu0 %v1187
    %1743 = vmatpush1.bf16.msra.mxu0 %v1186
    %1744 = vmatprep.subr.bf16.mxu0 %v1191
    %1745 = vmatpush1.bf16.msra.mxu0 %v1190
    %1746 = vmatprep.subr.bf16.mxu0 %v1195
    %1747 = vmatpush1.bf16.msra.mxu0 %v1194
    %1748 = vmatprep.subr.bf16.mxu0 %v1199
    %1749 = vmatpush1.bf16.msra.mxu0 %v1198
    %1750 = vmatprep.subr.bf16.mxu0 %v1203
    %1751 = vmatpush1.bf16.msra.mxu0 %v1202
    %1752 = vmatprep.subr.bf16.mxu0 %v1207
    %1753 = vmatpush1.bf16.msra.mxu0 %v1206
    %1754 = vmatprep.subr.bf16.mxu0 %v1211
    %1755 = vmatpush1.bf16.msra.mxu0 %v1210
    %1756 = vmatprep.subr.bf16.mxu0 %v1215
    %1757 = vmatpush1.bf16.msra.mxu0 %v1214
    %1758 = vmatprep.subr.bf16.mxu0 %v1219
    %1759 = vmatpush1.bf16.msra.mxu0 %v1218
    %1760 = vmatprep.subr.bf16.mxu0 %v1223
    %1761 = vmatpush1.bf16.msra.mxu0 %v1222
    %1762 = vmatprep.subr.bf16.mxu0 %v1227
    %1763 = vmatpush1.bf16.msra.mxu0 %v1226
    %1764 = vmatprep.subr.bf16.mxu0 %v1231
    %1765 = vmatpush1.bf16.msra.mxu0 %v1230
    %1766 = vmatprep.mubr.bf16.mxu0 %v359
    %1767 = vmatmul.mubr.bf16.gmra.mrb[0].mxu0 %v358
    %v1768 = vpop.f32.mrb[0].mxu0
    %v1769 = vadd.f32 %v1728, %v1768
    %v1770 = vpop.f32.mrb[0].mxu0
    %v1771 = vadd.f32 %v1730, %v1770
    %v1772 = vpop.f32.mrb[0].mxu0
    %v1773 = vpop.f32.mrb[0].mxu0
    %1774 = vdwg.mxu0
    %1775 = vmatprep.subr.bf16.mxu0 %v1235
    %1776 = vmatpush1.bf16.msra.mxu0 %v1234
    %1777 = vmatprep.subr.bf16.mxu0 %v1239
    %1778 = vmatpush1.bf16.msra.mxu0 %v1238
    %1779 = vmatprep.subr.bf16.mxu0 %v1243
    %1780 = vmatpush1.bf16.msra.mxu0 %v1242
    %1781 = vmatprep.subr.bf16.mxu0 %v1247
    %1782 = vmatpush1.bf16.msra.mxu0 %v1246
    %1783 = vmatprep.subr.bf16.mxu0 %v1251
    %1784 = vmatpush1.bf16.msra.mxu0 %v1250
    %1785 = vmatprep.subr.bf16.mxu0 %v1255
    %1786 = vmatpush1.bf16.msra.mxu0 %v1254
    %1787 = vmatprep.subr.bf16.mxu0 %v1259
    %1788 = vmatpush1.bf16.msra.mxu0 %v1258
    %1789 = vmatprep.subr.bf16.mxu0 %v1263
    %1790 = vmatpush1.bf16.msra.mxu0 %v1262
    %1791 = vmatprep.subr.bf16.mxu0 0
    %1792 = vmatpush1.bf16.msra.mxu0 0
    %1793 = vmatprep.subr.bf16.mxu0 0
    %1794 = vmatpush1.bf16.msra.mxu0 0
    %1795 = vmatprep.subr.bf16.mxu0 0
    %1796 = vmatpush1.bf16.msra.mxu0 0
    %1797 = vmatprep.subr.bf16.mxu0 0
    %1798 = vmatpush1.bf16.msra.mxu0 0
    %1799 = vmatprep.subr.bf16.mxu0 0
    %1800 = vmatpush1.bf16.msra.mxu0 0
    %1801 = vmatprep.subr.bf16.mxu0 0
    %1802 = vmatpush1.bf16.msra.mxu0 0
    %1803 = vmatprep.subr.bf16.mxu0 0
    %1804 = vmatpush1.bf16.msra.mxu0 0
    %1805 = vmatprep.subr.bf16.mxu0 0
    %1806 = vmatpush1.bf16.msra.mxu0 0
    %1807 = vmatprep.mubr.bf16.mxu0 0
    %1808 = vmatmul.mubr.bf16.gmra.mrb[0].mxu0 %v360
    %v1809 = vpop.f32.mrb[0].mxu0
    %v1810 = vadd.f32 %v1769, %v1809
    %v1811 = vpop.f32.mrb[0].mxu0
    %v1812 = vadd.f32 %v1771, %v1811
    %v1813 = vpop.f32.mrb[0].mxu0
    %v1814 = vpop.f32.mrb[0].mxu0
    %1815 = vdwg.mxu0
    %v1816 = vmax.f32 %v1646, 0.0
    %v1817 = vmax.f32 %v1648, 0.0
    %v1818 = vmax.f32 %v1810, 0.0
    %v1819 = vmax.f32 %v1812, 0.0
    %v1820 = vpack.c.bf16 %v1816, %v1816
    %v1821 = vpack.c.bf16 %v1817, %v1817
    %v1822 = vpack.c.bf16 %v1818, %v1818
    %v1823 = vpack.c.bf16 %v1819, %v1819
    %v1824 = vld [vmem:[#allocation4] sm:$0xff]
    %v1825 = vld [vmem:[#allocation4 + $0x8] sm:$0xff]
    %v1826 = vld [vmem:[#allocation4 + $0x10] sm:$0xff]
    %v1827 = vld [vmem:[#allocation4 + $0x18] sm:$0xff]
    %v1828 = vld [vmem:[#allocation4 + $0x20] sm:$0xff]
    %v1829 = vld [vmem:[#allocation4 + $0x28] sm:$0xff]
    %v1830 = vld [vmem:[#allocation4 + $0x30] sm:$0xff]
    %v1831 = vld [vmem:[#allocation4 + $0x38] sm:$0xff]
    %v1832 = vld [vmem:[#allocation4 + $0x40] sm:$0xff]
    %v1833 = vld [vmem:[#allocation4 + $0x48] sm:$0xff]
    %v1834 = vld [vmem:[#allocation4 + $0x50] sm:$0xff]
    %v1835 = vld [vmem:[#allocation4 + $0x58] sm:$0xff]
    %v1836 = vld [vmem:[#allocation4 + $0x60] sm:$0xff]
    %v1837 = vld [vmem:[#allocation4 + $0x68] sm:$0xff]
    %v1838 = vld [vmem:[#allocation4 + $0x70] sm:$0xff]
    %v1839 = vld [vmem:[#allocation4 + $0x78] sm:$0xff]
    %v1840 = vld [vmem:[#allocation4 + $0x80] sm:$0xff]
    %v1841 = vld [vmem:[#allocation4 + $0x88] sm:$0xff]
    %v1842 = vld [vmem:[#allocation4 + $0x90] sm:$0xff]
    %v1843 = vld [vmem:[#allocation4 + $0x98] sm:$0xff]
    %v1844 = vld [vmem:[#allocation4 + $0xa0] sm:$0xff]
    %v1845 = vld [vmem:[#allocation4 + $0xa8] sm:$0xff]
    %v1846 = vld [vmem:[#allocation4 + $0xb0] sm:$0xff]
    %v1847 = vld [vmem:[#allocation4 + $0xb8] sm:$0xff]
    %v1848 = vld [vmem:[#allocation4 + $0xc0] sm:$0xff]
    %v1849 = vld [vmem:[#allocation4 + $0xc8] sm:$0xff]
    %v1850 = vld [vmem:[#allocation4 + $0xd0] sm:$0xff]
    %v1851 = vld [vmem:[#allocation4 + $0xd8] sm:$0xff]
    %v1852 = vld [vmem:[#allocation4 + $0xe0] sm:$0xff]
    %v1853 = vld [vmem:[#allocation4 + $0xe8] sm:$0xff]
    %v1854 = vld [vmem:[#allocation4 + $0xf0] sm:$0xff]
    %v1855 = vld [vmem:[#allocation4 + $0xf8] sm:$0xff]
    %v1856 = vld [vmem:[#allocation4 + $0x100] sm:$0xff]
    %v1857 = vld [vmem:[#allocation4 + $0x108] sm:$0xff]
    %v1858 = vld [vmem:[#allocation4 + $0x110] sm:$0xff]
    %v1859 = vld [vmem:[#allocation4 + $0x118] sm:$0xff]
    %v1860 = vld [vmem:[#allocation4 + $0x120] sm:$0xff]
    %v1861 = vld [vmem:[#allocation4 + $0x128] sm:$0xff]
    %v1862 = vld [vmem:[#allocation4 + $0x130] sm:$0xff]
    %v1863 = vld [vmem:[#allocation4 + $0x138] sm:$0xff]
    %v1864 = vld [vmem:[#allocation4 + $0x140] sm:$0xff]
    %v1865 = vld [vmem:[#allocation4 + $0x148] sm:$0xff]
    %v1866 = vld [vmem:[#allocation4 + $0x150] sm:$0xff]
    %v1867 = vld [vmem:[#allocation4 + $0x158] sm:$0xff]
    %v1868 = vld [vmem:[#allocation4 + $0x160] sm:$0xff]
    %v1869 = vld [vmem:[#allocation4 + $0x168] sm:$0xff]
    %v1870 = vld [vmem:[#allocation4 + $0x170] sm:$0xff]
    %v1871 = vld [vmem:[#allocation4 + $0x178] sm:$0xff]
    %v1872 = vld [vmem:[#allocation4 + $0x180] sm:$0xff]
    %v1873 = vld [vmem:[#allocation4 + $0x188] sm:$0xff]
    %v1874 = vld [vmem:[#allocation4 + $0x190] sm:$0xff]
    %v1875 = vld [vmem:[#allocation4 + $0x198] sm:$0xff]
    %v1876 = vld [vmem:[#allocation4 + $0x1a0] sm:$0xff]
    %v1877 = vld [vmem:[#allocation4 + $0x1a8] sm:$0xff]
    %v1878 = vld [vmem:[#allocation4 + $0x1b0] sm:$0xff]
    %v1879 = vld [vmem:[#allocation4 + $0x1b8] sm:$0xff]
    %v1880 = vld [vmem:[#allocation4 + $0x1c0] sm:$0xff]
    %v1881 = vld [vmem:[#allocation4 + $0x1c8] sm:$0xff]
    %v1882 = vld [vmem:[#allocation4 + $0x1d0] sm:$0xff]
    %v1883 = vld [vmem:[#allocation4 + $0x1d8] sm:$0xff]
    %v1884 = vld [vmem:[#allocation4 + $0x1e0] sm:$0xff]
    %v1885 = vld [vmem:[#allocation4 + $0x1e8] sm:$0xff]
    %v1886 = vld [vmem:[#allocation4 + $0x1f0] sm:$0xff]
    %v1887 = vld [vmem:[#allocation4 + $0x1f8] sm:$0xff]
    %v1888 = vld [vmem:[%s5] sm:$0x3]
    %v1890 = vlaneseq
    %v1891 = vshrl.u32 %v1890, 7
    %v1892 = vsub.s32 0, %v1891
    %v1893 = vrot.slane %v1888, %v1892
    %v1894 = vlaneseq
    %v1895 = vshrl.u32 %v1894, 7
    %v1896 = vsub.s32 1, %v1895
    %v1897 = vrot.slane %v1888, %v1896
    %v1964 = vunpack.c.l.b16 %v1824
    %v1965 = vunpack.c.h.b16 %v1824
    %v1966 = vunpack.c.l.b16 %v1825
    %v1967 = vunpack.c.h.b16 %v1825
    %v1968 = vunpack.c.l.b16 %v1826
    %v1969 = vunpack.c.h.b16 %v1826
    %v1970 = vunpack.c.l.b16 %v1827
    %v1971 = vunpack.c.h.b16 %v1827
    %v1972 = vunpack.c.l.b16 %v1828
    %v1973 = vunpack.c.h.b16 %v1828
    %v1974 = vunpack.c.l.b16 %v1829
    %v1975 = vunpack.c.h.b16 %v1829
    %v1976 = vunpack.c.l.b16 %v1830
    %v1977 = vunpack.c.h.b16 %v1830
    %v1978 = vunpack.c.l.b16 %v1831
    %v1979 = vunpack.c.h.b16 %v1831
    %v1980 = vunpack.c.l.b16 %v1832
    %v1981 = vunpack.c.h.b16 %v1832
    %v1982 = vunpack.c.l.b16 %v1833
    %v1983 = vunpack.c.h.b16 %v1833
    %v1984 = vunpack.c.l.b16 %v1834
    %v1985 = vunpack.c.h.b16 %v1834
    %v1986 = vunpack.c.l.b16 %v1835
    %v1987 = vunpack.c.h.b16 %v1835
    %v1988 = vunpack.c.l.b16 %v1836
    %v1989 = vunpack.c.h.b16 %v1836
    %v1990 = vunpack.c.l.b16 %v1837
    %v1991 = vunpack.c.h.b16 %v1837
    %v1992 = vunpack.c.l.b16 %v1838
    %v1993 = vunpack.c.h.b16 %v1838
    %v1994 = vunpack.c.l.b16 %v1839
    %v1995 = vunpack.c.h.b16 %v1839
    %v1996 = vunpack.c.l.b16 %v1840
    %v1997 = vunpack.c.h.b16 %v1840
    %v1998 = vunpack.c.l.b16 %v1841
    %v1999 = vunpack.c.h.b16 %v1841
    %v2000 = vunpack.c.l.b16 %v1842
    %v2001 = vunpack.c.h.b16 %v1842
    %v2002 = vunpack.c.l.b16 %v1843
    %v2003 = vunpack.c.h.b16 %v1843
    %v2004 = vunpack.c.l.b16 %v1844
    %v2005 = vunpack.c.h.b16 %v1844
    %v2006 = vunpack.c.l.b16 %v1845
    %v2007 = vunpack.c.h.b16 %v1845
    %v2008 = vunpack.c.l.b16 %v1846
    %v2009 = vunpack.c.h.b16 %v1846
    %v2010 = vunpack.c.l.b16 %v1847
    %v2011 = vunpack.c.h.b16 %v1847
    %v2012 = vunpack.c.l.b16 %v1848
    %v2013 = vunpack.c.h.b16 %v1848
    %v2014 = vunpack.c.l.b16 %v1849
    %v2015 = vunpack.c.h.b16 %v1849
    %v2016 = vunpack.c.l.b16 %v1850
    %v2017 = vunpack.c.h.b16 %v1850
    %v2018 = vunpack.c.l.b16 %v1851
    %v2019 = vunpack.c.h.b16 %v1851
    %v2020 = vunpack.c.l.b16 %v1852
    %v2021 = vunpack.c.h.b16 %v1852
    %v2022 = vunpack.c.l.b16 %v1853
    %v2023 = vunpack.c.h.b16 %v1853
    %v2024 = vunpack.c.l.b16 %v1854
    %v2025 = vunpack.c.h.b16 %v1854
    %v2026 = vunpack.c.l.b16 %v1855
    %v2027 = vunpack.c.h.b16 %v1855
    %v2028 = vunpack.c.l.b16 %v1856
    %v2029 = vunpack.c.h.b16 %v1856
    %v2030 = vunpack.c.l.b16 %v1857
    %v2031 = vunpack.c.h.b16 %v1857
    %v2032 = vunpack.c.l.b16 %v1858
    %v2033 = vunpack.c.h.b16 %v1858
    %v2034 = vunpack.c.l.b16 %v1859
    %v2035 = vunpack.c.h.b16 %v1859
    %v2036 = vunpack.c.l.b16 %v1860
    %v2037 = vunpack.c.h.b16 %v1860
    %v2038 = vunpack.c.l.b16 %v1861
    %v2039 = vunpack.c.h.b16 %v1861
    %v2040 = vunpack.c.l.b16 %v1862
    %v2041 = vunpack.c.h.b16 %v1862
    %v2042 = vunpack.c.l.b16 %v1863
    %v2043 = vunpack.c.h.b16 %v1863
    %v2044 = vunpack.c.l.b16 %v1864
    %v2045 = vunpack.c.h.b16 %v1864
    %v2046 = vunpack.c.l.b16 %v1865
    %v2047 = vunpack.c.h.b16 %v1865
    %v2048 = vunpack.c.l.b16 %v1866
    %v2049 = vunpack.c.h.b16 %v1866
    %v2050 = vunpack.c.l.b16 %v1867
    %v2051 = vunpack.c.h.b16 %v1867
    %v2052 = vunpack.c.l.b16 %v1868
    %v2053 = vunpack.c.h.b16 %v1868
    %v2054 = vunpack.c.l.b16 %v1869
    %v2055 = vunpack.c.h.b16 %v1869
    %v2056 = vunpack.c.l.b16 %v1870
    %v2057 = vunpack.c.h.b16 %v1870
    %v2058 = vunpack.c.l.b16 %v1871
    %v2059 = vunpack.c.h.b16 %v1871
    %v2060 = vunpack.c.l.b16 %v1872
    %v2061 = vunpack.c.h.b16 %v1872
    %v2062 = vunpack.c.l.b16 %v1873
    %v2063 = vunpack.c.h.b16 %v1873
    %v2064 = vunpack.c.l.b16 %v1874
    %v2065 = vunpack.c.h.b16 %v1874
    %v2066 = vunpack.c.l.b16 %v1875
    %v2067 = vunpack.c.h.b16 %v1875
    %v2068 = vunpack.c.l.b16 %v1876
    %v2069 = vunpack.c.h.b16 %v1876
    %v2070 = vunpack.c.l.b16 %v1877
    %v2071 = vunpack.c.h.b16 %v1877
    %v2072 = vunpack.c.l.b16 %v1878
    %v2073 = vunpack.c.h.b16 %v1878
    %v2074 = vunpack.c.l.b16 %v1879
    %v2075 = vunpack.c.h.b16 %v1879
    %v2076 = vunpack.c.l.b16 %v1880
    %v2077 = vunpack.c.h.b16 %v1880
    %v2078 = vunpack.c.l.b16 %v1881
    %v2079 = vunpack.c.h.b16 %v1881
    %v2080 = vunpack.c.l.b16 %v1882
    %v2081 = vunpack.c.h.b16 %v1882
    %v2082 = vunpack.c.l.b16 %v1883
    %v2083 = vunpack.c.h.b16 %v1883
    %v2084 = vunpack.c.l.b16 %v1884
    %v2085 = vunpack.c.h.b16 %v1884
    %v2086 = vunpack.c.l.b16 %v1885
    %v2087 = vunpack.c.h.b16 %v1885
    %v2088 = vunpack.c.l.b16 %v1886
    %v2089 = vunpack.c.h.b16 %v1886
    %v2090 = vunpack.c.l.b16 %v1887
    %v2091 = vunpack.c.h.b16 %v1887
    %v2092 = vpack.c.b16 %v1966, %v1964
    %v2093 = vpack.c.b16 %v1967, %v1965
    %v2094 = vpack.c.b16 %v1970, %v1968
    %v2095 = vpack.c.b16 %v1971, %v1969
    %v2096 = vpack.c.b16 %v1974, %v1972
    %v2097 = vpack.c.b16 %v1975, %v1973
    %v2098 = vpack.c.b16 %v1978, %v1976
    %v2099 = vpack.c.b16 %v1979, %v1977
    %v2100 = vpack.c.b16 %v1982, %v1980
    %v2101 = vpack.c.b16 %v1983, %v1981
    %v2102 = vpack.c.b16 %v1986, %v1984
    %v2103 = vpack.c.b16 %v1987, %v1985
    %v2104 = vpack.c.b16 %v1990, %v1988
    %v2105 = vpack.c.b16 %v1991, %v1989
    %v2106 = vpack.c.b16 %v1994, %v1992
    %v2107 = vpack.c.b16 %v1995, %v1993
    %v2108 = vpack.c.b16 %v1998, %v1996
    %v2109 = vpack.c.b16 %v1999, %v1997
    %v2110 = vpack.c.b16 %v2002, %v2000
    %v2111 = vpack.c.b16 %v2003, %v2001
    %v2112 = vpack.c.b16 %v2006, %v2004
    %v2113 = vpack.c.b16 %v2007, %v2005
    %v2114 = vpack.c.b16 %v2010, %v2008
    %v2115 = vpack.c.b16 %v2011, %v2009
    %v2116 = vpack.c.b16 %v2014, %v2012
    %v2117 = vpack.c.b16 %v2015, %v2013
    %v2118 = vpack.c.b16 %v2018, %v2016
    %v2119 = vpack.c.b16 %v2019, %v2017
    %v2120 = vpack.c.b16 %v2022, %v2020
    %v2121 = vpack.c.b16 %v2023, %v2021
    %v2122 = vpack.c.b16 %v2026, %v2024
    %v2123 = vpack.c.b16 %v2027, %v2025
    %v2124 = vpack.c.b16 %v2030, %v2028
    %v2125 = vpack.c.b16 %v2031, %v2029
    %v2126 = vpack.c.b16 %v2034, %v2032
    %v2127 = vpack.c.b16 %v2035, %v2033
    %v2128 = vpack.c.b16 %v2038, %v2036
    %v2129 = vpack.c.b16 %v2039, %v2037
    %v2130 = vpack.c.b16 %v2042, %v2040
    %v2131 = vpack.c.b16 %v2043, %v2041
    %v2132 = vpack.c.b16 %v2046, %v2044
    %v2133 = vpack.c.b16 %v2047, %v2045
    %v2134 = vpack.c.b16 %v2050, %v2048
    %v2135 = vpack.c.b16 %v2051, %v2049
    %v2136 = vpack.c.b16 %v2054, %v2052
    %v2137 = vpack.c.b16 %v2055, %v2053
    %v2138 = vpack.c.b16 %v2058, %v2056
    %v2139 = vpack.c.b16 %v2059, %v2057
    %v2140 = vpack.c.b16 %v2062, %v2060
    %v2141 = vpack.c.b16 %v2063, %v2061
    %v2142 = vpack.c.b16 %v2066, %v2064
    %v2143 = vpack.c.b16 %v2067, %v2065
    %v2144 = vpack.c.b16 %v2070, %v2068
    %v2145 = vpack.c.b16 %v2071, %v2069
    %v2146 = vpack.c.b16 %v2074, %v2072
    %v2147 = vpack.c.b16 %v2075, %v2073
    %v2148 = vpack.c.b16 %v2078, %v2076
    %v2149 = vpack.c.b16 %v2079, %v2077
    %v2150 = vpack.c.b16 %v2082, %v2080
    %v2151 = vpack.c.b16 %v2083, %v2081
    %v2152 = vpack.c.b16 %v2086, %v2084
    %v2153 = vpack.c.b16 %v2087, %v2085
    %v2154 = vpack.c.b16 %v2090, %v2088
    %v2155 = vpack.c.b16 %v2091, %v2089
    %2220 = vmatprep.subr.bf16.mxu0 %v2093
    %2221 = vmatpush1.bf16.msra.mxu0 %v2092
    %2222 = vmatprep.subr.bf16.mxu0 %v2095
    %2223 = vmatpush1.bf16.msra.mxu0 %v2094
    %2224 = vmatprep.subr.bf16.mxu0 %v2097
    %2225 = vmatpush1.bf16.msra.mxu0 %v2096
    %2226 = vmatprep.subr.bf16.mxu0 %v2099
    %2227 = vmatpush1.bf16.msra.mxu0 %v2098
    %2228 = vmatprep.subr.bf16.mxu0 %v2101
    %2229 = vmatpush1.bf16.msra.mxu0 %v2100
    %2230 = vmatprep.subr.bf16.mxu0 %v2103
    %2231 = vmatpush1.bf16.msra.mxu0 %v2102
    %2232 = vmatprep.subr.bf16.mxu0 %v2105
    %2233 = vmatpush1.bf16.msra.mxu0 %v2104
    %2234 = vmatprep.subr.bf16.mxu0 %v2107
    %2235 = vmatpush1.bf16.msra.mxu0 %v2106
    %2236 = vmatprep.subr.bf16.mxu0 %v2109
    %2237 = vmatpush1.bf16.msra.mxu0 %v2108
    %2238 = vmatprep.subr.bf16.mxu0 %v2111
    %2239 = vmatpush1.bf16.msra.mxu0 %v2110
    %2240 = vmatprep.subr.bf16.mxu0 %v2113
    %2241 = vmatpush1.bf16.msra.mxu0 %v2112
    %2242 = vmatprep.subr.bf16.mxu0 %v2115
    %2243 = vmatpush1.bf16.msra.mxu0 %v2114
    %2244 = vmatprep.subr.bf16.mxu0 %v2117
    %2245 = vmatpush1.bf16.msra.mxu0 %v2116
    %2246 = vmatprep.subr.bf16.mxu0 %v2119
    %2247 = vmatpush1.bf16.msra.mxu0 %v2118
    %2248 = vmatprep.subr.bf16.mxu0 %v2121
    %2249 = vmatpush1.bf16.msra.mxu0 %v2120
    %2250 = vmatprep.subr.bf16.mxu0 %v2123
    %2251 = vmatpush1.bf16.msra.mxu0 %v2122
    %2252 = vmatprep.mubr.bf16.mxu0 %v1821
    %2253 = vmatmul.mubr.bf16.gmra.mrb[0].mxu0 %v1820
    %v2254 = vpop.f32.mrb[0].mxu0
    %v2255 = vadd.f32 %v1893, %v2254
    %v2256 = vpop.f32.mrb[0].mxu0
    %v2257 = vadd.f32 %v1897, %v2256
    %v2258 = vpop.f32.mrb[0].mxu0
    %v2259 = vpop.f32.mrb[0].mxu0
    %2260 = vdwg.mxu0
    %2261 = vmatprep.subr.bf16.mxu0 %v2125
    %2262 = vmatpush1.bf16.msra.mxu0 %v2124
    %2263 = vmatprep.subr.bf16.mxu0 %v2127
    %2264 = vmatpush1.bf16.msra.mxu0 %v2126
    %2265 = vmatprep.subr.bf16.mxu0 %v2129
    %2266 = vmatpush1.bf16.msra.mxu0 %v2128
    %2267 = vmatprep.subr.bf16.mxu0 %v2131
    %2268 = vmatpush1.bf16.msra.mxu0 %v2130
    %2269 = vmatprep.subr.bf16.mxu0 %v2133
    %2270 = vmatpush1.bf16.msra.mxu0 %v2132
    %2271 = vmatprep.subr.bf16.mxu0 %v2135
    %2272 = vmatpush1.bf16.msra.mxu0 %v2134
    %2273 = vmatprep.subr.bf16.mxu0 %v2137
    %2274 = vmatpush1.bf16.msra.mxu0 %v2136
    %2275 = vmatprep.subr.bf16.mxu0 %v2139
    %2276 = vmatpush1.bf16.msra.mxu0 %v2138
    %2277 = vmatprep.subr.bf16.mxu0 %v2141
    %2278 = vmatpush1.bf16.msra.mxu0 %v2140
    %2279 = vmatprep.subr.bf16.mxu0 %v2143
    %2280 = vmatpush1.bf16.msra.mxu0 %v2142
    %2281 = vmatprep.subr.bf16.mxu0 %v2145
    %2282 = vmatpush1.bf16.msra.mxu0 %v2144
    %2283 = vmatprep.subr.bf16.mxu0 %v2147
    %2284 = vmatpush1.bf16.msra.mxu0 %v2146
    %2285 = vmatprep.subr.bf16.mxu0 %v2149
    %2286 = vmatpush1.bf16.msra.mxu0 %v2148
    %2287 = vmatprep.subr.bf16.mxu0 %v2151
    %2288 = vmatpush1.bf16.msra.mxu0 %v2150
    %2289 = vmatprep.subr.bf16.mxu0 %v2153
    %2290 = vmatpush1.bf16.msra.mxu0 %v2152
    %2291 = vmatprep.subr.bf16.mxu0 %v2155
    %2292 = vmatpush1.bf16.msra.mxu0 %v2154
    %2293 = vmatprep.mubr.bf16.mxu0 %v1823
    %2294 = vmatmul.mubr.bf16.gmra.mrb[0].mxu0 %v1822
    %v2295 = vpop.f32.mrb[0].mxu0
    %v2296 = vadd.f32 %v2255, %v2295
    %v2297 = vpop.f32.mrb[0].mxu0
    %v2298 = vadd.f32 %v2257, %v2297
    %v2299 = vpop.f32.mrb[0].mxu0
    %v2300 = vpop.f32.mrb[0].mxu0
    %2301 = vdwg.mxu0
    %2302 = vst [vmem:[%s10] sm:$0xff] %v2296
    %2303 = vst [vmem:[%s10 + $0x8] sm:$0xff] %v2298
    %v2304 = vld [vmem:[%s1] sm:$0xff]
    %v2305 = vmul.f32 %v2298, 0.5
    %v2306 = vmul.f32 %v2305, 1.442695
    %v2307 = vpow.pop %v2306
    %v2308 = vmul.f32 %v2304, %v2307
    %v2309 = vadd.f32 %v2308, %v2296
    %v2310 = vpack.c.bf16 %v2309, %v2309
    %v2311 = vld [vmem:[#allocation6] sm:$0xff]
    %v2312 = vld [vmem:[#allocation6 + $0x8] sm:$0xff]
    %v2313 = vld [vmem:[#allocation6 + $0x10] sm:$0xff]
    %v2314 = vld [vmem:[#allocation6 + $0x18] sm:$0xff]
    %v2315 = vld [vmem:[#allocation6 + $0x20] sm:$0xff]
    %v2316 = vld [vmem:[#allocation6 + $0x28] sm:$0xff]
    %v2317 = vld [vmem:[#allocation6 + $0x30] sm:$0xff]
    %v2318 = vld [vmem:[#allocation6 + $0x38] sm:$0xff]
    %v2319 = vld [vmem:[#allocation6 + $0x40] sm:$0xff]
    %v2320 = vld [vmem:[#allocation6 + $0x48] sm:$0xff]
    %v2321 = vld [vmem:[#allocation6 + $0x50] sm:$0xff]
    %v2322 = vld [vmem:[#allocation6 + $0x58] sm:$0xff]
    %v2323 = vld [vmem:[#allocation6 + $0x60] sm:$0xff]
    %v2324 = vld [vmem:[#allocation6 + $0x68] sm:$0xff]
    %v2325 = vld [vmem:[#allocation6 + $0x70] sm:$0xff]
    %v2326 = vld [vmem:[#allocation6 + $0x78] sm:$0xff]
    %v2327 = vld [vmem:[#allocation6 + $0x80] sm:$0xff]
    %v2328 = vld [vmem:[#allocation6 + $0x88] sm:$0xff]
    %v2329 = vld [vmem:[#allocation6 + $0x90] sm:$0xff]
    %v2330 = vld [vmem:[#allocation6 + $0x98] sm:$0xff]
    %v2331 = vld [vmem:[#allocation6 + $0xa0] sm:$0xff]
    %v2332 = vld [vmem:[#allocation6 + $0xa8] sm:$0xff]
    %v2333 = vld [vmem:[#allocation6 + $0xb0] sm:$0xff]
    %v2334 = vld [vmem:[#allocation6 + $0xb8] sm:$0xff]
    %v2335 = vld [vmem:[#allocation6 + $0xc0] sm:$0xff]
    %v2336 = vld [vmem:[#allocation6 + $0xc8] sm:$0xff]
    %v2337 = vld [vmem:[#allocation6 + $0xd0] sm:$0xff]
    %v2338 = vld [vmem:[#allocation6 + $0xd8] sm:$0xff]
    %v2339 = vld [vmem:[#allocation6 + $0xe0] sm:$0xff]
    %v2340 = vld [vmem:[#allocation6 + $0xe8] sm:$0xff]
    %v2341 = vld [vmem:[#allocation6 + $0xf0] sm:$0xff]
    %v2342 = vld [vmem:[#allocation6 + $0xf8] sm:$0xff]
    %v2343 = vld [vmem:[%s7] sm:$0xf]
    %v2345 = vlaneseq
    %v2346 = vshrl.u32 %v2345, 7
    %v2347 = vsub.s32 0, %v2346
    %v2348 = vrot.slane %v2343, %v2347
    %v2349 = vlaneseq
    %v2350 = vshrl.u32 %v2349, 7
    %v2351 = vsub.s32 1, %v2350
    %v2352 = vrot.slane %v2343, %v2351
    %v2353 = vlaneseq
    %v2354 = vshrl.u32 %v2353, 7
    %v2355 = vsub.s32 2, %v2354
    %v2356 = vrot.slane %v2343, %v2355
    %v2357 = vlaneseq
    %v2358 = vshrl.u32 %v2357, 7
    %v2359 = vsub.s32 3, %v2358
    %v2360 = vrot.slane %v2343, %v2359
    %v2397 = vunpack.c.l.b16 %v2311
    %v2398 = vunpack.c.h.b16 %v2311
    %v2399 = vunpack.c.l.b16 %v2312
    %v2400 = vunpack.c.h.b16 %v2312
    %v2401 = vunpack.c.l.b16 %v2313
    %v2402 = vunpack.c.h.b16 %v2313
    %v2403 = vunpack.c.l.b16 %v2314
    %v2404 = vunpack.c.h.b16 %v2314
    %v2405 = vunpack.c.l.b16 %v2315
    %v2406 = vunpack.c.h.b16 %v2315
    %v2407 = vunpack.c.l.b16 %v2316
    %v2408 = vunpack.c.h.b16 %v2316
    %v2409 = vunpack.c.l.b16 %v2317
    %v2410 = vunpack.c.h.b16 %v2317
    %v2411 = vunpack.c.l.b16 %v2318
    %v2412 = vunpack.c.h.b16 %v2318
    %v2413 = vunpack.c.l.b16 %v2319
    %v2414 = vunpack.c.h.b16 %v2319
    %v2415 = vunpack.c.l.b16 %v2320
    %v2416 = vunpack.c.h.b16 %v2320
    %v2417 = vunpack.c.l.b16 %v2321
    %v2418 = vunpack.c.h.b16 %v2321
    %v2419 = vunpack.c.l.b16 %v2322
    %v2420 = vunpack.c.h.b16 %v2322
    %v2421 = vunpack.c.l.b16 %v2323
    %v2422 = vunpack.c.h.b16 %v2323
    %v2423 = vunpack.c.l.b16 %v2324
    %v2424 = vunpack.c.h.b16 %v2324
    %v2425 = vunpack.c.l.b16 %v2325
    %v2426 = vunpack.c.h.b16 %v2325
    %v2427 = vunpack.c.l.b16 %v2326
    %v2428 = vunpack.c.h.b16 %v2326
    %v2429 = vunpack.c.l.b16 %v2327
    %v2430 = vunpack.c.h.b16 %v2327
    %v2431 = vunpack.c.l.b16 %v2328
    %v2432 = vunpack.c.h.b16 %v2328
    %v2433 = vunpack.c.l.b16 %v2329
    %v2434 = vunpack.c.h.b16 %v2329
    %v2435 = vunpack.c.l.b16 %v2330
    %v2436 = vunpack.c.h.b16 %v2330
    %v2437 = vunpack.c.l.b16 %v2331
    %v2438 = vunpack.c.h.b16 %v2331
    %v2439 = vunpack.c.l.b16 %v2332
    %v2440 = vunpack.c.h.b16 %v2332
    %v2441 = vunpack.c.l.b16 %v2333
    %v2442 = vunpack.c.h.b16 %v2333
    %v2443 = vunpack.c.l.b16 %v2334
    %v2444 = vunpack.c.h.b16 %v2334
    %v2445 = vunpack.c.l.b16 %v2335
    %v2446 = vunpack.c.h.b16 %v2335
    %v2447 = vunpack.c.l.b16 %v2336
    %v2448 = vunpack.c.h.b16 %v2336
    %v2449 = vunpack.c.l.b16 %v2337
    %v2450 = vunpack.c.h.b16 %v2337
    %v2451 = vunpack.c.l.b16 %v2338
    %v2452 = vunpack.c.h.b16 %v2338
    %v2453 = vunpack.c.l.b16 %v2339
    %v2454 = vunpack.c.h.b16 %v2339
    %v2455 = vunpack.c.l.b16 %v2340
    %v2456 = vunpack.c.h.b16 %v2340
    %v2457 = vunpack.c.l.b16 %v2341
    %v2458 = vunpack.c.h.b16 %v2341
    %v2459 = vunpack.c.l.b16 %v2342
    %v2460 = vunpack.c.h.b16 %v2342
    %v2461 = vpack.c.b16 %v2401, %v2397
    %v2462 = vpack.c.b16 %v2402, %v2398
    %v2463 = vpack.c.b16 %v2403, %v2399
    %v2464 = vpack.c.b16 %v2404, %v2400
    %v2465 = vpack.c.b16 %v2409, %v2405
    %v2466 = vpack.c.b16 %v2410, %v2406
    %v2467 = vpack.c.b16 %v2411, %v2407
    %v2468 = vpack.c.b16 %v2412, %v2408
    %v2469 = vpack.c.b16 %v2417, %v2413
    %v2470 = vpack.c.b16 %v2418, %v2414
    %v2471 = vpack.c.b16 %v2419, %v2415
    %v2472 = vpack.c.b16 %v2420, %v2416
    %v2473 = vpack.c.b16 %v2425, %v2421
    %v2474 = vpack.c.b16 %v2426, %v2422
    %v2475 = vpack.c.b16 %v2427, %v2423
    %v2476 = vpack.c.b16 %v2428, %v2424
    %v2477 = vpack.c.b16 %v2433, %v2429
    %v2478 = vpack.c.b16 %v2434, %v2430
    %v2479 = vpack.c.b16 %v2435, %v2431
    %v2480 = vpack.c.b16 %v2436, %v2432
    %v2481 = vpack.c.b16 %v2441, %v2437
    %v2482 = vpack.c.b16 %v2442, %v2438
    %v2483 = vpack.c.b16 %v2443, %v2439
    %v2484 = vpack.c.b16 %v2444, %v2440
    %v2485 = vpack.c.b16 %v2449, %v2445
    %v2486 = vpack.c.b16 %v2450, %v2446
    %v2487 = vpack.c.b16 %v2451, %v2447
    %v2488 = vpack.c.b16 %v2452, %v2448
    %v2489 = vpack.c.b16 %v2457, %v2453
    %v2490 = vpack.c.b16 %v2458, %v2454
    %v2491 = vpack.c.b16 %v2459, %v2455
    %v2492 = vpack.c.b16 %v2460, %v2456
    %2525 = vmatprep.subr.bf16.mxu0 %v2462
    %2526 = vmatpush1.bf16.msra.mxu0 %v2461
    %2527 = vmatprep.subr.bf16.mxu0 %v2466
    %2528 = vmatpush1.bf16.msra.mxu0 %v2465
    %2529 = vmatprep.subr.bf16.mxu0 %v2470
    %2530 = vmatpush1.bf16.msra.mxu0 %v2469
    %2531 = vmatprep.subr.bf16.mxu0 %v2474
    %2532 = vmatpush1.bf16.msra.mxu0 %v2473
    %2533 = vmatprep.subr.bf16.mxu0 %v2478
    %2534 = vmatpush1.bf16.msra.mxu0 %v2477
    %2535 = vmatprep.subr.bf16.mxu0 %v2482
    %2536 = vmatpush1.bf16.msra.mxu0 %v2481
    %2537 = vmatprep.subr.bf16.mxu0 %v2486
    %2538 = vmatpush1.bf16.msra.mxu0 %v2485
    %2539 = vmatprep.subr.bf16.mxu0 %v2490
    %2540 = vmatpush1.bf16.msra.mxu0 %v2489
    %2541 = vmatprep.subr.bf16.mxu0 0
    %2542 = vmatpush1.bf16.msra.mxu0 0
    %2543 = vmatprep.subr.bf16.mxu0 0
    %2544 = vmatpush1.bf16.msra.mxu0 0
    %2545 = vmatprep.subr.bf16.mxu0 0
    %2546 = vmatpush1.bf16.msra.mxu0 0
    %2547 = vmatprep.subr.bf16.mxu0 0
    %2548 = vmatpush1.bf16.msra.mxu0 0
    %2549 = vmatprep.subr.bf16.mxu0 0
    %2550 = vmatpush1.bf16.msra.mxu0 0
    %2551 = vmatprep.subr.bf16.mxu0 0
    %2552 = vmatpush1.bf16.msra.mxu0 0
    %2553 = vmatprep.subr.bf16.mxu0 0
    %2554 = vmatpush1.bf16.msra.mxu0 0
    %2555 = vmatprep.subr.bf16.mxu0 0
    %2556 = vmatpush1.bf16.msra.mxu0 0
    %2557 = vmatprep.mubr.bf16.mxu0 0
    %2558 = vmatmul.mubr.bf16.gmra.mrb[0].mxu0 %v2310
    %v2559 = vpop.f32.mrb[0].mxu0
    %v2560 = vadd.f32 %v2348, %v2559
    %v2561 = vpop.f32.mrb[0].mxu0
    %v2562 = vadd.f32 %v2352, %v2561
    %v2563 = vpop.f32.mrb[0].mxu0
    %v2564 = vpop.f32.mrb[0].mxu0
    %2565 = vdwg.mxu0
    %2566 = vmatprep.subr.bf16.mxu0 %v2464
    %2567 = vmatpush1.bf16.msra.mxu0 %v2463
    %2568 = vmatprep.subr.bf16.mxu0 %v2468
    %2569 = vmatpush1.bf16.msra.mxu0 %v2467
    %2570 = vmatprep.subr.bf16.mxu0 %v2472
    %2571 = vmatpush1.bf16.msra.mxu0 %v2471
    %2572 = vmatprep.subr.bf16.mxu0 %v2476
    %2573 = vmatpush1.bf16.msra.mxu0 %v2475
    %2574 = vmatprep.subr.bf16.mxu0 %v2480
    %2575 = vmatpush1.bf16.msra.mxu0 %v2479
    %2576 = vmatprep.subr.bf16.mxu0 %v2484
    %2577 = vmatpush1.bf16.msra.mxu0 %v2483
    %2578 = vmatprep.subr.bf16.mxu0 %v2488
    %2579 = vmatpush1.bf16.msra.mxu0 %v2487
    %2580 = vmatprep.subr.bf16.mxu0 %v2492
    %2581 = vmatpush1.bf16.msra.mxu0 %v2491
    %2582 = vmatprep.subr.bf16.mxu0 0
    %2583 = vmatpush1.bf16.msra.mxu0 0
    %2584 = vmatprep.subr.bf16.mxu0 0
    %2585 = vmatpush1.bf16.msra.mxu0 0
    %2586 = vmatprep.subr.bf16.mxu0 0
    %2587 = vmatpush1.bf16.msra.mxu0 0
    %2588 = vmatprep.subr.bf16.mxu0 0
    %2589 = vmatpush1.bf16.msra.mxu0 0
    %2590 = vmatprep.subr.bf16.mxu0 0
    %2591 = vmatpush1.bf16.msra.mxu0 0
    %2592 = vmatprep.subr.bf16.mxu0 0
    %2593 = vmatpush1.bf16.msra.mxu0 0
    %2594 = vmatprep.subr.bf16.mxu0 0
    %2595 = vmatpush1.bf16.msra.mxu0 0
    %2596 = vmatprep.subr.bf16.mxu0 0
    %2597 = vmatpush1.bf16.msra.mxu0 0
    %2598 = vmatprep.mubr.bf16.mxu0 0
    %2599 = vmatmul.mubr.bf16.gmra.mrb[0].mxu0 %v2310
    %v2600 = vpop.f32.mrb[0].mxu0
    %v2601 = vadd.f32 %v2356, %v2600
    %v2602 = vpop.f32.mrb[0].mxu0
    %v2603 = vadd.f32 %v2360, %v2602
    %v2604 = vpop.f32.mrb[0].mxu0
    %v2605 = vpop.f32.mrb[0].mxu0
    %2606 = vdwg.mxu0
    %v2607 = vmax.f32 %v2560, 0.0
    %v2608 = vmax.f32 %v2562, 0.0
    %v2609 = vmax.f32 %v2601, 0.0
    %v2610 = vmax.f32 %v2603, 0.0
    %v2611 = vpack.c.bf16 %v2607, %v2607
    %v2612 = vpack.c.bf16 %v2608, %v2608
    %v2613 = vpack.c.bf16 %v2609, %v2609
    %v2614 = vpack.c.bf16 %v2610, %v2610
    %v2615 = vld [vmem:[#allocation7] sm:$0xff]
    %v2616 = vld [vmem:[#allocation7 + $0x8] sm:$0xff]
    %v2617 = vld [vmem:[#allocation7 + $0x10] sm:$0xff]
    %v2618 = vld [vmem:[#allocation7 + $0x18] sm:$0xf]
    %v2619 = vld [vmem:[#allocation7 + $0x1c] sm:$0xff]
    %v2620 = vld [vmem:[#allocation7 + $0x24] sm:$0xff]
    %v2621 = vld [vmem:[#allocation7 + $0x2c] sm:$0xff]
    %v2622 = vld [vmem:[#allocation7 + $0x34] sm:$0xf]
    %v2623 = vld [vmem:[#allocation7 + $0x38] sm:$0xff]
    %v2624 = vld [vmem:[#allocation7 + $0x40] sm:$0xff]
    %v2625 = vld [vmem:[#allocation7 + $0x48] sm:$0xff]
    %v2626 = vld [vmem:[#allocation7 + $0x50] sm:$0xf]
    %v2627 = vld [vmem:[#allocation7 + $0x54] sm:$0xff]
    %v2628 = vld [vmem:[#allocation7 + $0x5c] sm:$0xff]
    %v2629 = vld [vmem:[#allocation7 + $0x64] sm:$0xff]
    %v2630 = vld [vmem:[#allocation7 + $0x6c] sm:$0xf]
    %v2631 = vld [vmem:[#allocation7 + $0x70] sm:$0xff]
    %v2632 = vld [vmem:[#allocation7 + $0x78] sm:$0xff]
    %v2633 = vld [vmem:[#allocation7 + $0x80] sm:$0xff]
    %v2634 = vld [vmem:[#allocation7 + $0x88] sm:$0xf]
    %v2635 = vld [vmem:[#allocation7 + $0x8c] sm:$0xff]
    %v2636 = vld [vmem:[#allocation7 + $0x94] sm:$0xff]
    %v2637 = vld [vmem:[#allocation7 + $0x9c] sm:$0xff]
    %v2638 = vld [vmem:[#allocation7 + $0xa4] sm:$0xf]
    %v2639 = vld [vmem:[#allocation7 + $0xa8] sm:$0xff]
    %v2640 = vld [vmem:[#allocation7 + $0xb0] sm:$0xff]
    %v2641 = vld [vmem:[#allocation7 + $0xb8] sm:$0xff]
    %v2642 = vld [vmem:[#allocation7 + $0xc0] sm:$0xf]
    %v2643 = vld [vmem:[#allocation7 + $0xc4] sm:$0xff]
    %v2644 = vld [vmem:[#allocation7 + $0xcc] sm:$0xff]
    %v2645 = vld [vmem:[#allocation7 + $0xd4] sm:$0xff]
    %v2646 = vld [vmem:[#allocation7 + $0xdc] sm:$0xf]
    %v2647 = vld [vmem:[#allocation7 + $0xe0] sm:$0xff]
    %v2648 = vld [vmem:[#allocation7 + $0xe8] sm:$0xff]
    %v2649 = vld [vmem:[#allocation7 + $0xf0] sm:$0xff]
    %v2650 = vld [vmem:[#allocation7 + $0xf8] sm:$0xf]
    %v2651 = vld [vmem:[#allocation7 + $0xfc] sm:$0xff]
    %v2652 = vld [vmem:[#allocation7 + $0x104] sm:$0xff]
    %v2653 = vld [vmem:[#allocation7 + $0x10c] sm:$0xff]
    %v2654 = vld [vmem:[#allocation7 + $0x114] sm:$0xf]
    %v2655 = vld [vmem:[#allocation7 + $0x118] sm:$0xff]
    %v2656 = vld [vmem:[#allocation7 + $0x120] sm:$0xff]
    %v2657 = vld [vmem:[#allocation7 + $0x128] sm:$0xff]
    %v2658 = vld [vmem:[#allocation7 + $0x130] sm:$0xf]
    %v2659 = vld [vmem:[#allocation7 + $0x134] sm:$0xff]
    %v2660 = vld [vmem:[#allocation7 + $0x13c] sm:$0xff]
    %v2661 = vld [vmem:[#allocation7 + $0x144] sm:$0xff]
    %v2662 = vld [vmem:[#allocation7 + $0x14c] sm:$0xf]
    %v2663 = vld [vmem:[#allocation7 + $0x150] sm:$0xff]
    %v2664 = vld [vmem:[#allocation7 + $0x158] sm:$0xff]
    %v2665 = vld [vmem:[#allocation7 + $0x160] sm:$0xff]
    %v2666 = vld [vmem:[#allocation7 + $0x168] sm:$0xf]
    %v2667 = vld [vmem:[#allocation7 + $0x16c] sm:$0xff]
    %v2668 = vld [vmem:[#allocation7 + $0x174] sm:$0xff]
    %v2669 = vld [vmem:[#allocation7 + $0x17c] sm:$0xff]
    %v2670 = vld [vmem:[#allocation7 + $0x184] sm:$0xf]
    %v2671 = vld [vmem:[#allocation7 + $0x188] sm:$0xff]
    %v2672 = vld [vmem:[#allocation7 + $0x190] sm:$0xff]
    %v2673 = vld [vmem:[#allocation7 + $0x198] sm:$0xff]
    %v2674 = vld [vmem:[#allocation7 + $0x1a0] sm:$0xf]
    %v2675 = vld [vmem:[#allocation7 + $0x1a4] sm:$0xff]
    %v2676 = vld [vmem:[#allocation7 + $0x1ac] sm:$0xff]
    %v2677 = vld [vmem:[#allocation7 + $0x1b4] sm:$0xff]
    %v2678 = vld [vmem:[#allocation7 + $0x1bc] sm:$0xf]
    %v2679 = vld [vmem:[#allocation7 + $0x1c0] sm:$0xff]
    %v2680 = vld [vmem:[#allocation7 + $0x1c8] sm:$0xff]
    %v2681 = vld [vmem:[#allocation7 + $0x1d0] sm:$0xff]
    %v2682 = vld [vmem:[#allocation7 + $0x1d8] sm:$0xf]
    %v2683 = vld [vmem:[#allocation7 + $0x1dc] sm:$0xff]
    %v2684 = vld [vmem:[#allocation7 + $0x1e4] sm:$0xff]
    %v2685 = vld [vmem:[#allocation7 + $0x1ec] sm:$0xff]
    %v2686 = vld [vmem:[#allocation7 + $0x1f4] sm:$0xf]
    %v2687 = vld [vmem:[#allocation7 + $0x1f8] sm:$0xff]
    %v2688 = vld [vmem:[#allocation7 + $0x200] sm:$0xff]
    %v2689 = vld [vmem:[#allocation7 + $0x208] sm:$0xff]
    %v2690 = vld [vmem:[#allocation7 + $0x210] sm:$0xf]
    %v2691 = vld [vmem:[#allocation7 + $0x214] sm:$0xff]
    %v2692 = vld [vmem:[#allocation7 + $0x21c] sm:$0xff]
    %v2693 = vld [vmem:[#allocation7 + $0x224] sm:$0xff]
    %v2694 = vld [vmem:[#allocation7 + $0x22c] sm:$0xf]
    %v2695 = vld [vmem:[#allocation7 + $0x230] sm:$0xff]
    %v2696 = vld [vmem:[#allocation7 + $0x238] sm:$0xff]
    %v2697 = vld [vmem:[#allocation7 + $0x240] sm:$0xff]
    %v2698 = vld [vmem:[#allocation7 + $0x248] sm:$0xf]
    %v2699 = vld [vmem:[#allocation7 + $0x24c] sm:$0xff]
    %v2700 = vld [vmem:[#allocation7 + $0x254] sm:$0xff]
    %v2701 = vld [vmem:[#allocation7 + $0x25c] sm:$0xff]
    %v2702 = vld [vmem:[#allocation7 + $0x264] sm:$0xf]
    %v2703 = vld [vmem:[#allocation7 + $0x268] sm:$0xff]
    %v2704 = vld [vmem:[#allocation7 + $0x270] sm:$0xff]
    %v2705 = vld [vmem:[#allocation7 + $0x278] sm:$0xff]
    %v2706 = vld [vmem:[#allocation7 + $0x280] sm:$0xf]
    %v2707 = vld [vmem:[#allocation7 + $0x284] sm:$0xff]
    %v2708 = vld [vmem:[#allocation7 + $0x28c] sm:$0xff]
    %v2709 = vld [vmem:[#allocation7 + $0x294] sm:$0xff]
    %v2710 = vld [vmem:[#allocation7 + $0x29c] sm:$0xf]
    %v2711 = vld [vmem:[#allocation7 + $0x2a0] sm:$0xff]
    %v2712 = vld [vmem:[#allocation7 + $0x2a8] sm:$0xff]
    %v2713 = vld [vmem:[#allocation7 + $0x2b0] sm:$0xff]
    %v2714 = vld [vmem:[#allocation7 + $0x2b8] sm:$0xf]
    %v2715 = vld [vmem:[#allocation7 + $0x2bc] sm:$0xff]
    %v2716 = vld [vmem:[#allocation7 + $0x2c4] sm:$0xff]
    %v2717 = vld [vmem:[#allocation7 + $0x2cc] sm:$0xff]
    %v2718 = vld [vmem:[#allocation7 + $0x2d4] sm:$0xf]
    %v2719 = vld [vmem:[#allocation7 + $0x2d8] sm:$0xff]
    %v2720 = vld [vmem:[#allocation7 + $0x2e0] sm:$0xff]
    %v2721 = vld [vmem:[#allocation7 + $0x2e8] sm:$0xff]
    %v2722 = vld [vmem:[#allocation7 + $0x2f0] sm:$0xf]
    %v2723 = vld [vmem:[#allocation7 + $0x2f4] sm:$0xff]
    %v2724 = vld [vmem:[#allocation7 + $0x2fc] sm:$0xff]
    %v2725 = vld [vmem:[#allocation7 + $0x304] sm:$0xff]
    %v2726 = vld [vmem:[#allocation7 + $0x30c] sm:$0xf]
    %v2727 = vld [vmem:[#allocation7 + $0x310] sm:$0xff]
    %v2728 = vld [vmem:[#allocation7 + $0x318] sm:$0xff]
    %v2729 = vld [vmem:[#allocation7 + $0x320] sm:$0xff]
    %v2730 = vld [vmem:[#allocation7 + $0x328] sm:$0xf]
    %v2731 = vld [vmem:[#allocation7 + $0x32c] sm:$0xff]
    %v2732 = vld [vmem:[#allocation7 + $0x334] sm:$0xff]
    %v2733 = vld [vmem:[#allocation7 + $0x33c] sm:$0xff]
    %v2734 = vld [vmem:[#allocation7 + $0x344] sm:$0xf]
    %v2735 = vld [vmem:[#allocation7 + $0x348] sm:$0xff]
    %v2736 = vld [vmem:[#allocation7 + $0x350] sm:$0xff]
    %v2737 = vld [vmem:[#allocation7 + $0x358] sm:$0xff]
    %v2738 = vld [vmem:[#allocation7 + $0x360] sm:$0xf]
    %v2739 = vld [vmem:[#allocation7 + $0x364] sm:$0xff]
    %v2740 = vld [vmem:[#allocation7 + $0x36c] sm:$0xff]
    %v2741 = vld [vmem:[#allocation7 + $0x374] sm:$0xff]
    %v2742 = vld [vmem:[#allocation7 + $0x37c] sm:$0xf]
    %v2743 = vld [vmem:[#allocation7 + $0x380] sm:$0xff]
    %v2744 = vld [vmem:[#allocation7 + $0x388] sm:$0xff]
    %v2745 = vld [vmem:[#allocation7 + $0x390] sm:$0xff]
    %v2746 = vld [vmem:[#allocation7 + $0x398] sm:$0xf]
    %v2747 = vld [vmem:[#allocation7 + $0x39c] sm:$0xff]
    %v2748 = vld [vmem:[#allocation7 + $0x3a4] sm:$0xff]
    %v2749 = vld [vmem:[#allocation7 + $0x3ac] sm:$0xff]
    %v2750 = vld [vmem:[#allocation7 + $0x3b4] sm:$0xf]
    %v2751 = vld [vmem:[#allocation7 + $0x3b8] sm:$0xff]
    %v2752 = vld [vmem:[#allocation7 + $0x3c0] sm:$0xff]
    %v2753 = vld [vmem:[#allocation7 + $0x3c8] sm:$0xff]
    %v2754 = vld [vmem:[#allocation7 + $0x3d0] sm:$0xf]
    %v2755 = vld [vmem:[#allocation7 + $0x3d4] sm:$0xff]
    %v2756 = vld [vmem:[#allocation7 + $0x3dc] sm:$0xff]
    %v2757 = vld [vmem:[#allocation7 + $0x3e4] sm:$0xff]
    %v2758 = vld [vmem:[#allocation7 + $0x3ec] sm:$0xf]
    %v2759 = vld [vmem:[#allocation7 + $0x3f0] sm:$0xff]
    %v2760 = vld [vmem:[#allocation7 + $0x3f8] sm:$0xff]
    %v2761 = vld [vmem:[#allocation7 + $0x400] sm:$0xff]
    %v2762 = vld [vmem:[#allocation7 + $0x408] sm:$0xf]
    %v2763 = vld [vmem:[#allocation7 + $0x40c] sm:$0xff]
    %v2764 = vld [vmem:[#allocation7 + $0x414] sm:$0xff]
    %v2765 = vld [vmem:[#allocation7 + $0x41c] sm:$0xff]
    %v2766 = vld [vmem:[#allocation7 + $0x424] sm:$0xf]
    %v2767 = vld [vmem:[#allocation7 + $0x428] sm:$0xff]
    %v2768 = vld [vmem:[#allocation7 + $0x430] sm:$0xff]
    %v2769 = vld [vmem:[#allocation7 + $0x438] sm:$0xff]
    %v2770 = vld [vmem:[#allocation7 + $0x440] sm:$0xf]
    %v2771 = vld [vmem:[#allocation7 + $0x444] sm:$0xff]
    %v2772 = vld [vmem:[#allocation7 + $0x44c] sm:$0xff]
    %v2773 = vld [vmem:[#allocation7 + $0x454] sm:$0xff]
    %v2774 = vld [vmem:[#allocation7 + $0x45c] sm:$0xf]
    %v2775 = vld [vmem:[#allocation7 + $0x460] sm:$0xff]
    %v2776 = vld [vmem:[#allocation7 + $0x468] sm:$0xff]
    %v2777 = vld [vmem:[#allocation7 + $0x470] sm:$0xff]
    %v2778 = vld [vmem:[#allocation7 + $0x478] sm:$0xf]
    %v2779 = vld [vmem:[#allocation7 + $0x47c] sm:$0xff]
    %v2780 = vld [vmem:[#allocation7 + $0x484] sm:$0xff]
    %v2781 = vld [vmem:[#allocation7 + $0x48c] sm:$0xff]
    %v2782 = vld [vmem:[#allocation7 + $0x494] sm:$0xf]
    %v2783 = vld [vmem:[#allocation7 + $0x498] sm:$0xff]
    %v2784 = vld [vmem:[#allocation7 + $0x4a0] sm:$0xff]
    %v2785 = vld [vmem:[#allocation7 + $0x4a8] sm:$0xff]
    %v2786 = vld [vmem:[#allocation7 + $0x4b0] sm:$0xf]
    %v2787 = vld [vmem:[#allocation7 + $0x4b4] sm:$0xff]
    %v2788 = vld [vmem:[#allocation7 + $0x4bc] sm:$0xff]
    %v2789 = vld [vmem:[#allocation7 + $0x4c4] sm:$0xff]
    %v2790 = vld [vmem:[#allocation7 + $0x4cc] sm:$0xf]
    %v2791 = vld [vmem:[#allocation7 + $0x4d0] sm:$0xff]
    %v2792 = vld [vmem:[#allocation7 + $0x4d8] sm:$0xff]
    %v2793 = vld [vmem:[#allocation7 + $0x4e0] sm:$0xff]
    %v2794 = vld [vmem:[#allocation7 + $0x4e8] sm:$0xf]
    %v2795 = vld [vmem:[#allocation7 + $0x4ec] sm:$0xff]
    %v2796 = vld [vmem:[#allocation7 + $0x4f4] sm:$0xff]
    %v2797 = vld [vmem:[#allocation7 + $0x4fc] sm:$0xff]
    %v2798 = vld [vmem:[#allocation7 + $0x504] sm:$0xf]
    %v2799 = vld [vmem:[#allocation7 + $0x508] sm:$0xff]
    %v2800 = vld [vmem:[#allocation7 + $0x510] sm:$0xff]
    %v2801 = vld [vmem:[#allocation7 + $0x518] sm:$0xff]
    %v2802 = vld [vmem:[#allocation7 + $0x520] sm:$0xf]
    %v2803 = vld [vmem:[#allocation7 + $0x524] sm:$0xff]
    %v2804 = vld [vmem:[#allocation7 + $0x52c] sm:$0xff]
    %v2805 = vld [vmem:[#allocation7 + $0x534] sm:$0xff]
    %v2806 = vld [vmem:[#allocation7 + $0x53c] sm:$0xf]
    %v2807 = vld [vmem:[#allocation7 + $0x540] sm:$0xff]
    %v2808 = vld [vmem:[#allocation7 + $0x548] sm:$0xff]
    %v2809 = vld [vmem:[#allocation7 + $0x550] sm:$0xff]
    %v2810 = vld [vmem:[#allocation7 + $0x558] sm:$0xf]
    %v2811 = vld [vmem:[#allocation7 + $0x55c] sm:$0xff]
    %v2812 = vld [vmem:[#allocation7 + $0x564] sm:$0xff]
    %v2813 = vld [vmem:[#allocation7 + $0x56c] sm:$0xff]
    %v2814 = vld [vmem:[#allocation7 + $0x574] sm:$0xf]
    %v2815 = vld [vmem:[#allocation7 + $0x578] sm:$0xff]
    %v2816 = vld [vmem:[#allocation7 + $0x580] sm:$0xff]
    %v2817 = vld [vmem:[#allocation7 + $0x588] sm:$0xff]
    %v2818 = vld [vmem:[#allocation7 + $0x590] sm:$0xf]
    %v2819 = vld [vmem:[#allocation7 + $0x594] sm:$0xff]
    %v2820 = vld [vmem:[#allocation7 + $0x59c] sm:$0xff]
    %v2821 = vld [vmem:[#allocation7 + $0x5a4] sm:$0xff]
    %v2822 = vld [vmem:[#allocation7 + $0x5ac] sm:$0xf]
    %v2823 = vld [vmem:[#allocation7 + $0x5b0] sm:$0xff]
    %v2824 = vld [vmem:[#allocation7 + $0x5b8] sm:$0xff]
    %v2825 = vld [vmem:[#allocation7 + $0x5c0] sm:$0xff]
    %v2826 = vld [vmem:[#allocation7 + $0x5c8] sm:$0xf]
    %v2827 = vld [vmem:[#allocation7 + $0x5cc] sm:$0xff]
    %v2828 = vld [vmem:[#allocation7 + $0x5d4] sm:$0xff]
    %v2829 = vld [vmem:[#allocation7 + $0x5dc] sm:$0xff]
    %v2830 = vld [vmem:[#allocation7 + $0x5e4] sm:$0xf]
    %v2831 = vld [vmem:[#allocation7 + $0x5e8] sm:$0xff]
    %v2832 = vld [vmem:[#allocation7 + $0x5f0] sm:$0xff]
    %v2833 = vld [vmem:[#allocation7 + $0x5f8] sm:$0xff]
    %v2834 = vld [vmem:[#allocation7 + $0x600] sm:$0xf]
    %v2835 = vld [vmem:[#allocation7 + $0x604] sm:$0xff]
    %v2836 = vld [vmem:[#allocation7 + $0x60c] sm:$0xff]
    %v2837 = vld [vmem:[#allocation7 + $0x614] sm:$0xff]
    %v2838 = vld [vmem:[#allocation7 + $0x61c] sm:$0xf]
    %v2839 = vld [vmem:[#allocation7 + $0x620] sm:$0xff]
    %v2840 = vld [vmem:[#allocation7 + $0x628] sm:$0xff]
    %v2841 = vld [vmem:[#allocation7 + $0x630] sm:$0xff]
    %v2842 = vld [vmem:[#allocation7 + $0x638] sm:$0xf]
    %v2843 = vld [vmem:[#allocation7 + $0x63c] sm:$0xff]
    %v2844 = vld [vmem:[#allocation7 + $0x644] sm:$0xff]
    %v2845 = vld [vmem:[#allocation7 + $0x64c] sm:$0xff]
    %v2846 = vld [vmem:[#allocation7 + $0x654] sm:$0xf]
    %v2847 = vld [vmem:[#allocation7 + $0x658] sm:$0xff]
    %v2848 = vld [vmem:[#allocation7 + $0x660] sm:$0xff]
    %v2849 = vld [vmem:[#allocation7 + $0x668] sm:$0xff]
    %v2850 = vld [vmem:[#allocation7 + $0x670] sm:$0xf]
    %v2851 = vld [vmem:[#allocation7 + $0x674] sm:$0xff]
    %v2852 = vld [vmem:[#allocation7 + $0x67c] sm:$0xff]
    %v2853 = vld [vmem:[#allocation7 + $0x684] sm:$0xff]
    %v2854 = vld [vmem:[#allocation7 + $0x68c] sm:$0xf]
    %v2855 = vld [vmem:[#allocation7 + $0x690] sm:$0xff]
    %v2856 = vld [vmem:[#allocation7 + $0x698] sm:$0xff]
    %v2857 = vld [vmem:[#allocation7 + $0x6a0] sm:$0xff]
    %v2858 = vld [vmem:[#allocation7 + $0x6a8] sm:$0xf]
    %v2859 = vld [vmem:[#allocation7 + $0x6ac] sm:$0xff]
    %v2860 = vld [vmem:[#allocation7 + $0x6b4] sm:$0xff]
    %v2861 = vld [vmem:[#allocation7 + $0x6bc] sm:$0xff]
    %v2862 = vld [vmem:[#allocation7 + $0x6c4] sm:$0xf]
    %v2863 = vld [vmem:[#allocation7 + $0x6c8] sm:$0xff]
    %v2864 = vld [vmem:[#allocation7 + $0x6d0] sm:$0xff]
    %v2865 = vld [vmem:[#allocation7 + $0x6d8] sm:$0xff]
    %v2866 = vld [vmem:[#allocation7 + $0x6e0] sm:$0xf]
    %v2867 = vld [vmem:[#allocation7 + $0x6e4] sm:$0xff]
    %v2868 = vld [vmem:[#allocation7 + $0x6ec] sm:$0xff]
    %v2869 = vld [vmem:[#allocation7 + $0x6f4] sm:$0xff]
    %v2870 = vld [vmem:[#allocation7 + $0x6fc] sm:$0xf]
    %v2871 = vld [vmem:[%s9] sm:$0xff]
    %v2873 = vlaneseq
    %v2874 = vshrl.u32 %v2873, 7
    %v2875 = vsub.s32 0, %v2874
    %v2876 = vrot.slane %v2871, %v2875
    %v2877 = vlaneseq
    %v2878 = vshrl.u32 %v2877, 7
    %v2879 = vsub.s32 1, %v2878
    %v2880 = vrot.slane %v2871, %v2879
    %v2881 = vlaneseq
    %v2882 = vshrl.u32 %v2881, 7
    %v2883 = vsub.s32 2, %v2882
    %v2884 = vrot.slane %v2871, %v2883
    %v2885 = vlaneseq
    %v2886 = vshrl.u32 %v2885, 7
    %v2887 = vsub.s32 3, %v2886
    %v2888 = vrot.slane %v2871, %v2887
    %v2889 = vlaneseq
    %v2890 = vshrl.u32 %v2889, 7
    %v2891 = vsub.s32 4, %v2890
    %v2892 = vrot.slane %v2871, %v2891
    %v2893 = vlaneseq
    %v2894 = vshrl.u32 %v2893, 7
    %v2895 = vsub.s32 5, %v2894
    %v2896 = vrot.slane %v2871, %v2895
    %v2897 = vlaneseq
    %v2898 = vshrl.u32 %v2897, 7
    %v2899 = vsub.s32 6, %v2898
    %v2900 = vrot.slane %v2871, %v2899
    %v3164 = vunpack.c.l.b16 %v2615
    %v3165 = vunpack.c.h.b16 %v2615
    %v3166 = vunpack.c.l.b16 %v2616
    %v3167 = vunpack.c.h.b16 %v2616
    %v3168 = vunpack.c.l.b16 %v2617
    %v3169 = vunpack.c.h.b16 %v2617
    %v3170 = vunpack.c.l.b16 %v2618
    %v3171 = vunpack.c.l.b16 %v2619
    %v3172 = vunpack.c.h.b16 %v2619
    %v3173 = vunpack.c.l.b16 %v2620
    %v3174 = vunpack.c.h.b16 %v2620
    %v3175 = vunpack.c.l.b16 %v2621
    %v3176 = vunpack.c.h.b16 %v2621
    %v3177 = vunpack.c.l.b16 %v2622
    %v3178 = vunpack.c.l.b16 %v2623
    %v3179 = vunpack.c.h.b16 %v2623
    %v3180 = vunpack.c.l.b16 %v2624
    %v3181 = vunpack.c.h.b16 %v2624
    %v3182 = vunpack.c.l.b16 %v2625
    %v3183 = vunpack.c.h.b16 %v2625
    %v3184 = vunpack.c.l.b16 %v2626
    %v3185 = vunpack.c.l.b16 %v2627
    %v3186 = vunpack.c.h.b16 %v2627
    %v3187 = vunpack.c.l.b16 %v2628
    %v3188 = vunpack.c.h.b16 %v2628
    %v3189 = vunpack.c.l.b16 %v2629
    %v3190 = vunpack.c.h.b16 %v2629
    %v3191 = vunpack.c.l.b16 %v2630
    %v3192 = vunpack.c.l.b16 %v2631
    %v3193 = vunpack.c.h.b16 %v2631
    %v3194 = vunpack.c.l.b16 %v2632
    %v3195 = vunpack.c.h.b16 %v2632
    %v3196 = vunpack.c.l.b16 %v2633
    %v3197 = vunpack.c.h.b16 %v2633
    %v3198 = vunpack.c.l.b16 %v2634
    %v3199 = vunpack.c.l.b16 %v2635
    %v3200 = vunpack.c.h.b16 %v2635
    %v3201 = vunpack.c.l.b16 %v2636
    %v3202 = vunpack.c.h.b16 %v2636
    %v3203 = vunpack.c.l.b16 %v2637
    %v3204 = vunpack.c.h.b16 %v2637
    %v3205 = vunpack.c.l.b16 %v2638
    %v3206 = vunpack.c.l.b16 %v2639
    %v3207 = vunpack.c.h.b16 %v2639
    %v3208 = vunpack.c.l.b16 %v2640
    %v3209 = vunpack.c.h.b16 %v2640
    %v3210 = vunpack.c.l.b16 %v2641
    %v3211 = vunpack.c.h.b16 %v2641
    %v3212 = vunpack.c.l.b16 %v2642
    %v3213 = vunpack.c.l.b16 %v2643
    %v3214 = vunpack.c.h.b16 %v2643
    %v3215 = vunpack.c.l.b16 %v2644
    %v3216 = vunpack.c.h.b16 %v2644
    %v3217 = vunpack.c.l.b16 %v2645
    %v3218 = vunpack.c.h.b16 %v2645
    %v3219 = vunpack.c.l.b16 %v2646
    %v3220 = vunpack.c.l.b16 %v2647
    %v3221 = vunpack.c.h.b16 %v2647
    %v3222 = vunpack.c.l.b16 %v2648
    %v3223 = vunpack.c.h.b16 %v2648
    %v3224 = vunpack.c.l.b16 %v2649
    %v3225 = vunpack.c.h.b16 %v2649
    %v3226 = vunpack.c.l.b16 %v2650
    %v3227 = vunpack.c.l.b16 %v2651
    %v3228 = vunpack.c.h.b16 %v2651
    %v3229 = vunpack.c.l.b16 %v2652
    %v3230 = vunpack.c.h.b16 %v2652
    %v3231 = vunpack.c.l.b16 %v2653
    %v3232 = vunpack.c.h.b16 %v2653
    %v3233 = vunpack.c.l.b16 %v2654
    %v3234 = vunpack.c.l.b16 %v2655
    %v3235 = vunpack.c.h.b16 %v2655
    %v3236 = vunpack.c.l.b16 %v2656
    %v3237 = vunpack.c.h.b16 %v2656
    %v3238 = vunpack.c.l.b16 %v2657
    %v3239 = vunpack.c.h.b16 %v2657
    %v3240 = vunpack.c.l.b16 %v2658
    %v3241 = vunpack.c.l.b16 %v2659
    %v3242 = vunpack.c.h.b16 %v2659
    %v3243 = vunpack.c.l.b16 %v2660
    %v3244 = vunpack.c.h.b16 %v2660
    %v3245 = vunpack.c.l.b16 %v2661
    %v3246 = vunpack.c.h.b16 %v2661
    %v3247 = vunpack.c.l.b16 %v2662
    %v3248 = vunpack.c.l.b16 %v2663
    %v3249 = vunpack.c.h.b16 %v2663
    %v3250 = vunpack.c.l.b16 %v2664
    %v3251 = vunpack.c.h.b16 %v2664
    %v3252 = vunpack.c.l.b16 %v2665
    %v3253 = vunpack.c.h.b16 %v2665
    %v3254 = vunpack.c.l.b16 %v2666
    %v3255 = vunpack.c.l.b16 %v2667
    %v3256 = vunpack.c.h.b16 %v2667
    %v3257 = vunpack.c.l.b16 %v2668
    %v3258 = vunpack.c.h.b16 %v2668
    %v3259 = vunpack.c.l.b16 %v2669
    %v3260 = vunpack.c.h.b16 %v2669
    %v3261 = vunpack.c.l.b16 %v2670
    %v3262 = vunpack.c.l.b16 %v2671
    %v3263 = vunpack.c.h.b16 %v2671
    %v3264 = vunpack.c.l.b16 %v2672
    %v3265 = vunpack.c.h.b16 %v2672
    %v3266 = vunpack.c.l.b16 %v2673
    %v3267 = vunpack.c.h.b16 %v2673
    %v3268 = vunpack.c.l.b16 %v2674
    %v3269 = vunpack.c.l.b16 %v2675
    %v3270 = vunpack.c.h.b16 %v2675
    %v3271 = vunpack.c.l.b16 %v2676
    %v3272 = vunpack.c.h.b16 %v2676
    %v3273 = vunpack.c.l.b16 %v2677
    %v3274 = vunpack.c.h.b16 %v2677
    %v3275 = vunpack.c.l.b16 %v2678
    %v3276 = vunpack.c.l.b16 %v2679
    %v3277 = vunpack.c.h.b16 %v2679
    %v3278 = vunpack.c.l.b16 %v2680
    %v3279 = vunpack.c.h.b16 %v2680
    %v3280 = vunpack.c.l.b16 %v2681
    %v3281 = vunpack.c.h.b16 %v2681
    %v3282 = vunpack.c.l.b16 %v2682
    %v3283 = vunpack.c.l.b16 %v2683
    %v3284 = vunpack.c.h.b16 %v2683
    %v3285 = vunpack.c.l.b16 %v2684
    %v3286 = vunpack.c.h.b16 %v2684
    %v3287 = vunpack.c.l.b16 %v2685
    %v3288 = vunpack.c.h.b16 %v2685
    %v3289 = vunpack.c.l.b16 %v2686
    %v3290 = vunpack.c.l.b16 %v2687
    %v3291 = vunpack.c.h.b16 %v2687
    %v3292 = vunpack.c.l.b16 %v2688
    %v3293 = vunpack.c.h.b16 %v2688
    %v3294 = vunpack.c.l.b16 %v2689
    %v3295 = vunpack.c.h.b16 %v2689
    %v3296 = vunpack.c.l.b16 %v2690
    %v3297 = vunpack.c.l.b16 %v2691
    %v3298 = vunpack.c.h.b16 %v2691
    %v3299 = vunpack.c.l.b16 %v2692
    %v3300 = vunpack.c.h.b16 %v2692
    %v3301 = vunpack.c.l.b16 %v2693
    %v3302 = vunpack.c.h.b16 %v2693
    %v3303 = vunpack.c.l.b16 %v2694
    %v3304 = vunpack.c.l.b16 %v2695
    %v3305 = vunpack.c.h.b16 %v2695
    %v3306 = vunpack.c.l.b16 %v2696
    %v3307 = vunpack.c.h.b16 %v2696
    %v3308 = vunpack.c.l.b16 %v2697
    %v3309 = vunpack.c.h.b16 %v2697
    %v3310 = vunpack.c.l.b16 %v2698
    %v3311 = vunpack.c.l.b16 %v2699
    %v3312 = vunpack.c.h.b16 %v2699
    %v3313 = vunpack.c.l.b16 %v2700
    %v3314 = vunpack.c.h.b16 %v2700
    %v3315 = vunpack.c.l.b16 %v2701
    %v3316 = vunpack.c.h.b16 %v2701
    %v3317 = vunpack.c.l.b16 %v2702
    %v3318 = vunpack.c.l.b16 %v2703
    %v3319 = vunpack.c.h.b16 %v2703
    %v3320 = vunpack.c.l.b16 %v2704
    %v3321 = vunpack.c.h.b16 %v2704
    %v3322 = vunpack.c.l.b16 %v2705
    %v3323 = vunpack.c.h.b16 %v2705
    %v3324 = vunpack.c.l.b16 %v2706
    %v3325 = vunpack.c.l.b16 %v2707
    %v3326 = vunpack.c.h.b16 %v2707
    %v3327 = vunpack.c.l.b16 %v2708
    %v3328 = vunpack.c.h.b16 %v2708
    %v3329 = vunpack.c.l.b16 %v2709
    %v3330 = vunpack.c.h.b16 %v2709
    %v3331 = vunpack.c.l.b16 %v2710
    %v3332 = vunpack.c.l.b16 %v2711
    %v3333 = vunpack.c.h.b16 %v2711
    %v3334 = vunpack.c.l.b16 %v2712
    %v3335 = vunpack.c.h.b16 %v2712
    %v3336 = vunpack.c.l.b16 %v2713
    %v3337 = vunpack.c.h.b16 %v2713
    %v3338 = vunpack.c.l.b16 %v2714
    %v3339 = vunpack.c.l.b16 %v2715
    %v3340 = vunpack.c.h.b16 %v2715
    %v3341 = vunpack.c.l.b16 %v2716
    %v3342 = vunpack.c.h.b16 %v2716
    %v3343 = vunpack.c.l.b16 %v2717
    %v3344 = vunpack.c.h.b16 %v2717
    %v3345 = vunpack.c.l.b16 %v2718
    %v3346 = vunpack.c.l.b16 %v2719
    %v3347 = vunpack.c.h.b16 %v2719
    %v3348 = vunpack.c.l.b16 %v2720
    %v3349 = vunpack.c.h.b16 %v2720
    %v3350 = vunpack.c.l.b16 %v2721
    %v3351 = vunpack.c.h.b16 %v2721
    %v3352 = vunpack.c.l.b16 %v2722
    %v3353 = vunpack.c.l.b16 %v2723
    %v3354 = vunpack.c.h.b16 %v2723
    %v3355 = vunpack.c.l.b16 %v2724
    %v3356 = vunpack.c.h.b16 %v2724
    %v3357 = vunpack.c.l.b16 %v2725
    %v3358 = vunpack.c.h.b16 %v2725
    %v3359 = vunpack.c.l.b16 %v2726
    %v3360 = vunpack.c.l.b16 %v2727
    %v3361 = vunpack.c.h.b16 %v2727
    %v3362 = vunpack.c.l.b16 %v2728
    %v3363 = vunpack.c.h.b16 %v2728
    %v3364 = vunpack.c.l.b16 %v2729
    %v3365 = vunpack.c.h.b16 %v2729
    %v3366 = vunpack.c.l.b16 %v2730
    %v3367 = vunpack.c.l.b16 %v2731
    %v3368 = vunpack.c.h.b16 %v2731
    %v3369 = vunpack.c.l.b16 %v2732
    %v3370 = vunpack.c.h.b16 %v2732
    %v3371 = vunpack.c.l.b16 %v2733
    %v3372 = vunpack.c.h.b16 %v2733
    %v3373 = vunpack.c.l.b16 %v2734
    %v3374 = vunpack.c.l.b16 %v2735
    %v3375 = vunpack.c.h.b16 %v2735
    %v3376 = vunpack.c.l.b16 %v2736
    %v3377 = vunpack.c.h.b16 %v2736
    %v3378 = vunpack.c.l.b16 %v2737
    %v3379 = vunpack.c.h.b16 %v2737
    %v3380 = vunpack.c.l.b16 %v2738
    %v3381 = vunpack.c.l.b16 %v2739
    %v3382 = vunpack.c.h.b16 %v2739
    %v3383 = vunpack.c.l.b16 %v2740
    %v3384 = vunpack.c.h.b16 %v2740
    %v3385 = vunpack.c.l.b16 %v2741
    %v3386 = vunpack.c.h.b16 %v2741
    %v3387 = vunpack.c.l.b16 %v2742
    %v3388 = vunpack.c.l.b16 %v2743
    %v3389 = vunpack.c.h.b16 %v2743
    %v3390 = vunpack.c.l.b16 %v2744
    %v3391 = vunpack.c.h.b16 %v2744
    %v3392 = vunpack.c.l.b16 %v2745
    %v3393 = vunpack.c.h.b16 %v2745
    %v3394 = vunpack.c.l.b16 %v2746
    %v3395 = vunpack.c.l.b16 %v2747
    %v3396 = vunpack.c.h.b16 %v2747
    %v3397 = vunpack.c.l.b16 %v2748
    %v3398 = vunpack.c.h.b16 %v2748
    %v3399 = vunpack.c.l.b16 %v2749
    %v3400 = vunpack.c.h.b16 %v2749
    %v3401 = vunpack.c.l.b16 %v2750
    %v3402 = vunpack.c.l.b16 %v2751
    %v3403 = vunpack.c.h.b16 %v2751
    %v3404 = vunpack.c.l.b16 %v2752
    %v3405 = vunpack.c.h.b16 %v2752
    %v3406 = vunpack.c.l.b16 %v2753
    %v3407 = vunpack.c.h.b16 %v2753
    %v3408 = vunpack.c.l.b16 %v2754
    %v3409 = vunpack.c.l.b16 %v2755
    %v3410 = vunpack.c.h.b16 %v2755
    %v3411 = vunpack.c.l.b16 %v2756
    %v3412 = vunpack.c.h.b16 %v2756
    %v3413 = vunpack.c.l.b16 %v2757
    %v3414 = vunpack.c.h.b16 %v2757
    %v3415 = vunpack.c.l.b16 %v2758
    %v3416 = vunpack.c.l.b16 %v2759
    %v3417 = vunpack.c.h.b16 %v2759
    %v3418 = vunpack.c.l.b16 %v2760
    %v3419 = vunpack.c.h.b16 %v2760
    %v3420 = vunpack.c.l.b16 %v2761
    %v3421 = vunpack.c.h.b16 %v2761
    %v3422 = vunpack.c.l.b16 %v2762
    %v3423 = vunpack.c.l.b16 %v2763
    %v3424 = vunpack.c.h.b16 %v2763
    %v3425 = vunpack.c.l.b16 %v2764
    %v3426 = vunpack.c.h.b16 %v2764
    %v3427 = vunpack.c.l.b16 %v2765
    %v3428 = vunpack.c.h.b16 %v2765
    %v3429 = vunpack.c.l.b16 %v2766
    %v3430 = vunpack.c.l.b16 %v2767
    %v3431 = vunpack.c.h.b16 %v2767
    %v3432 = vunpack.c.l.b16 %v2768
    %v3433 = vunpack.c.h.b16 %v2768
    %v3434 = vunpack.c.l.b16 %v2769
    %v3435 = vunpack.c.h.b16 %v2769
    %v3436 = vunpack.c.l.b16 %v2770
    %v3437 = vunpack.c.l.b16 %v2771
    %v3438 = vunpack.c.h.b16 %v2771
    %v3439 = vunpack.c.l.b16 %v2772
    %v3440 = vunpack.c.h.b16 %v2772
    %v3441 = vunpack.c.l.b16 %v2773
    %v3442 = vunpack.c.h.b16 %v2773
    %v3443 = vunpack.c.l.b16 %v2774
    %v3444 = vunpack.c.l.b16 %v2775
    %v3445 = vunpack.c.h.b16 %v2775
    %v3446 = vunpack.c.l.b16 %v2776
    %v3447 = vunpack.c.h.b16 %v2776
    %v3448 = vunpack.c.l.b16 %v2777
    %v3449 = vunpack.c.h.b16 %v2777
    %v3450 = vunpack.c.l.b16 %v2778
    %v3451 = vunpack.c.l.b16 %v2779
    %v3452 = vunpack.c.h.b16 %v2779
    %v3453 = vunpack.c.l.b16 %v2780
    %v3454 = vunpack.c.h.b16 %v2780
    %v3455 = vunpack.c.l.b16 %v2781
    %v3456 = vunpack.c.h.b16 %v2781
    %v3457 = vunpack.c.l.b16 %v2782
    %v3458 = vunpack.c.l.b16 %v2783
    %v3459 = vunpack.c.h.b16 %v2783
    %v3460 = vunpack.c.l.b16 %v2784
    %v3461 = vunpack.c.h.b16 %v2784
    %v3462 = vunpack.c.l.b16 %v2785
    %v3463 = vunpack.c.h.b16 %v2785
    %v3464 = vunpack.c.l.b16 %v2786
    %v3465 = vunpack.c.l.b16 %v2787
    %v3466 = vunpack.c.h.b16 %v2787
    %v3467 = vunpack.c.l.b16 %v2788
    %v3468 = vunpack.c.h.b16 %v2788
    %v3469 = vunpack.c.l.b16 %v2789
    %v3470 = vunpack.c.h.b16 %v2789
    %v3471 = vunpack.c.l.b16 %v2790
    %v3472 = vunpack.c.l.b16 %v2791
    %v3473 = vunpack.c.h.b16 %v2791
    %v3474 = vunpack.c.l.b16 %v2792
    %v3475 = vunpack.c.h.b16 %v2792
    %v3476 = vunpack.c.l.b16 %v2793
    %v3477 = vunpack.c.h.b16 %v2793
    %v3478 = vunpack.c.l.b16 %v2794
    %v3479 = vunpack.c.l.b16 %v2795
    %v3480 = vunpack.c.h.b16 %v2795
    %v3481 = vunpack.c.l.b16 %v2796
    %v3482 = vunpack.c.h.b16 %v2796
    %v3483 = vunpack.c.l.b16 %v2797
    %v3484 = vunpack.c.h.b16 %v2797
    %v3485 = vunpack.c.l.b16 %v2798
    %v3486 = vunpack.c.l.b16 %v2799
    %v3487 = vunpack.c.h.b16 %v2799
    %v3488 = vunpack.c.l.b16 %v2800
    %v3489 = vunpack.c.h.b16 %v2800
    %v3490 = vunpack.c.l.b16 %v2801
    %v3491 = vunpack.c.h.b16 %v2801
    %v3492 = vunpack.c.l.b16 %v2802
    %v3493 = vunpack.c.l.b16 %v2803
    %v3494 = vunpack.c.h.b16 %v2803
    %v3495 = vunpack.c.l.b16 %v2804
    %v3496 = vunpack.c.h.b16 %v2804
    %v3497 = vunpack.c.l.b16 %v2805
    %v3498 = vunpack.c.h.b16 %v2805
    %v3499 = vunpack.c.l.b16 %v2806
    %v3500 = vunpack.c.l.b16 %v2807
    %v3501 = vunpack.c.h.b16 %v2807
    %v3502 = vunpack.c.l.b16 %v2808
    %v3503 = vunpack.c.h.b16 %v2808
    %v3504 = vunpack.c.l.b16 %v2809
    %v3505 = vunpack.c.h.b16 %v2809
    %v3506 = vunpack.c.l.b16 %v2810
    %v3507 = vunpack.c.l.b16 %v2811
    %v3508 = vunpack.c.h.b16 %v2811
    %v3509 = vunpack.c.l.b16 %v2812
    %v3510 = vunpack.c.h.b16 %v2812
    %v3511 = vunpack.c.l.b16 %v2813
    %v3512 = vunpack.c.h.b16 %v2813
    %v3513 = vunpack.c.l.b16 %v2814
    %v3514 = vunpack.c.l.b16 %v2815
    %v3515 = vunpack.c.h.b16 %v2815
    %v3516 = vunpack.c.l.b16 %v2816
    %v3517 = vunpack.c.h.b16 %v2816
    %v3518 = vunpack.c.l.b16 %v2817
    %v3519 = vunpack.c.h.b16 %v2817
    %v3520 = vunpack.c.l.b16 %v2818
    %v3521 = vunpack.c.l.b16 %v2819
    %v3522 = vunpack.c.h.b16 %v2819
    %v3523 = vunpack.c.l.b16 %v2820
    %v3524 = vunpack.c.h.b16 %v2820
    %v3525 = vunpack.c.l.b16 %v2821
    %v3526 = vunpack.c.h.b16 %v2821
    %v3527 = vunpack.c.l.b16 %v2822
    %v3528 = vunpack.c.l.b16 %v2823
    %v3529 = vunpack.c.h.b16 %v2823
    %v3530 = vunpack.c.l.b16 %v2824
    %v3531 = vunpack.c.h.b16 %v2824
    %v3532 = vunpack.c.l.b16 %v2825
    %v3533 = vunpack.c.h.b16 %v2825
    %v3534 = vunpack.c.l.b16 %v2826
    %v3535 = vunpack.c.l.b16 %v2827
    %v3536 = vunpack.c.h.b16 %v2827
    %v3537 = vunpack.c.l.b16 %v2828
    %v3538 = vunpack.c.h.b16 %v2828
    %v3539 = vunpack.c.l.b16 %v2829
    %v3540 = vunpack.c.h.b16 %v2829
    %v3541 = vunpack.c.l.b16 %v2830
    %v3542 = vunpack.c.l.b16 %v2831
    %v3543 = vunpack.c.h.b16 %v2831
    %v3544 = vunpack.c.l.b16 %v2832
    %v3545 = vunpack.c.h.b16 %v2832
    %v3546 = vunpack.c.l.b16 %v2833
    %v3547 = vunpack.c.h.b16 %v2833
    %v3548 = vunpack.c.l.b16 %v2834
    %v3549 = vunpack.c.l.b16 %v2835
    %v3550 = vunpack.c.h.b16 %v2835
    %v3551 = vunpack.c.l.b16 %v2836
    %v3552 = vunpack.c.h.b16 %v2836
    %v3553 = vunpack.c.l.b16 %v2837
    %v3554 = vunpack.c.h.b16 %v2837
    %v3555 = vunpack.c.l.b16 %v2838
    %v3556 = vunpack.c.l.b16 %v2839
    %v3557 = vunpack.c.h.b16 %v2839
    %v3558 = vunpack.c.l.b16 %v2840
    %v3559 = vunpack.c.h.b16 %v2840
    %v3560 = vunpack.c.l.b16 %v2841
    %v3561 = vunpack.c.h.b16 %v2841
    %v3562 = vunpack.c.l.b16 %v2842
    %v3563 = vunpack.c.l.b16 %v2843
    %v3564 = vunpack.c.h.b16 %v2843
    %v3565 = vunpack.c.l.b16 %v2844
    %v3566 = vunpack.c.h.b16 %v2844
    %v3567 = vunpack.c.l.b16 %v2845
    %v3568 = vunpack.c.h.b16 %v2845
    %v3569 = vunpack.c.l.b16 %v2846
    %v3570 = vunpack.c.l.b16 %v2847
    %v3571 = vunpack.c.h.b16 %v2847
    %v3572 = vunpack.c.l.b16 %v2848
    %v3573 = vunpack.c.h.b16 %v2848
    %v3574 = vunpack.c.l.b16 %v2849
    %v3575 = vunpack.c.h.b16 %v2849
    %v3576 = vunpack.c.l.b16 %v2850
    %v3577 = vunpack.c.l.b16 %v2851
    %v3578 = vunpack.c.h.b16 %v2851
    %v3579 = vunpack.c.l.b16 %v2852
    %v3580 = vunpack.c.h.b16 %v2852
    %v3581 = vunpack.c.l.b16 %v2853
    %v3582 = vunpack.c.h.b16 %v2853
    %v3583 = vunpack.c.l.b16 %v2854
    %v3584 = vunpack.c.l.b16 %v2855
    %v3585 = vunpack.c.h.b16 %v2855
    %v3586 = vunpack.c.l.b16 %v2856
    %v3587 = vunpack.c.h.b16 %v2856
    %v3588 = vunpack.c.l.b16 %v2857
    %v3589 = vunpack.c.h.b16 %v2857
    %v3590 = vunpack.c.l.b16 %v2858
    %v3591 = vunpack.c.l.b16 %v2859
    %v3592 = vunpack.c.h.b16 %v2859
    %v3593 = vunpack.c.l.b16 %v2860
    %v3594 = vunpack.c.h.b16 %v2860
    %v3595 = vunpack.c.l.b16 %v2861
    %v3596 = vunpack.c.h.b16 %v2861
    %v3597 = vunpack.c.l.b16 %v2862
    %v3598 = vunpack.c.l.b16 %v2863
    %v3599 = vunpack.c.h.b16 %v2863
    %v3600 = vunpack.c.l.b16 %v2864
    %v3601 = vunpack.c.h.b16 %v2864
    %v3602 = vunpack.c.l.b16 %v2865
    %v3603 = vunpack.c.h.b16 %v2865
    %v3604 = vunpack.c.l.b16 %v2866
    %v3605 = vunpack.c.l.b16 %v2867
    %v3606 = vunpack.c.h.b16 %v2867
    %v3607 = vunpack.c.l.b16 %v2868
    %v3608 = vunpack.c.h.b16 %v2868
    %v3609 = vunpack.c.l.b16 %v2869
    %v3610 = vunpack.c.h.b16 %v2869
    %v3611 = vunpack.c.l.b16 %v2870
    %v3612 = vpack.c.b16 %v3171, %v3164
    %v3613 = vpack.c.b16 %v3172, %v3165
    %v3614 = vpack.c.b16 %v3173, %v3166
    %v3615 = vpack.c.b16 %v3174, %v3167
    %v3616 = vpack.c.b16 %v3175, %v3168
    %v3617 = vpack.c.b16 %v3176, %v3169
    %v3618 = vpack.c.b16 %v3177, %v3170
    %v3619 = vpack.c.b16 %v3185, %v3178
    %v3620 = vpack.c.b16 %v3186, %v3179
    %v3621 = vpack.c.b16 %v3187, %v3180
    %v3622 = vpack.c.b16 %v3188, %v3181
    %v3623 = vpack.c.b16 %v3189, %v3182
    %v3624 = vpack.c.b16 %v3190, %v3183
    %v3625 = vpack.c.b16 %v3191, %v3184
    %v3626 = vpack.c.b16 %v3199, %v3192
    %v3627 = vpack.c.b16 %v3200, %v3193
    %v3628 = vpack.c.b16 %v3201, %v3194
    %v3629 = vpack.c.b16 %v3202, %v3195
    %v3630 = vpack.c.b16 %v3203, %v3196
    %v3631 = vpack.c.b16 %v3204, %v3197
    %v3632 = vpack.c.b16 %v3205, %v3198
    %v3633 = vpack.c.b16 %v3213, %v3206
    %v3634 = vpack.c.b16 %v3214, %v3207
    %v3635 = vpack.c.b16 %v3215, %v3208
    %v3636 = vpack.c.b16 %v3216, %v3209
    %v3637 = vpack.c.b16 %v3217, %v3210
    %v3638 = vpack.c.b16 %v3218, %v3211
    %v3639 = vpack.c.b16 %v3219, %v3212
    %v3640 = vpack.c.b16 %v3227, %v3220
    %v3641 = vpack.c.b16 %v3228, %v3221
    %v3642 = vpack.c.b16 %v3229, %v3222
    %v3643 = vpack.c.b16 %v3230, %v3223
    %v3644 = vpack.c.b16 %v3231, %v3224
    %v3645 = vpack.c.b16 %v3232, %v3225
    %v3646 = vpack.c.b16 %v3233, %v3226
    %v3647 = vpack.c.b16 %v3241, %v3234
    %v3648 = vpack.c.b16 %v3242, %v3235
    %v3649 = vpack.c.b16 %v3243, %v3236
    %v3650 = vpack.c.b16 %v3244, %v3237
    %v3651 = vpack.c.b16 %v3245, %v3238
    %v3652 = vpack.c.b16 %v3246, %v3239
    %v3653 = vpack.c.b16 %v3247, %v3240
    %v3654 = vpack.c.b16 %v3255, %v3248
    %v3655 = vpack.c.b16 %v3256, %v3249
    %v3656 = vpack.c.b16 %v3257, %v3250
    %v3657 = vpack.c.b16 %v3258, %v3251
    %v3658 = vpack.c.b16 %v3259, %v3252
    %v3659 = vpack.c.b16 %v3260, %v3253
    %v3660 = vpack.c.b16 %v3261, %v3254
    %v3661 = vpack.c.b16 %v3269, %v3262
    %v3662 = vpack.c.b16 %v3270, %v3263
    %v3663 = vpack.c.b16 %v3271, %v3264
    %v3664 = vpack.c.b16 %v3272, %v3265
    %v3665 = vpack.c.b16 %v3273, %v3266
    %v3666 = vpack.c.b16 %v3274, %v3267
    %v3667 = vpack.c.b16 %v3275, %v3268
    %v3668 = vpack.c.b16 %v3283, %v3276
    %v3669 = vpack.c.b16 %v3284, %v3277
    %v3670 = vpack.c.b16 %v3285, %v3278
    %v3671 = vpack.c.b16 %v3286, %v3279
    %v3672 = vpack.c.b16 %v3287, %v3280
    %v3673 = vpack.c.b16 %v3288, %v3281
    %v3674 = vpack.c.b16 %v3289, %v3282
    %v3675 = vpack.c.b16 %v3297, %v3290
    %v3676 = vpack.c.b16 %v3298, %v3291
    %v3677 = vpack.c.b16 %v3299, %v3292
    %v3678 = vpack.c.b16 %v3300, %v3293
    %v3679 = vpack.c.b16 %v3301, %v3294
    %v3680 = vpack.c.b16 %v3302, %v3295
    %v3681 = vpack.c.b16 %v3303, %v3296
    %v3682 = vpack.c.b16 %v3311, %v3304
    %v3683 = vpack.c.b16 %v3312, %v3305
    %v3684 = vpack.c.b16 %v3313, %v3306
    %v3685 = vpack.c.b16 %v3314, %v3307
    %v3686 = vpack.c.b16 %v3315, %v3308
    %v3687 = vpack.c.b16 %v3316, %v3309
    %v3688 = vpack.c.b16 %v3317, %v3310
    %v3689 = vpack.c.b16 %v3325, %v3318
    %v3690 = vpack.c.b16 %v3326, %v3319
    %v3691 = vpack.c.b16 %v3327, %v3320
    %v3692 = vpack.c.b16 %v3328, %v3321
    %v3693 = vpack.c.b16 %v3329, %v3322
    %v3694 = vpack.c.b16 %v3330, %v3323
    %v3695 = vpack.c.b16 %v3331, %v3324
    %v3696 = vpack.c.b16 %v3339, %v3332
    %v3697 = vpack.c.b16 %v3340, %v3333
    %v3698 = vpack.c.b16 %v3341, %v3334
    %v3699 = vpack.c.b16 %v3342, %v3335
    %v3700 = vpack.c.b16 %v3343, %v3336
    %v3701 = vpack.c.b16 %v3344, %v3337
    %v3702 = vpack.c.b16 %v3345, %v3338
    %v3703 = vpack.c.b16 %v3353, %v3346
    %v3704 = vpack.c.b16 %v3354, %v3347
    %v3705 = vpack.c.b16 %v3355, %v3348
    %v3706 = vpack.c.b16 %v3356, %v3349
    %v3707 = vpack.c.b16 %v3357, %v3350
    %v3708 = vpack.c.b16 %v3358, %v3351
    %v3709 = vpack.c.b16 %v3359, %v3352
    %v3710 = vpack.c.b16 %v3367, %v3360
    %v3711 = vpack.c.b16 %v3368, %v3361
    %v3712 = vpack.c.b16 %v3369, %v3362
    %v3713 = vpack.c.b16 %v3370, %v3363
    %v3714 = vpack.c.b16 %v3371, %v3364
    %v3715 = vpack.c.b16 %v3372, %v3365
    %v3716 = vpack.c.b16 %v3373, %v3366
    %v3717 = vpack.c.b16 %v3381, %v3374
    %v3718 = vpack.c.b16 %v3382, %v3375
    %v3719 = vpack.c.b16 %v3383, %v3376
    %v3720 = vpack.c.b16 %v3384, %v3377
    %v3721 = vpack.c.b16 %v3385, %v3378
    %v3722 = vpack.c.b16 %v3386, %v3379
    %v3723 = vpack.c.b16 %v3387, %v3380
    %v3724 = vpack.c.b16 %v3395, %v3388
    %v3725 = vpack.c.b16 %v3396, %v3389
    %v3726 = vpack.c.b16 %v3397, %v3390
    %v3727 = vpack.c.b16 %v3398, %v3391
    %v3728 = vpack.c.b16 %v3399, %v3392
    %v3729 = vpack.c.b16 %v3400, %v3393
    %v3730 = vpack.c.b16 %v3401, %v3394
    %v3731 = vpack.c.b16 %v3409, %v3402
    %v3732 = vpack.c.b16 %v3410, %v3403
    %v3733 = vpack.c.b16 %v3411, %v3404
    %v3734 = vpack.c.b16 %v3412, %v3405
    %v3735 = vpack.c.b16 %v3413, %v3406
    %v3736 = vpack.c.b16 %v3414, %v3407
    %v3737 = vpack.c.b16 %v3415, %v3408
    %v3738 = vpack.c.b16 %v3423, %v3416
    %v3739 = vpack.c.b16 %v3424, %v3417
    %v3740 = vpack.c.b16 %v3425, %v3418
    %v3741 = vpack.c.b16 %v3426, %v3419
    %v3742 = vpack.c.b16 %v3427, %v3420
    %v3743 = vpack.c.b16 %v3428, %v3421
    %v3744 = vpack.c.b16 %v3429, %v3422
    %v3745 = vpack.c.b16 %v3437, %v3430
    %v3746 = vpack.c.b16 %v3438, %v3431
    %v3747 = vpack.c.b16 %v3439, %v3432
    %v3748 = vpack.c.b16 %v3440, %v3433
    %v3749 = vpack.c.b16 %v3441, %v3434
    %v3750 = vpack.c.b16 %v3442, %v3435
    %v3751 = vpack.c.b16 %v3443, %v3436
    %v3752 = vpack.c.b16 %v3451, %v3444
    %v3753 = vpack.c.b16 %v3452, %v3445
    %v3754 = vpack.c.b16 %v3453, %v3446
    %v3755 = vpack.c.b16 %v3454, %v3447
    %v3756 = vpack.c.b16 %v3455, %v3448
    %v3757 = vpack.c.b16 %v3456, %v3449
    %v3758 = vpack.c.b16 %v3457, %v3450
    %v3759 = vpack.c.b16 %v3465, %v3458
    %v3760 = vpack.c.b16 %v3466, %v3459
    %v3761 = vpack.c.b16 %v3467, %v3460
    %v3762 = vpack.c.b16 %v3468, %v3461
    %v3763 = vpack.c.b16 %v3469, %v3462
    %v3764 = vpack.c.b16 %v3470, %v3463
    %v3765 = vpack.c.b16 %v3471, %v3464
    %v3766 = vpack.c.b16 %v3479, %v3472
    %v3767 = vpack.c.b16 %v3480, %v3473
    %v3768 = vpack.c.b16 %v3481, %v3474
    %v3769 = vpack.c.b16 %v3482, %v3475
    %v3770 = vpack.c.b16 %v3483, %v3476
    %v3771 = vpack.c.b16 %v3484, %v3477
    %v3772 = vpack.c.b16 %v3485, %v3478
    %v3773 = vpack.c.b16 %v3493, %v3486
    %v3774 = vpack.c.b16 %v3494, %v3487
    %v3775 = vpack.c.b16 %v3495, %v3488
    %v3776 = vpack.c.b16 %v3496, %v3489
    %v3777 = vpack.c.b16 %v3497, %v3490
    %v3778 = vpack.c.b16 %v3498, %v3491
    %v3779 = vpack.c.b16 %v3499, %v3492
    %v3780 = vpack.c.b16 %v3507, %v3500
    %v3781 = vpack.c.b16 %v3508, %v3501
    %v3782 = vpack.c.b16 %v3509, %v3502
    %v3783 = vpack.c.b16 %v3510, %v3503
    %v3784 = vpack.c.b16 %v3511, %v3504
    %v3785 = vpack.c.b16 %v3512, %v3505
    %v3786 = vpack.c.b16 %v3513, %v3506
    %v3787 = vpack.c.b16 %v3521, %v3514
    %v3788 = vpack.c.b16 %v3522, %v3515
    %v3789 = vpack.c.b16 %v3523, %v3516
    %v3790 = vpack.c.b16 %v3524, %v3517
    %v3791 = vpack.c.b16 %v3525, %v3518
    %v3792 = vpack.c.b16 %v3526, %v3519
    %v3793 = vpack.c.b16 %v3527, %v3520
    %v3794 = vpack.c.b16 %v3535, %v3528
    %v3795 = vpack.c.b16 %v3536, %v3529
    %v3796 = vpack.c.b16 %v3537, %v3530
    %v3797 = vpack.c.b16 %v3538, %v3531
    %v3798 = vpack.c.b16 %v3539, %v3532
    %v3799 = vpack.c.b16 %v3540, %v3533
    %v3800 = vpack.c.b16 %v3541, %v3534
    %v3801 = vpack.c.b16 %v3549, %v3542
    %v3802 = vpack.c.b16 %v3550, %v3543
    %v3803 = vpack.c.b16 %v3551, %v3544
    %v3804 = vpack.c.b16 %v3552, %v3545
    %v3805 = vpack.c.b16 %v3553, %v3546
    %v3806 = vpack.c.b16 %v3554, %v3547
    %v3807 = vpack.c.b16 %v3555, %v3548
    %v3808 = vpack.c.b16 %v3563, %v3556
    %v3809 = vpack.c.b16 %v3564, %v3557
    %v3810 = vpack.c.b16 %v3565, %v3558
    %v3811 = vpack.c.b16 %v3566, %v3559
    %v3812 = vpack.c.b16 %v3567, %v3560
    %v3813 = vpack.c.b16 %v3568, %v3561
    %v3814 = vpack.c.b16 %v3569, %v3562
    %v3815 = vpack.c.b16 %v3577, %v3570
    %v3816 = vpack.c.b16 %v3578, %v3571
    %v3817 = vpack.c.b16 %v3579, %v3572
    %v3818 = vpack.c.b16 %v3580, %v3573
    %v3819 = vpack.c.b16 %v3581, %v3574
    %v3820 = vpack.c.b16 %v3582, %v3575
    %v3821 = vpack.c.b16 %v3583, %v3576
    %v3822 = vpack.c.b16 %v3591, %v3584
    %v3823 = vpack.c.b16 %v3592, %v3585
    %v3824 = vpack.c.b16 %v3593, %v3586
    %v3825 = vpack.c.b16 %v3594, %v3587
    %v3826 = vpack.c.b16 %v3595, %v3588
    %v3827 = vpack.c.b16 %v3596, %v3589
    %v3828 = vpack.c.b16 %v3597, %v3590
    %v3829 = vpack.c.b16 %v3605, %v3598
    %v3830 = vpack.c.b16 %v3606, %v3599
    %v3831 = vpack.c.b16 %v3607, %v3600
    %v3832 = vpack.c.b16 %v3608, %v3601
    %v3833 = vpack.c.b16 %v3609, %v3602
    %v3834 = vpack.c.b16 %v3610, %v3603
    %v3835 = vpack.c.b16 %v3611, %v3604
    %4060 = vmatprep.subr.bf16.mxu0 %v3613
    %4061 = vmatpush1.bf16.msra.mxu0 %v3612
    %4062 = vmatprep.subr.bf16.mxu0 %v3620
    %4063 = vmatpush1.bf16.msra.mxu0 %v3619
    %4064 = vmatprep.subr.bf16.mxu0 %v3627
    %4065 = vmatpush1.bf16.msra.mxu0 %v3626
    %4066 = vmatprep.subr.bf16.mxu0 %v3634
    %4067 = vmatpush1.bf16.msra.mxu0 %v3633
    %4068 = vmatprep.subr.bf16.mxu0 %v3641
    %4069 = vmatpush1.bf16.msra.mxu0 %v3640
    %4070 = vmatprep.subr.bf16.mxu0 %v3648
    %4071 = vmatpush1.bf16.msra.mxu0 %v3647
    %4072 = vmatprep.subr.bf16.mxu0 %v3655
    %4073 = vmatpush1.bf16.msra.mxu0 %v3654
    %4074 = vmatprep.subr.bf16.mxu0 %v3662
    %4075 = vmatpush1.bf16.msra.mxu0 %v3661
    %4076 = vmatprep.subr.bf16.mxu0 %v3669
    %4077 = vmatpush1.bf16.msra.mxu0 %v3668
    %4078 = vmatprep.subr.bf16.mxu0 %v3676
    %4079 = vmatpush1.bf16.msra.mxu0 %v3675
    %4080 = vmatprep.subr.bf16.mxu0 %v3683
    %4081 = vmatpush1.bf16.msra.mxu0 %v3682
    %4082 = vmatprep.subr.bf16.mxu0 %v3690
    %4083 = vmatpush1.bf16.msra.mxu0 %v3689
    %4084 = vmatprep.subr.bf16.mxu0 %v3697
    %4085 = vmatpush1.bf16.msra.mxu0 %v3696
    %4086 = vmatprep.subr.bf16.mxu0 %v3704
    %4087 = vmatpush1.bf16.msra.mxu0 %v3703
    %4088 = vmatprep.subr.bf16.mxu0 %v3711
    %4089 = vmatpush1.bf16.msra.mxu0 %v3710
    %4090 = vmatprep.subr.bf16.mxu0 %v3718
    %4091 = vmatpush1.bf16.msra.mxu0 %v3717
    %4092 = vmatprep.mubr.bf16.mxu0 %v2612
    %4093 = vmatmul.mubr.bf16.gmra.mrb[0].mxu0 %v2611
    %v4094 = vpop.f32.mrb[0].mxu0
    %v4095 = vadd.f32 %v2876, %v4094
    %v4096 = vpop.f32.mrb[0].mxu0
    %v4097 = vadd.f32 %v2880, %v4096
    %v4098 = vpop.f32.mrb[0].mxu0
    %v4099 = vpop.f32.mrb[0].mxu0
    %4100 = vdwg.mxu0
    %4101 = vmatprep.subr.bf16.mxu0 %v3725
    %4102 = vmatpush1.bf16.msra.mxu0 %v3724
    %4103 = vmatprep.subr.bf16.mxu0 %v3732
    %4104 = vmatpush1.bf16.msra.mxu0 %v3731
    %4105 = vmatprep.subr.bf16.mxu0 %v3739
    %4106 = vmatpush1.bf16.msra.mxu0 %v3738
    %4107 = vmatprep.subr.bf16.mxu0 %v3746
    %4108 = vmatpush1.bf16.msra.mxu0 %v3745
    %4109 = vmatprep.subr.bf16.mxu0 %v3753
    %4110 = vmatpush1.bf16.msra.mxu0 %v3752
    %4111 = vmatprep.subr.bf16.mxu0 %v3760
    %4112 = vmatpush1.bf16.msra.mxu0 %v3759
    %4113 = vmatprep.subr.bf16.mxu0 %v3767
    %4114 = vmatpush1.bf16.msra.mxu0 %v3766
    %4115 = vmatprep.subr.bf16.mxu0 %v3774
    %4116 = vmatpush1.bf16.msra.mxu0 %v3773
    %4117 = vmatprep.subr.bf16.mxu0 %v3781
    %4118 = vmatpush1.bf16.msra.mxu0 %v3780
    %4119 = vmatprep.subr.bf16.mxu0 %v3788
    %4120 = vmatpush1.bf16.msra.mxu0 %v3787
    %4121 = vmatprep.subr.bf16.mxu0 %v3795
    %4122 = vmatpush1.bf16.msra.mxu0 %v3794
    %4123 = vmatprep.subr.bf16.mxu0 %v3802
    %4124 = vmatpush1.bf16.msra.mxu0 %v3801
    %4125 = vmatprep.subr.bf16.mxu0 %v3809
    %4126 = vmatpush1.bf16.msra.mxu0 %v3808
    %4127 = vmatprep.subr.bf16.mxu0 %v3816
    %4128 = vmatpush1.bf16.msra.mxu0 %v3815
    %4129 = vmatprep.subr.bf16.mxu0 %v3823
    %4130 = vmatpush1.bf16.msra.mxu0 %v3822
    %4131 = vmatprep.subr.bf16.mxu0 %v3830
    %4132 = vmatpush1.bf16.msra.mxu0 %v3829
    %4133 = vmatprep.mubr.bf16.mxu0 %v2614
    %4134 = vmatmul.mubr.bf16.gmra.mrb[0].mxu0 %v2613
    %v4135 = vpop.f32.mrb[0].mxu0
    %v4136 = vadd.f32 %v4095, %v4135
    %v4137 = vpop.f32.mrb[0].mxu0
    %v4138 = vadd.f32 %v4097, %v4137
    %v4139 = vpop.f32.mrb[0].mxu0
    %v4140 = vpop.f32.mrb[0].mxu0
    %4141 = vdwg.mxu0
    %4142 = vmatprep.subr.bf16.mxu0 %v3615
    %4143 = vmatpush1.bf16.msra.mxu0 %v3614
    %4144 = vmatprep.subr.bf16.mxu0 %v3622
    %4145 = vmatpush1.bf16.msra.mxu0 %v3621
    %4146 = vmatprep.subr.bf16.mxu0 %v3629
    %4147 = vmatpush1.bf16.msra.mxu0 %v3628
    %4148 = vmatprep.subr.bf16.mxu0 %v3636
    %4149 = vmatpush1.bf16.msra.mxu0 %v3635
    %4150 = vmatprep.subr.bf16.mxu0 %v3643
    %4151 = vmatpush1.bf16.msra.mxu0 %v3642
    %4152 = vmatprep.subr.bf16.mxu0 %v3650
    %4153 = vmatpush1.bf16.msra.mxu0 %v3649
    %4154 = vmatprep.subr.bf16.mxu0 %v3657
    %4155 = vmatpush1.bf16.msra.mxu0 %v3656
    %4156 = vmatprep.subr.bf16.mxu0 %v3664
    %4157 = vmatpush1.bf16.msra.mxu0 %v3663
    %4158 = vmatprep.subr.bf16.mxu0 %v3671
    %4159 = vmatpush1.bf16.msra.mxu0 %v3670
    %4160 = vmatprep.subr.bf16.mxu0 %v3678
    %4161 = vmatpush1.bf16.msra.mxu0 %v3677
    %4162 = vmatprep.subr.bf16.mxu0 %v3685
    %4163 = vmatpush1.bf16.msra.mxu0 %v3684
    %4164 = vmatprep.subr.bf16.mxu0 %v3692
    %4165 = vmatpush1.bf16.msra.mxu0 %v3691
    %4166 = vmatprep.subr.bf16.mxu0 %v3699
    %4167 = vmatpush1.bf16.msra.mxu0 %v3698
    %4168 = vmatprep.subr.bf16.mxu0 %v3706
    %4169 = vmatpush1.bf16.msra.mxu0 %v3705
    %4170 = vmatprep.subr.bf16.mxu0 %v3713
    %4171 = vmatpush1.bf16.msra.mxu0 %v3712
    %4172 = vmatprep.subr.bf16.mxu0 %v3720
    %4173 = vmatpush1.bf16.msra.mxu0 %v3719
    %4174 = vmatprep.mubr.bf16.mxu0 %v2612
    %4175 = vmatmul.mubr.bf16.gmra.mrb[0].mxu0 %v2611
    %v4176 = vpop.f32.mrb[0].mxu0
    %v4177 = vadd.f32 %v2884, %v4176
    %v4178 = vpop.f32.mrb[0].mxu0
    %v4179 = vadd.f32 %v2888, %v4178
    %v4180 = vpop.f32.mrb[0].mxu0
    %v4181 = vpop.f32.mrb[0].mxu0
    %4182 = vdwg.mxu0
    %4183 = vmatprep.subr.bf16.mxu0 %v3727
    %4184 = vmatpush1.bf16.msra.mxu0 %v3726
    %4185 = vmatprep.subr.bf16.mxu0 %v3734
    %4186 = vmatpush1.bf16.msra.mxu0 %v3733
    %4187 = vmatprep.subr.bf16.mxu0 %v3741
    %4188 = vmatpush1.bf16.msra.mxu0 %v3740
    %4189 = vmatprep.subr.bf16.mxu0 %v3748
    %4190 = vmatpush1.bf16.msra.mxu0 %v3747
    %4191 = vmatprep.subr.bf16.mxu0 %v3755
    %4192 = vmatpush1.bf16.msra.mxu0 %v3754
    %4193 = vmatprep.subr.bf16.mxu0 %v3762
    %4194 = vmatpush1.bf16.msra.mxu0 %v3761
    %4195 = vmatprep.subr.bf16.mxu0 %v3769
    %4196 = vmatpush1.bf16.msra.mxu0 %v3768
    %4197 = vmatprep.subr.bf16.mxu0 %v3776
    %4198 = vmatpush1.bf16.msra.mxu0 %v3775
    %4199 = vmatprep.subr.bf16.mxu0 %v3783
    %4200 = vmatpush1.bf16.msra.mxu0 %v3782
    %4201 = vmatprep.subr.bf16.mxu0 %v3790
    %4202 = vmatpush1.bf16.msra.mxu0 %v3789
    %4203 = vmatprep.subr.bf16.mxu0 %v3797
    %4204 = vmatpush1.bf16.msra.mxu0 %v3796
    %4205 = vmatprep.subr.bf16.mxu0 %v3804
    %4206 = vmatpush1.bf16.msra.mxu0 %v3803
    %4207 = vmatprep.subr.bf16.mxu0 %v3811
    %4208 = vmatpush1.bf16.msra.mxu0 %v3810
    %4209 = vmatprep.subr.bf16.mxu0 %v3818
    %4210 = vmatpush1.bf16.msra.mxu0 %v3817
    %4211 = vmatprep.subr.bf16.mxu0 %v3825
    %4212 = vmatpush1.bf16.msra.mxu0 %v3824
    %4213 = vmatprep.subr.bf16.mxu0 %v3832
    %4214 = vmatpush1.bf16.msra.mxu0 %v3831
    %4215 = vmatprep.mubr.bf16.mxu0 %v2614
    %4216 = vmatmul.mubr.bf16.gmra.mrb[0].mxu0 %v2613
    %v4217 = vpop.f32.mrb[0].mxu0
    %v4218 = vadd.f32 %v4177, %v4217
    %v4219 = vpop.f32.mrb[0].mxu0
    %v4220 = vadd.f32 %v4179, %v4219
    %v4221 = vpop.f32.mrb[0].mxu0
    %v4222 = vpop.f32.mrb[0].mxu0
    %4223 = vdwg.mxu0
    %4224 = vmatprep.subr.bf16.mxu0 %v3617
    %4225 = vmatpush1.bf16.msra.mxu0 %v3616
    %4226 = vmatprep.subr.bf16.mxu0 %v3624
    %4227 = vmatpush1.bf16.msra.mxu0 %v3623
    %4228 = vmatprep.subr.bf16.mxu0 %v3631
    %4229 = vmatpush1.bf16.msra.mxu0 %v3630
    %4230 = vmatprep.subr.bf16.mxu0 %v3638
    %4231 = vmatpush1.bf16.msra.mxu0 %v3637
    %4232 = vmatprep.subr.bf16.mxu0 %v3645
    %4233 = vmatpush1.bf16.msra.mxu0 %v3644
    %4234 = vmatprep.subr.bf16.mxu0 %v3652
    %4235 = vmatpush1.bf16.msra.mxu0 %v3651
    %4236 = vmatprep.subr.bf16.mxu0 %v3659
    %4237 = vmatpush1.bf16.msra.mxu0 %v3658
    %4238 = vmatprep.subr.bf16.mxu0 %v3666
    %4239 = vmatpush1.bf16.msra.mxu0 %v3665
    %4240 = vmatprep.subr.bf16.mxu0 %v3673
    %4241 = vmatpush1.bf16.msra.mxu0 %v3672
    %4242 = vmatprep.subr.bf16.mxu0 %v3680
    %4243 = vmatpush1.bf16.msra.mxu0 %v3679
    %4244 = vmatprep.subr.bf16.mxu0 %v3687
    %4245 = vmatpush1.bf16.msra.mxu0 %v3686
    %4246 = vmatprep.subr.bf16.mxu0 %v3694
    %4247 = vmatpush1.bf16.msra.mxu0 %v3693
    %4248 = vmatprep.subr.bf16.mxu0 %v3701
    %4249 = vmatpush1.bf16.msra.mxu0 %v3700
    %4250 = vmatprep.subr.bf16.mxu0 %v3708
    %4251 = vmatpush1.bf16.msra.mxu0 %v3707
    %4252 = vmatprep.subr.bf16.mxu0 %v3715
    %4253 = vmatpush1.bf16.msra.mxu0 %v3714
    %4254 = vmatprep.subr.bf16.mxu0 %v3722
    %4255 = vmatpush1.bf16.msra.mxu0 %v3721
    %4256 = vmatprep.mubr.bf16.mxu0 %v2612
    %4257 = vmatmul.mubr.bf16.gmra.mrb[0].mxu0 %v2611
    %v4258 = vpop.f32.mrb[0].mxu0
    %v4259 = vadd.f32 %v2892, %v4258
    %v4260 = vpop.f32.mrb[0].mxu0
    %v4261 = vadd.f32 %v2896, %v4260
    %v4262 = vpop.f32.mrb[0].mxu0
    %v4263 = vpop.f32.mrb[0].mxu0
    %4264 = vdwg.mxu0
    %4265 = vmatprep.subr.bf16.mxu0 %v3729
    %4266 = vmatpush1.bf16.msra.mxu0 %v3728
    %4267 = vmatprep.subr.bf16.mxu0 %v3736
    %4268 = vmatpush1.bf16.msra.mxu0 %v3735
    %4269 = vmatprep.subr.bf16.mxu0 %v3743
    %4270 = vmatpush1.bf16.msra.mxu0 %v3742
    %4271 = vmatprep.subr.bf16.mxu0 %v3750
    %4272 = vmatpush1.bf16.msra.mxu0 %v3749
    %4273 = vmatprep.subr.bf16.mxu0 %v3757
    %4274 = vmatpush1.bf16.msra.mxu0 %v3756
    %4275 = vmatprep.subr.bf16.mxu0 %v3764
    %4276 = vmatpush1.bf16.msra.mxu0 %v3763
    %4277 = vmatprep.subr.bf16.mxu0 %v3771
    %4278 = vmatpush1.bf16.msra.mxu0 %v3770
    %4279 = vmatprep.subr.bf16.mxu0 %v3778
    %4280 = vmatpush1.bf16.msra.mxu0 %v3777
    %4281 = vmatprep.subr.bf16.mxu0 %v3785
    %4282 = vmatpush1.bf16.msra.mxu0 %v3784
    %4283 = vmatprep.subr.bf16.mxu0 %v3792
    %4284 = vmatpush1.bf16.msra.mxu0 %v3791
    %4285 = vmatprep.subr.bf16.mxu0 %v3799
    %4286 = vmatpush1.bf16.msra.mxu0 %v3798
    %4287 = vmatprep.subr.bf16.mxu0 %v3806
    %4288 = vmatpush1.bf16.msra.mxu0 %v3805
    %4289 = vmatprep.subr.bf16.mxu0 %v3813
    %4290 = vmatpush1.bf16.msra.mxu0 %v3812
    %4291 = vmatprep.subr.bf16.mxu0 %v3820
    %4292 = vmatpush1.bf16.msra.mxu0 %v3819
    %4293 = vmatprep.subr.bf16.mxu0 %v3827
    %4294 = vmatpush1.bf16.msra.mxu0 %v3826
    %4295 = vmatprep.subr.bf16.mxu0 %v3834
    %4296 = vmatpush1.bf16.msra.mxu0 %v3833
    %4297 = vmatprep.mubr.bf16.mxu0 %v2614
    %4298 = vmatmul.mubr.bf16.gmra.mrb[0].mxu0 %v2613
    %v4299 = vpop.f32.mrb[0].mxu0
    %v4300 = vadd.f32 %v4259, %v4299
    %v4301 = vpop.f32.mrb[0].mxu0
    %v4302 = vadd.f32 %v4261, %v4301
    %v4303 = vpop.f32.mrb[0].mxu0
    %v4304 = vpop.f32.mrb[0].mxu0
    %4305 = vdwg.mxu0
    %4306 = vmatprep.subr.bf16.mxu0 0
    %4307 = vmatpush1.bf16.msra.mxu0 %v3618
    %4308 = vmatprep.subr.bf16.mxu0 0
    %4309 = vmatpush1.bf16.msra.mxu0 %v3625
    %4310 = vmatprep.subr.bf16.mxu0 0
    %4311 = vmatpush1.bf16.msra.mxu0 %v3632
    %4312 = vmatprep.subr.bf16.mxu0 0
    %4313 = vmatpush1.bf16.msra.mxu0 %v3639
    %4314 = vmatprep.subr.bf16.mxu0 0
    %4315 = vmatpush1.bf16.msra.mxu0 %v3646
    %4316 = vmatprep.subr.bf16.mxu0 0
    %4317 = vmatpush1.bf16.msra.mxu0 %v3653
    %4318 = vmatprep.subr.bf16.mxu0 0
    %4319 = vmatpush1.bf16.msra.mxu0 %v3660
    %4320 = vmatprep.subr.bf16.mxu0 0
    %4321 = vmatpush1.bf16.msra.mxu0 %v3667
    %4322 = vmatprep.subr.bf16.mxu0 0
    %4323 = vmatpush1.bf16.msra.mxu0 %v3674
    %4324 = vmatprep.subr.bf16.mxu0 0
    %4325 = vmatpush1.bf16.msra.mxu0 %v3681
    %4326 = vmatprep.subr.bf16.mxu0 0
    %4327 = vmatpush1.bf16.msra.mxu0 %v3688
    %4328 = vmatprep.subr.bf16.mxu0 0
    %4329 = vmatpush1.bf16.msra.mxu0 %v3695
    %4330 = vmatprep.subr.bf16.mxu0 0
    %4331 = vmatpush1.bf16.msra.mxu0 %v3702
    %4332 = vmatprep.subr.bf16.mxu0 0
    %4333 = vmatpush1.bf16.msra.mxu0 %v3709
    %4334 = vmatprep.subr.bf16.mxu0 0
    %4335 = vmatpush1.bf16.msra.mxu0 %v3716
    %4336 = vmatprep.subr.bf16.mxu0 0
    %4337 = vmatpush1.bf16.msra.mxu0 %v3723
    %4338 = vmatprep.mubr.bf16.mxu0 %v2612
    %4339 = vmatmul.mubr.bf16.gmra.mrb[0].mxu0 %v2611
    %v4340 = vpop.f32.mrb[0].mxu0
    %v4341 = vadd.f32 %v2900, %v4340
    %v4342 = vpop.f32.mrb[0].mxu0
    %v4343 = vpop.f32.mrb[0].mxu0
    %v4344 = vpop.f32.mrb[0].mxu0
    %4345 = vdwg.mxu0
    %4346 = vmatprep.subr.bf16.mxu0 0
    %4347 = vmatpush1.bf16.msra.mxu0 %v3730
    %4348 = vmatprep.subr.bf16.mxu0 0
    %4349 = vmatpush1.bf16.msra.mxu0 %v3737
    %4350 = vmatprep.subr.bf16.mxu0 0
    %4351 = vmatpush1.bf16.msra.mxu0 %v3744
    %4352 = vmatprep.subr.bf16.mxu0 0
    %4353 = vmatpush1.bf16.msra.mxu0 %v3751
    %4354 = vmatprep.subr.bf16.mxu0 0
    %4355 = vmatpush1.bf16.msra.mxu0 %v3758
    %4356 = vmatprep.subr.bf16.mxu0 0
    %4357 = vmatpush1.bf16.msra.mxu0 %v3765
    %4358 = vmatprep.subr.bf16.mxu0 0
    %4359 = vmatpush1.bf16.msra.mxu0 %v3772
    %4360 = vmatprep.subr.bf16.mxu0 0
    %4361 = vmatpush1.bf16.msra.mxu0 %v3779
    %4362 = vmatprep.subr.bf16.mxu0 0
    %4363 = vmatpush1.bf16.msra.mxu0 %v3786
    %4364 = vmatprep.subr.bf16.mxu0 0
    %4365 = vmatpush1.bf16.msra.mxu0 %v3793
    %4366 = vmatprep.subr.bf16.mxu0 0
    %4367 = vmatpush1.bf16.msra.mxu0 %v3800
    %4368 = vmatprep.subr.bf16.mxu0 0
    %4369 = vmatpush1.bf16.msra.mxu0 %v3807
    %4370 = vmatprep.subr.bf16.mxu0 0
    %4371 = vmatpush1.bf16.msra.mxu0 %v3814
    %4372 = vmatprep.subr.bf16.mxu0 0
    %4373 = vmatpush1.bf16.msra.mxu0 %v3821
    %4374 = vmatprep.subr.bf16.mxu0 0
    %4375 = vmatpush1.bf16.msra.mxu0 %v3828
    %4376 = vmatprep.subr.bf16.mxu0 0
    %4377 = vmatpush1.bf16.msra.mxu0 %v3835
    %4378 = vmatprep.mubr.bf16.mxu0 %v2614
    %4379 = vmatmul.mubr.bf16.gmra.mrb[0].mxu0 %v2613
    %v4380 = vpop.f32.mrb[0].mxu0
    %v4381 = vadd.f32 %v4341, %v4380
    %v4382 = vpop.f32.mrb[0].mxu0
    %v4383 = vpop.f32.mrb[0].mxu0
    %v4384 = vpop.f32.mrb[0].mxu0
    %4385 = vdwg.mxu0
    %v4386 = vxor.u32 %v4136, 2147483648
    %v4387 = vxor.u32 %v4138, 2147483648
    %v4388 = vxor.u32 %v4218, 2147483648
    %v4389 = vxor.u32 %v4220, 2147483648
    %v4390 = vxor.u32 %v4300, 2147483648
    %v4391 = vxor.u32 %v4302, 2147483648
    %v4392 = vxor.u32 %v4381, 2147483648
    %v4393 = vmul.f32 %v4386, 1.442695
    %v4394 = vpow.pop %v4393
    %v4395 = vmul.f32 %v4387, 1.442695
    %v4396 = vpow.pop %v4395
    %v4397 = vmul.f32 %v4388, 1.442695
    %v4398 = vpow.pop %v4397
    %v4399 = vmul.f32 %v4389, 1.442695
    %v4400 = vpow.pop %v4399
    %v4401 = vmul.f32 %v4390, 1.442695
    %v4402 = vpow.pop %v4401
    %v4403 = vmul.f32 %v4391, 1.442695
    %v4404 = vpow.pop %v4403
    %v4405 = vmul.f32 %v4392, 1.442695
    %v4406 = vpow.pop %v4405
    %v4407 = vadd.f32 %v4394, 1.0
    %v4408 = vadd.f32 %v4396, 1.0
    %v4409 = vadd.f32 %v4398, 1.0
    %v4410 = vadd.f32 %v4400, 1.0
    %v4411 = vadd.f32 %v4402, 1.0
    %v4412 = vadd.f32 %v4404, 1.0
    %v4413 = vadd.f32 %v4406, 1.0
    %v4414 = vrcp.pop %v4407
    %v4415 = vmul.f32 1.0, %v4414
    %v4416 = vrcp.pop %v4408
    %v4417 = vmul.f32 1.0, %v4416
    %v4418 = vrcp.pop %v4409
    %v4419 = vmul.f32 1.0, %v4418
    %v4420 = vrcp.pop %v4410
    %v4421 = vmul.f32 1.0, %v4420
    %v4422 = vrcp.pop %v4411
    %v4423 = vmul.f32 1.0, %v4422
    %v4424 = vrcp.pop %v4412
    %v4425 = vmul.f32 1.0, %v4424
    %v4426 = vrcp.pop %v4413
    %v4427 = vmul.f32 1.0, %v4426
    %4428 = vst [vmem:[%s11] sm:$0xff] %v4415
    %4429 = vst [vmem:[%s11 + $0x8] sm:$0xff] %v4417
    %4430 = vst [vmem:[%s11 + $0x10] sm:$0xff] %v4419
    %4431 = vst [vmem:[%s11 + $0x18] sm:$0xff] %v4421
    %4432 = vst [vmem:[%s11 + $0x20] sm:$0xff] %v4423
    %4433 = vst [vmem:[%s11 + $0x28] sm:$0xff] %v4425
    %4434 = vst [vmem:[%s11 + $0x30] sm:$0xff] %v4427
    // Predicated region
    $region58: #{vae_forward.1} parent=1 // pred_check
      _
    $region59: #{vae_forward.1} parent=1 // pred_check_branch
      %4436 = sbr.rel (0) target = $region61
    $region60: #{vae_forward.1} parent=1 // pred_region
      _
    $region61: #{vae_forward.1} parent=1 // pred_fallthru
      _
    // Predicated region
    $region62: #{vae_forward.1} parent=1 // pred_check
      _
    $region63: #{vae_forward.1} parent=1 // pred_check_branch
      %4438 = sbr.rel (0) target = $region65
    $region64: #{vae_forward.1} parent=1 // pred_region
      _
    $region65: #{vae_forward.1} parent=1 // pred_fallthru
      _
    // Predicated region
    $region66: #{vae_forward.1} parent=1 // pred_check
      _
    $region67: #{vae_forward.1} parent=1 // pred_check_branch
      %4440 = sbr.rel (0) target = $region69
    $region68: #{vae_forward.1} parent=1 // pred_region
      _
    $region69: #{vae_forward.1} parent=1 // pred_fallthru
      _
    // Predicated region
    $region70: #{vae_forward.1} parent=1 // pred_check
      _
    $region71: #{vae_forward.1} parent=1 // pred_check_branch
      %4442 = sbr.rel (0) target = $region73
    $region72: #{vae_forward.1} parent=1 // pred_region
      _
    $region73: #{vae_forward.1} parent=1 // pred_fallthru
      _
    %4443 = vsyncpa [#allocation3], 1
    %4444 = vsyncpa [#allocation5], 1
    %4445 = vsyncpa [#allocation8], 1

</llo_original>
